<compile_context>
chip_gen: v6e
topology: v6e:2x2x1
jax: 0.10.0
libtpu: 0.0.40
codegen_flags: <defaults>
</compile_context>

<pallas_src>
import functools

import jax
import jax.numpy as jnp
from jax import lax
from jax.experimental import pallas as pl
from jax.experimental.pallas import tpu as pltpu


# ---------------------------------------------------------------------------
# Kernel: whole one_conv forward for `block_b` stacked images per grid step.
#   s_ref  : SMEM (2,) f32            -> [s1, s2]  (Scale weights)
#   x_ref  : (block_b*H, W*Cin) f32   channels-last rows of the images
#   m1_ref : (3, W*Cin, W*G)   bf16   banded matrices of conv  (one / v-tap)
#   m2_ref : (3, W*G, W*Cin)   bf16   banded matrices of conv1 (one / v-tap)
#   b1_ref : (1, W*G)  f32            conv bias tiled per pixel
#   a1_ref : (1, W*G)  f32            PReLU alpha tiled per pixel
#   b2_ref : (1, W*Cin) f32           conv1 bias tiled per pixel
#   o_ref  : (block_b*H, W*Cin) f32
# ---------------------------------------------------------------------------
def _one_conv_kernel(s_ref, x_ref, m1_ref, m2_ref, b1_ref, a1_ref, b2_ref,
                     o_ref, *, img_rows):
    M, _ = x_ref.shape
    x_f32 = x_ref[...]                                   # (M, W*Cin) f32

    # Stacked images have no halo rows: a vertical tap that would read across
    # an image boundary is zeroed via a row mask instead.
    row = lax.broadcasted_iota(jnp.int32, (M, 1), 0)
    not_top = (row % img_rows) != 0                      # row above exists
    not_bot = (row % img_rows) != (img_rows - 1)         # row below exists

    def conv3x3(a_f32, m_ref):
        # a_f32: (M, L) f32; m_ref: (3, L, N) bf16 band matrices.
        # Horizontal taps / SAME W-padding are baked into the band matrices;
        # vertical taps are row shifts + boundary masks.
        L = a_f32.shape[1]
        zrow = jnp.zeros((1, L), jnp.float32)
        up = jnp.where(not_top,
                       jnp.concatenate([zrow, a_f32[:-1]], axis=0), 0.0)
        dn = jnp.where(not_bot,
                       jnp.concatenate([a_f32[1:], zrow], axis=0), 0.0)
        acc = jnp.dot(up.astype(jnp.bfloat16), m_ref[0],
                      preferred_element_type=jnp.float32)
        acc = acc + jnp.dot(a_f32.astype(jnp.bfloat16), m_ref[1],
                            preferred_element_type=jnp.float32)
        acc = acc + jnp.dot(dn.astype(jnp.bfloat16), m_ref[2],
                            preferred_element_type=jnp.float32)
        return acc
    # TODO(synk): optionally fuse the 3 vertical taps into one K=3*L dot per
    # conv (lane-concat of the shifted operands) to save 2 MXU fill/drains.

    # ---- conv (3x3) + bias + PReLU : f32 epilogue ---------------------------
    y = conv3x3(x_f32, m1_ref) + b1_ref[...]
    y = jnp.where(y >= 0.0, y, y * a1_ref[...])

    # ---- conv1 (3x3) + bias -------------------------------------------------
    z = conv3x3(y, m2_ref) + b2_ref[...]

    # ---- Scale-weighted residual: s1*x + s2*z (scalars from SMEM) -----------
    o_ref[...] = s_ref[0] * x_f32 + s_ref[1] * z


# ---------------------------------------------------------------------------
# Weight preprocessing (runs ONCE, cached): expand an OIHW 3x3 conv weight
# into 3 block-banded matrices, one per vertical tap ki:
#   M[ki, w*Cin + ci, w'*Cout + co] = wt[co, ci, ki, w - w' + 1]
# (zero where the horizontal tap falls outside the kernel -> implicit W-pad).
# ---------------------------------------------------------------------------
def _band_matrices(wt, width):
    cout, cin, kh, kw = wt.shape
    k = jnp.transpose(wt, (2, 3, 1, 0))                  # (kh, kw, Cin, Cout)
    w_in = jnp.arange(width)[:, None]
    w_out = jnp.arange(width)[None, :]
    kj = w_in - w_out + (kw // 2)
    valid = (kj >= 0) & (kj < kw)
    kj_c = jnp.clip(kj, 0, kw - 1)
    mats = []
    for ki in range(kh):
        mk = k[ki][kj_c]                                 # (W, W, Cin, Cout)
        mk = jnp.where(valid[:, :, None, None], mk, 0.0)
        mk = jnp.transpose(mk, (0, 2, 1, 3)).reshape(width * cin, width * cout)
        mats.append(mk)
    return jnp.stack(mats, axis=0)                       # (3, W*Cin, W*Cout)


def prepare_params(params, width):
    """Build MXU-ready, grid-invariant operands once; reuse across calls."""
    g, cin = params["conv_w"].shape[0], params["conv_w"].shape[1]
    wc, wg = width * cin, width * g
    return {
        "m1": _band_matrices(params["conv_w"], width).astype(jnp.bfloat16),
        "m2": _band_matrices(params["conv1_w"], width).astype(jnp.bfloat16),
        "b1": jnp.tile(params["conv_b"].astype(jnp.float32), width).reshape(1, wg),
        "a1": jnp.tile(params["alpha"].astype(jnp.float32), width).reshape(1, wg),
        "b2": jnp.tile(params["conv1_b"].astype(jnp.float32), width).reshape(1, wc),
        "s": jnp.concatenate([params["s1"].reshape(1),
                              params["s2"].reshape(1)]).astype(jnp.float32),
    }


def _pick_block_b(batch, height, max_rows=256):
    """Largest divisor of `batch` whose stacked row count fits one MXU pass."""
    bt = 1
    for cand in range(1, batch + 1):
        if batch % cand == 0 and cand * height <= max_rows:
            bt = cand
    return bt


# ---------------------------------------------------------------------------
# one_conv forward (NCHW in / NCHW out, matching the PyTorch module)
# ---------------------------------------------------------------------------
def one_conv_forward(prepped, x, *, block_b=None):
    B, Cin, H, W = x.shape
    WC = W * Cin
    WG = prepped["m1"].shape[2]

    if block_b is None:
        block_b = _pick_block_b(B, H)
    assert B % block_b == 0
    M = block_b * H

    # channels-last; rows of all images stacked along the sublane axis
    xcl = jnp.transpose(x, (0, 2, 3, 1)).reshape(B * H, WC).astype(jnp.float32)

    kernel = functools.partial(_one_conv_kernel, img_rows=H)

    out2d = pl.pallas_call(
        kernel,
        out_shape=jax.ShapeDtypeStruct((B * H, WC), jnp.float32),
        grid_spec=pltpu.PrefetchScalarGridSpec(
            num_scalar_prefetch=1,
            grid=(B // block_b,),
            in_specs=[
                pl.BlockSpec((M, WC), lambda i, s_: (i, 0)),
                pl.BlockSpec((3, WC, WG), lambda i, s_: (0, 0, 0)),
                pl.BlockSpec((3, WG, WC), lambda i, s_: (0, 0, 0)),
                pl.BlockSpec((1, WG), lambda i, s_: (0, 0)),
                pl.BlockSpec((1, WG), lambda i, s_: (0, 0)),
                pl.BlockSpec((1, WC), lambda i, s_: (0, 0)),
            ],
            out_specs=pl.BlockSpec((M, WC), lambda i, s_: (i, 0)),
        ),
        compiler_params=pltpu.CompilerParams(
            dimension_semantics=("parallel",)),
    )(prepped["s"], xcl, prepped["m1"], prepped["m2"],
      prepped["b1"], prepped["a1"], prepped["b2"])

    return jnp.transpose(out2d.reshape(B, H, W, Cin), (0, 3, 1, 2))


# ---------------------------------------------------------------------------
# Pure-JAX f32 reference (semantics check)
# ---------------------------------------------------------------------------
def one_conv_ref(params, x):
    dn = ("NCHW", "OIHW", "NCHW")
    y = lax.conv_general_dilated(x, params["conv_w"], (1, 1), "SAME",
                                 dimension_numbers=dn,
                                 precision=lax.Precision.HIGHEST)
    y = y + params["conv_b"][None, :, None, None]
    y = jnp.where(y >= 0.0, y, y * params["alpha"][None, :, None, None])
    z = lax.conv_general_dilated(y, params["conv1_w"], (1, 1), "SAME",
                                 dimension_numbers=dn,
                                 precision=lax.Precision.HIGHEST)
    z = z + params["conv1_b"][None, :, None, None]
    return params["s1"][0] * x + params["s2"][0] * z


# ---------------------------------------------------------------------------
if __name__ == "__main__":
    # ESRT usage: inchannels = n_feats = 32, growth_rate = n_feats // 2 = 16.
    B, Cin, H, W = 2, 32, 16, 16
    G = Cin // 2

    key = jax.random.PRNGKey(0)
    k = jax.random.split(key, 5)
    params = {
        "conv_w": 0.02 * jax.random.normal(k[0], (G, Cin, 3, 3), jnp.float32),
        "conv_b": 0.02 * jax.random.normal(k[1], (G,), jnp.float32),
        "alpha": jnp.full((G,), 0.25, jnp.float32),        # nn.PReLU init
        "conv1_w": 0.02 * jax.random.normal(k[2], (Cin, G, 3, 3), jnp.float32),
        "conv1_b": 0.02 * jax.random.normal(k[3], (Cin,), jnp.float32),
        "s1": jnp.array([1.0], jnp.float32),               # Scale(1)
        "s2": jnp.array([1.0], jnp.float32),               # Scale(1)
    }
    x = jax.random.normal(k[4], (B, Cin, H, W), jnp.float32)

    # Band matrices / bias rows built once and cached as device arrays.
    prepped = prepare_params(params, W)

    fwd = jax.jit(one_conv_forward)
    out = jax.block_until_ready(fwd(prepped, x))
    assert out.shape == (B, Cin, H, W), out.shape
    assert bool(jnp.all(jnp.isfinite(out)))

    ref = jax.block_until_ready(one_conv_ref(params, x))
    err = float(jnp.max(jnp.abs(out - ref)))
    # bf16 MXU operands (x, y and both weight stacks) vs an f32 HIGHEST ref.
    assert err < 1e-2, f"max abs err {err}"

    print("KERNEL_OK")
</pallas_src>

<mosaic_0001>
module attributes {stable_mosaic.version = 11 : i64} {
  func.func @_one_conv_kernel(%arg0: i32, %arg1: memref<2xf32, #tpu.memory_space<smem>>, %arg2: memref<32x512xf32, #tpu.memory_space<vmem>>, %arg3: memref<3x512x256xbf16, #tpu.memory_space<vmem>>, %arg4: memref<3x256x512xbf16, #tpu.memory_space<vmem>>, %arg5: memref<1x256xf32, #tpu.memory_space<vmem>>, %arg6: memref<1x256xf32, #tpu.memory_space<vmem>>, %arg7: memref<1x512xf32, #tpu.memory_space<vmem>>, %arg8: memref<32x512xf32, #tpu.memory_space<vmem>>) attributes {dimension_semantics = [#tpu.dimension_semantics<parallel>], iteration_bounds = array<i64: 1>, scalar_prefetch = 1 : i64, scratch_operands = 0 : i64, tpu.core_type = #tpu.core_type<tc>, window_params = [{transform_indices = @transform_0, window_bounds = array<i64: 32, 512>}, {pipeline_mode = #tpu.pipeline_mode<synchronous>, transform_indices = @transform_1, window_bounds = array<i64: 3, 512, 256>}, {pipeline_mode = #tpu.pipeline_mode<synchronous>, transform_indices = @transform_2, window_bounds = array<i64: 3, 256, 512>}, {pipeline_mode = #tpu.pipeline_mode<synchronous>, transform_indices = @transform_3, window_bounds = array<i64: 1, 256>}, {pipeline_mode = #tpu.pipeline_mode<synchronous>, transform_indices = @transform_4, window_bounds = array<i64: 1, 256>}, {pipeline_mode = #tpu.pipeline_mode<synchronous>, transform_indices = @transform_5, window_bounds = array<i64: 1, 512>}, {transform_indices = @transform_6, window_bounds = array<i64: 32, 512>}]} {
    %c0 = arith.constant 0 : index
    %c0_0 = arith.constant 0 : index
    %0 = vector.load %arg2[%c0, %c0_0] : memref<32x512xf32, #tpu.memory_space<vmem>>, vector<32x512xf32>
    %1 = tpu.iota {dimensions = array<i32: 0>} : vector<32x1xi32>
    %c16_i32 = arith.constant 16 : i32
    %c0_i32 = arith.constant 0 : i32
    %2 = arith.cmpi eq, %c16_i32, %c0_i32 : i32
    %c1_i32 = arith.constant 1 : i32
    %3 = arith.select %2, %c1_i32, %c16_i32 : i32
    %4 = vector.broadcast %3 : i32 to vector<32x1xi32>
    %5 = arith.remsi %1, %4 : vector<32x1xi32>
    %c0_i32_1 = arith.constant 0 : i32
    %6 = vector.broadcast %c0_i32_1 : i32 to vector<32x1xi32>
    %7 = arith.cmpi ne, %5, %6 : vector<32x1xi32>
    %c0_i32_2 = arith.constant 0 : i32
    %8 = vector.broadcast %c0_i32_2 : i32 to vector<32x1xi32>
    %9 = arith.cmpi slt, %5, %8 : vector<32x1xi32>
    %c0_i32_3 = arith.constant 0 : i32
    %10 = arith.cmpi slt, %3, %c0_i32_3 : i32
    %11 = vector.broadcast %10 : i1 to vector<32x1xi1>
    %12 = vector.broadcast %11 : vector<32x1xi1> to vector<32x1xi1>
    %13 = arith.xori %9, %12 : vector<32x1xi1>
    %14 = arith.andi %13, %7 : vector<32x1xi1>
    %15 = vector.broadcast %3 : i32 to vector<32x1xi32>
    %16 = arith.addi %5, %15 : vector<32x1xi32>
    %17 = arith.select %14, %16, %5 : vector<32x1xi1>, vector<32x1xi32>
    %c0_i32_4 = arith.constant 0 : i32
    %18 = vector.broadcast %c0_i32_4 : i32 to vector<32x1xi32>
    %19 = arith.cmpi ne, %17, %18 : vector<32x1xi32>
    %c16_i32_5 = arith.constant 16 : i32
    %c0_i32_6 = arith.constant 0 : i32
    %20 = arith.cmpi eq, %c16_i32_5, %c0_i32_6 : i32
    %c1_i32_7 = arith.constant 1 : i32
    %21 = arith.select %20, %c1_i32_7, %c16_i32_5 : i32
    %22 = vector.broadcast %21 : i32 to vector<32x1xi32>
    %23 = arith.remsi %1, %22 : vector<32x1xi32>
    %c0_i32_8 = arith.constant 0 : i32
    %24 = vector.broadcast %c0_i32_8 : i32 to vector<32x1xi32>
    %25 = arith.cmpi ne, %23, %24 : vector<32x1xi32>
    %c0_i32_9 = arith.constant 0 : i32
    %26 = vector.broadcast %c0_i32_9 : i32 to vector<32x1xi32>
    %27 = arith.cmpi slt, %23, %26 : vector<32x1xi32>
    %c0_i32_10 = arith.constant 0 : i32
    %28 = arith.cmpi slt, %21, %c0_i32_10 : i32
    %29 = vector.broadcast %28 : i1 to vector<32x1xi1>
    %30 = vector.broadcast %29 : vector<32x1xi1> to vector<32x1xi1>
    %31 = arith.xori %27, %30 : vector<32x1xi1>
    %32 = arith.andi %31, %25 : vector<32x1xi1>
    %33 = vector.broadcast %21 : i32 to vector<32x1xi32>
    %34 = arith.addi %23, %33 : vector<32x1xi32>
    %35 = arith.select %32, %34, %23 : vector<32x1xi1>, vector<32x1xi32>
    %c15_i32 = arith.constant 15 : i32
    %36 = vector.broadcast %c15_i32 : i32 to vector<32x1xi32>
    %37 = arith.cmpi ne, %35, %36 : vector<32x1xi32>
    %cst = arith.constant 0.000000e+00 : f32
    %38 = vector.broadcast %cst : f32 to vector<1x512xf32>
    %39 = vector.extract_strided_slice %0 {offsets = [0, 0], sizes = [31, 512], strides = [1, 1]} : vector<32x512xf32> to vector<31x512xf32>
    %40 = tpu.concatenate %38, %39 in 0 : vector<1x512xf32>, vector<31x512xf32> -> vector<32x512xf32>
    %cst_11 = arith.constant 0.000000e+00 : f32
    %41 = vector.shape_cast %19 : vector<32x1xi1> to vector<32x1xi1>
    %42 = vector.broadcast %41 : vector<32x1xi1> to vector<32x512xi1>
    %43 = vector.broadcast %cst_11 : f32 to vector<32x512xf32>
    %44 = arith.select %42, %40, %43 : vector<32x512xi1>, vector<32x512xf32>
    %45 = vector.extract_strided_slice %0 {offsets = [1, 0], sizes = [31, 512], strides = [1, 1]} : vector<32x512xf32> to vector<31x512xf32>
    %46 = tpu.concatenate %45, %38 in 0 : vector<31x512xf32>, vector<1x512xf32> -> vector<32x512xf32>
    %cst_12 = arith.constant 0.000000e+00 : f32
    %47 = vector.shape_cast %37 : vector<32x1xi1> to vector<32x1xi1>
    %48 = vector.broadcast %47 : vector<32x1xi1> to vector<32x512xi1>
    %49 = vector.broadcast %cst_12 : f32 to vector<32x512xf32>
    %50 = arith.select %48, %46, %49 : vector<32x512xi1>, vector<32x512xf32>
    %51 = arith.truncf %44 : vector<32x512xf32> to vector<32x512xbf16>
    %c0_13 = arith.constant 0 : index
    %c0_14 = arith.constant 0 : index
    %c0_15 = arith.constant 0 : index
    %52 = vector.load %arg3[%c0_13, %c0_14, %c0_15] : memref<3x512x256xbf16, #tpu.memory_space<vmem>>, vector<1x512x256xbf16>
    %53 = vector.shape_cast %52 : vector<1x512x256xbf16> to vector<512x256xbf16>
    %cst_16 = arith.constant dense<0.000000e+00> : vector<32x256xf32>
    %54 = tpu.matmul %51, %53, %cst_16 {dimension_numbers = #tpu.dot_dimension_numbers<[1], [0], [0], [1], [0, 0, 1, 1], [], []>} : vector<32x512xbf16>, vector<512x256xbf16>, vector<32x256xf32> -> vector<32x256xf32>
    %55 = arith.truncf %0 : vector<32x512xf32> to vector<32x512xbf16>
    %c1 = arith.constant 1 : index
    %c0_17 = arith.constant 0 : index
    %c0_18 = arith.constant 0 : index
    %56 = vector.load %arg3[%c1, %c0_17, %c0_18] : memref<3x512x256xbf16, #tpu.memory_space<vmem>>, vector<1x512x256xbf16>
    %57 = vector.shape_cast %56 : vector<1x512x256xbf16> to vector<512x256xbf16>
    %cst_19 = arith.constant dense<0.000000e+00> : vector<32x256xf32>
    %58 = tpu.matmul %55, %57, %cst_19 {dimension_numbers = #tpu.dot_dimension_numbers<[1], [0], [0], [1], [0, 0, 1, 1], [], []>} : vector<32x512xbf16>, vector<512x256xbf16>, vector<32x256xf32> -> vector<32x256xf32>
    %59 = arith.addf %54, %58 : vector<32x256xf32>
    %60 = arith.truncf %50 : vector<32x512xf32> to vector<32x512xbf16>
    %c2 = arith.constant 2 : index
    %c0_20 = arith.constant 0 : index
    %c0_21 = arith.constant 0 : index
    %61 = vector.load %arg3[%c2, %c0_20, %c0_21] : memref<3x512x256xbf16, #tpu.memory_space<vmem>>, vector<1x512x256xbf16>
    %62 = vector.shape_cast %61 : vector<1x512x256xbf16> to vector<512x256xbf16>
    %cst_22 = arith.constant dense<0.000000e+00> : vector<32x256xf32>
    %63 = tpu.matmul %60, %62, %cst_22 {dimension_numbers = #tpu.dot_dimension_numbers<[1], [0], [0], [1], [0, 0, 1, 1], [], []>} : vector<32x512xbf16>, vector<512x256xbf16>, vector<32x256xf32> -> vector<32x256xf32>
    %64 = arith.addf %59, %63 : vector<32x256xf32>
    %c0_23 = arith.constant 0 : index
    %c0_24 = arith.constant 0 : index
    %65 = vector.load %arg5[%c0_23, %c0_24] : memref<1x256xf32, #tpu.memory_space<vmem>>, vector<1x256xf32>
    %66 = vector.broadcast %65 : vector<1x256xf32> to vector<32x256xf32>
    %67 = arith.addf %64, %66 : vector<32x256xf32>
    %cst_25 = arith.constant 0.000000e+00 : f32
    %68 = vector.broadcast %cst_25 : f32 to vector<32x256xf32>
    %69 = arith.cmpf oge, %67, %68 : vector<32x256xf32>
    %c0_26 = arith.constant 0 : index
    %c0_27 = arith.constant 0 : index
    %70 = vector.load %arg6[%c0_26, %c0_27] : memref<1x256xf32, #tpu.memory_space<vmem>>, vector<1x256xf32>
    %71 = vector.broadcast %70 : vector<1x256xf32> to vector<32x256xf32>
    %72 = arith.mulf %67, %71 : vector<32x256xf32>
    %73 = arith.select %69, %67, %72 : vector<32x256xi1>, vector<32x256xf32>
    %cst_28 = arith.constant 0.000000e+00 : f32
    %74 = vector.broadcast %cst_28 : f32 to vector<1x256xf32>
    %75 = vector.extract_strided_slice %73 {offsets = [0, 0], sizes = [31, 256], strides = [1, 1]} : vector<32x256xf32> to vector<31x256xf32>
    %76 = tpu.concatenate %74, %75 in 0 : vector<1x256xf32>, vector<31x256xf32> -> vector<32x256xf32>
    %cst_29 = arith.constant 0.000000e+00 : f32
    %77 = vector.shape_cast %19 : vector<32x1xi1> to vector<32x1xi1>
    %78 = vector.broadcast %77 : vector<32x1xi1> to vector<32x256xi1>
    %79 = vector.broadcast %cst_29 : f32 to vector<32x256xf32>
    %80 = arith.select %78, %76, %79 : vector<32x256xi1>, vector<32x256xf32>
    %81 = vector.extract_strided_slice %73 {offsets = [1, 0], sizes = [31, 256], strides = [1, 1]} : vector<32x256xf32> to vector<31x256xf32>
    %82 = tpu.concatenate %81, %74 in 0 : vector<31x256xf32>, vector<1x256xf32> -> vector<32x256xf32>
    %cst_30 = arith.constant 0.000000e+00 : f32
    %83 = vector.shape_cast %37 : vector<32x1xi1> to vector<32x1xi1>
    %84 = vector.broadcast %83 : vector<32x1xi1> to vector<32x256xi1>
    %85 = vector.broadcast %cst_30 : f32 to vector<32x256xf32>
    %86 = arith.select %84, %82, %85 : vector<32x256xi1>, vector<32x256xf32>
    %87 = arith.truncf %80 : vector<32x256xf32> to vector<32x256xbf16>
    %c0_31 = arith.constant 0 : index
    %c0_32 = arith.constant 0 : index
    %c0_33 = arith.constant 0 : index
    %88 = vector.load %arg4[%c0_31, %c0_32, %c0_33] : memref<3x256x512xbf16, #tpu.memory_space<vmem>>, vector<1x256x512xbf16>
    %89 = vector.shape_cast %88 : vector<1x256x512xbf16> to vector<256x512xbf16>
    %cst_34 = arith.constant dense<0.000000e+00> : vector<32x512xf32>
    %90 = tpu.matmul %87, %89, %cst_34 {dimension_numbers = #tpu.dot_dimension_numbers<[1], [0], [0], [1], [0, 0, 1, 1], [], []>} : vector<32x256xbf16>, vector<256x512xbf16>, vector<32x512xf32> -> vector<32x512xf32>
    %91 = arith.truncf %73 : vector<32x256xf32> to vector<32x256xbf16>
    %c1_35 = arith.constant 1 : index
    %c0_36 = arith.constant 0 : index
    %c0_37 = arith.constant 0 : index
    %92 = vector.load %arg4[%c1_35, %c0_36, %c0_37] : memref<3x256x512xbf16, #tpu.memory_space<vmem>>, vector<1x256x512xbf16>
    %93 = vector.shape_cast %92 : vector<1x256x512xbf16> to vector<256x512xbf16>
    %cst_38 = arith.constant dense<0.000000e+00> : vector<32x512xf32>
    %94 = tpu.matmul %91, %93, %cst_38 {dimension_numbers = #tpu.dot_dimension_numbers<[1], [0], [0], [1], [0, 0, 1, 1], [], []>} : vector<32x256xbf16>, vector<256x512xbf16>, vector<32x512xf32> -> vector<32x512xf32>
    %95 = arith.addf %90, %94 : vector<32x512xf32>
    %96 = arith.truncf %86 : vector<32x256xf32> to vector<32x256xbf16>
    %c2_39 = arith.constant 2 : index
    %c0_40 = arith.constant 0 : index
    %c0_41 = arith.constant 0 : index
    %97 = vector.load %arg4[%c2_39, %c0_40, %c0_41] : memref<3x256x512xbf16, #tpu.memory_space<vmem>>, vector<1x256x512xbf16>
    %98 = vector.shape_cast %97 : vector<1x256x512xbf16> to vector<256x512xbf16>
    %cst_42 = arith.constant dense<0.000000e+00> : vector<32x512xf32>
    %99 = tpu.matmul %96, %98, %cst_42 {dimension_numbers = #tpu.dot_dimension_numbers<[1], [0], [0], [1], [0, 0, 1, 1], [], []>} : vector<32x256xbf16>, vector<256x512xbf16>, vector<32x512xf32> -> vector<32x512xf32>
    %100 = arith.addf %95, %99 : vector<32x512xf32>
    %c0_43 = arith.constant 0 : index
    %c0_44 = arith.constant 0 : index
    %101 = vector.load %arg7[%c0_43, %c0_44] : memref<1x512xf32, #tpu.memory_space<vmem>>, vector<1x512xf32>
    %102 = vector.broadcast %101 : vector<1x512xf32> to vector<32x512xf32>
    %103 = arith.addf %100, %102 : vector<32x512xf32>
    %c0_45 = arith.constant 0 : index
    %104 = memref.load %arg1[%c0_45] : memref<2xf32, #tpu.memory_space<smem>>
    %105 = vector.broadcast %104 : f32 to vector<32x512xf32>
    %106 = arith.mulf %105, %0 : vector<32x512xf32>
    %c1_46 = arith.constant 1 : index
    %107 = memref.load %arg1[%c1_46] : memref<2xf32, #tpu.memory_space<smem>>
    %108 = vector.broadcast %107 : f32 to vector<32x512xf32>
    %109 = arith.mulf %108, %103 : vector<32x512xf32>
    %110 = arith.addf %106, %109 : vector<32x512xf32>
    %c0_47 = arith.constant 0 : index
    %c0_48 = arith.constant 0 : index
    %111 = vector.load %arg8[%c0_47, %c0_48] : memref<32x512xf32, #tpu.memory_space<vmem>>, vector<32x512xf32>
    tpu.vector_store %arg8[%c0_47, %c0_48], %110 {strides = array<i32>} : memref<32x512xf32, #tpu.memory_space<vmem>>, vector<32x512xf32>,
    return
  }
  func.func @transform_0(%arg0: i32, %arg1: memref<2xf32, #tpu.memory_space<smem>>) -> (i32, i32) {
    %c0_i32 = arith.constant 0 : i32
    %c0_i32_0 = arith.constant 0 : i32
    return %arg0, %c0_i32 : i32, i32
  }
  func.func @transform_1(%arg0: i32, %arg1: memref<2xf32, #tpu.memory_space<smem>>) -> (i32, i32, i32) {
    %c0_i32 = arith.constant 0 : i32
    %c0_i32_0 = arith.constant 0 : i32
    %c0_i32_1 = arith.constant 0 : i32
    %c0_i32_2 = arith.constant 0 : i32
    return %c0_i32, %c0_i32_0, %c0_i32_1 : i32, i32, i32
  }
  func.func @transform_2(%arg0: i32, %arg1: memref<2xf32, #tpu.memory_space<smem>>) -> (i32, i32, i32) {
    %c0_i32 = arith.constant 0 : i32
    %c0_i32_0 = arith.constant 0 : i32
    %c0_i32_1 = arith.constant 0 : i32
    %c0_i32_2 = arith.constant 0 : i32
    return %c0_i32, %c0_i32_0, %c0_i32_1 : i32, i32, i32
  }
  func.func @transform_3(%arg0: i32, %arg1: memref<2xf32, #tpu.memory_space<smem>>) -> (i32, i32) {
    %c0_i32 = arith.constant 0 : i32
    %c0_i32_0 = arith.constant 0 : i32
    %c0_i32_1 = arith.constant 0 : i32
    return %c0_i32, %c0_i32_0 : i32, i32
  }
  func.func @transform_4(%arg0: i32, %arg1: memref<2xf32, #tpu.memory_space<smem>>) -> (i32, i32) {
    %c0_i32 = arith.constant 0 : i32
    %c0_i32_0 = arith.constant 0 : i32
    %c0_i32_1 = arith.constant 0 : i32
    return %c0_i32, %c0_i32_0 : i32, i32
  }
  func.func @transform_5(%arg0: i32, %arg1: memref<2xf32, #tpu.memory_space<smem>>) -> (i32, i32) {
    %c0_i32 = arith.constant 0 : i32
    %c0_i32_0 = arith.constant 0 : i32
    %c0_i32_1 = arith.constant 0 : i32
    return %c0_i32, %c0_i32_0 : i32, i32
  }
  func.func @transform_6(%arg0: i32, %arg1: memref<2xf32, #tpu.memory_space<smem>>) -> (i32, i32) {
    %c0_i32 = arith.constant 0 : i32
    %c0_i32_0 = arith.constant 0 : i32
    return %arg0, %c0_i32 : i32, i32
  }
}

</mosaic_0001>

<llo_original>
// kernel: one_conv_forward.1
$region0: #{one_conv_forward.1}
  #allocation0 [shape = 'u32[]', space=smem, size = 0x4, offset = 0x4, fixed_abs, tag = 'smem constant byte address 0x4 - core index']
  #allocation1 [shape = 'u32[144,128]{1,0:T(1,128)}', space=vmem, size = 0x12000, scoped, tag = 'internal scratch']
  #allocation2 [shape = 's32[1]{0}', space=sflag, size = 0x4, scoped, tag = 'scoped memory for one_conv_forward.1']
  #allocation3 [shape = 'u8[512]{0}', space=smem, size = 0x200, scoped, tag = 'prefetched SMEM operand 0']
  %s0 = inlined_call_operand.vmem [shape: f32[2], index: 0, kind: input, shape index: {}]
  %s1 = inlined_call_operand.vmem [shape: f32[32,512], index: 1, kind: input, shape index: {}]
  %s2 = inlined_call_operand.hbm [shape: bf16[3,512,256], index: 2, kind: input, shape index: {}]
  %s3 = inlined_call_operand.hbm [shape: bf16[3,256,512], index: 3, kind: input, shape index: {}]
  %s4 = inlined_call_operand.vmem [shape: f32[1,256], index: 4, kind: input, shape index: {}]
  %s5 = inlined_call_operand.vmem [shape: f32[1,256], index: 5, kind: input, shape index: {}]
  %s6 = inlined_call_operand.vmem [shape: f32[1,512], index: 6, kind: input, shape index: {}]
  %s7 = inlined_call_operand.vmem [shape: f32[32,512], index: 7, kind: output, shape index: {}]
  %s8 = sld [smem:[#allocation0]]
  $region42: #{one_conv_forward.1} parent=0
    _
  %s10 = ssub.s32 1, %s8
  %s11 = scalar_select 0, %s10, %s8
  %s12 = sshll.u32 %s0, 4
  %s13 = int_to_ptr.vmem [resolvable:$true] %s12
  %15 = dma.vmem_to_smem %s13, 16, [#allocation3], [#allocation2]
  %16 = dma.done [#allocation2], 16
  %17 = sfence
  $region1: #{one_conv_forward.1} parent=0
    #allocation4 [shape = 'u8[786432]{0}', space=vmem, size = 0xc0000, scoped, tag = 'input window, operand 2, single buffered']
    #allocation5 [shape = 's32[1]{0}', space=sflag, size = 0x4, scoped, tag = 'scoped memory for one_conv_forward.1']
    #allocation6 [shape = 'u8[786432]{0}', space=vmem, size = 0xc0000, scoped, tag = 'input window, operand 3, single buffered']
    #allocation7 [shape = 's32[1]{0}', space=sflag, size = 0x4, scoped, tag = 'scoped memory for one_conv_forward.1']
    %18 = vsyncpa [#allocation5], 0
    %19 = vsyncpa [#allocation7], 0
    // Predicated region
    $region2: #{one_conv_forward.1} parent=1 // pred_check
      _
    $region3: #{one_conv_forward.1} parent=1 // pred_check_branch
      %21 = sbr.rel (0) target = $region5
    $region4: #{one_conv_forward.1} parent=1 // pred_region
      _
    $region5: #{one_conv_forward.1} parent=1 // pred_fallthru
      _
    // Predicated region
    $region6: #{one_conv_forward.1} parent=1 // pred_check
      _
    $region7: #{one_conv_forward.1} parent=1 // pred_check_branch
      %23 = sbr.rel (0) target = $region9
    $region8: #{one_conv_forward.1} parent=1 // pred_region
      %s25 = ssub.s32 24576, 24576
      %26 = vsyncadd [#allocation5], %s25
      %s27 = sshll.u32 [#allocation4], 4
      %s28 = int_to_ptr.vmem [resolvable:$true] %s27
      %33 = dma.hbm_to_vmem [thread:$0]  %s2, 24576, %s28, [#allocation5], 128, 128, 8
    $region9: #{one_conv_forward.1} parent=1 // pred_fallthru
      _
    // Predicated region
    $region10: #{one_conv_forward.1} parent=1 // pred_check
      _
    $region11: #{one_conv_forward.1} parent=1 // pred_check_branch
      %35 = sbr.rel (0) target = $region13
    $region12: #{one_conv_forward.1} parent=1 // pred_region
      %s37 = ssub.s32 24576, 24576
      %38 = vsyncadd [#allocation7], %s37
      %s39 = sshll.u32 [#allocation6], 4
      %s40 = int_to_ptr.vmem [resolvable:$true] %s39
      %45 = dma.hbm_to_vmem [thread:$0]  %s3, 24576, %s40, [#allocation7], 256, 256, 16
    $region13: #{one_conv_forward.1} parent=1 // pred_fallthru
      _
    // Predicated region
    $region14: #{one_conv_forward.1} parent=1 // pred_check
      _
    $region15: #{one_conv_forward.1} parent=1 // pred_check_branch
      %47 = sbr.rel (0) target = $region17
    $region16: #{one_conv_forward.1} parent=1 // pred_region
      _
    $region17: #{one_conv_forward.1} parent=1 // pred_fallthru
      _
    // Predicated region
    $region18: #{one_conv_forward.1} parent=1 // pred_check
      _
    $region19: #{one_conv_forward.1} parent=1 // pred_check_branch
      %49 = sbr.rel (0) target = $region21
    $region20: #{one_conv_forward.1} parent=1 // pred_region
      _
    $region21: #{one_conv_forward.1} parent=1 // pred_fallthru
      _
    // Predicated region
    $region22: #{one_conv_forward.1} parent=1 // pred_check
      _
    $region23: #{one_conv_forward.1} parent=1 // pred_check_branch
      %51 = sbr.rel (0) target = $region25
    $region24: #{one_conv_forward.1} parent=1 // pred_region
      _
    $region25: #{one_conv_forward.1} parent=1 // pred_fallthru
      _
    // Predicated region
    $region26: #{one_conv_forward.1} parent=1 // pred_check
      _
    $region27: #{one_conv_forward.1} parent=1 // pred_check_branch
      %53 = sbr.rel (0) target = $region29
    $region28: #{one_conv_forward.1} parent=1 // pred_region
      %54 = dma.done [#allocation5], 24576
    $region29: #{one_conv_forward.1} parent=1 // pred_fallthru
      _
    // Predicated region
    $region30: #{one_conv_forward.1} parent=1 // pred_check
      _
    $region31: #{one_conv_forward.1} parent=1 // pred_check_branch
      %56 = sbr.rel (0) target = $region33
    $region32: #{one_conv_forward.1} parent=1 // pred_region
      %57 = dma.done [#allocation7], 24576
    $region33: #{one_conv_forward.1} parent=1 // pred_fallthru
      _
    %v58 = vld [vmem:[%s1] sm:$0xff]
    %v59 = vld [vmem:[%s1 + $0x8] sm:$0xff]
    %v60 = vld [vmem:[%s1 + $0x10] sm:$0xff]
    %v61 = vld [vmem:[%s1 + $0x18] sm:$0xff]
    %v62 = vld [vmem:[%s1 + $0x20] sm:$0xff]
    %v63 = vld [vmem:[%s1 + $0x28] sm:$0xff]
    %v64 = vld [vmem:[%s1 + $0x30] sm:$0xff]
    %v65 = vld [vmem:[%s1 + $0x38] sm:$0xff]
    %v66 = vld [vmem:[%s1 + $0x40] sm:$0xff]
    %v67 = vld [vmem:[%s1 + $0x48] sm:$0xff]
    %v68 = vld [vmem:[%s1 + $0x50] sm:$0xff]
    %v69 = vld [vmem:[%s1 + $0x58] sm:$0xff]
    %v70 = vld [vmem:[%s1 + $0x60] sm:$0xff]
    %v71 = vld [vmem:[%s1 + $0x68] sm:$0xff]
    %v72 = vld [vmem:[%s1 + $0x70] sm:$0xff]
    %v73 = vld [vmem:[%s1 + $0x78] sm:$0xff]
    %v74 = vlaneseq
    %v75 = vshrl.u32 %v74, 7
    %v76 = vadd.s32 %v75, 8
    %v77 = vadd.s32 %v75, 16
    %v78 = vadd.s32 %v75, 24
    %vm79 = vcmp.lt.s32.totalorder %v75, 0
    %v80 = vsub.s32 0, %v75
    %v81 = vsel %vm79, %v80, %v75
    %v82 = vshrl.u32 %v81, 4
    %v83 = vand.u32 %v81, 15
    %v84 = vsub.s32 0, %v83
    %v85 = vsel %vm79, %v84, %v83
    %vm86 = vcmp.lt.s32.totalorder %v76, 0
    %v87 = vsub.s32 0, %v76
    %v88 = vsel %vm86, %v87, %v76
    %v89 = vshrl.u32 %v88, 4
    %v90 = vand.u32 %v88, 15
    %v91 = vsub.s32 0, %v90
    %v92 = vsel %vm86, %v91, %v90
    %vm93 = vcmp.lt.s32.totalorder %v77, 0
    %v94 = vsub.s32 0, %v77
    %v95 = vsel %vm93, %v94, %v77
    %v96 = vshrl.u32 %v95, 4
    %v97 = vand.u32 %v95, 15
    %v98 = vsub.s32 0, %v97
    %v99 = vsel %vm93, %v98, %v97
    %vm100 = vcmp.lt.s32.totalorder %v78, 0
    %v101 = vsub.s32 0, %v78
    %v102 = vsel %vm100, %v101, %v78
    %v103 = vshrl.u32 %v102, 4
    %v104 = vand.u32 %v102, 15
    %v105 = vsub.s32 0, %v104
    %v106 = vsel %vm100, %v105, %v104
    %vm107 = vcmp.ne.s32.totalorder %v85, 0
    %vm108 = vcmp.ne.s32.totalorder %v92, 0
    %vm109 = vcmp.ne.s32.totalorder %v99, 0
    %vm110 = vcmp.ne.s32.totalorder %v106, 0
    %vm111 = vcmp.lt.s32.totalorder %v85, 0
    %vm112 = vcmp.lt.s32.totalorder %v92, 0
    %vm113 = vcmp.lt.s32.totalorder %v99, 0
    %vm114 = vcmp.lt.s32.totalorder %v106, 0
    %vm115 = vmand %vm111, %vm107
    %vm116 = vmand %vm112, %vm108
    %vm117 = vmand %vm113, %vm109
    %vm118 = vmand %vm114, %vm110
    %v119 = vadd.s32 %v85, 16
    %v120 = vadd.s32 %v92, 16
    %v121 = vadd.s32 %v99, 16
    %v122 = vadd.s32 %v106, 16
    %v123 = vsel %vm115, %v119, %v85
    %v124 = vsel %vm116, %v120, %v92
    %v125 = vsel %vm117, %v121, %v99
    %v126 = vsel %vm118, %v122, %v106
    %vm127 = vcmp.ne.s32.totalorder %v123, 0
    %vm128 = vcmp.ne.s32.totalorder %v124, 0
    %vm129 = vcmp.ne.s32.totalorder %v125, 0
    %vm130 = vcmp.ne.s32.totalorder %v126, 0
    %vm131 = vcmp.ne.s32.totalorder %v123, 15
    %vm132 = vcmp.ne.s32.totalorder %v124, 15
    %vm133 = vcmp.ne.s32.totalorder %v125, 15
    %vm134 = vcmp.ne.s32.totalorder %v126, 15
    %vm151 = vcmask 1040384
    %v152 = vrot.slane %v58, 7
    %v153 = vrot.slane %v59, 7
    %v154 = vrot.slane %v60, 7
    %v155 = vrot.slane %v61, 7
    %v156 = vrot.slane %v62, 7
    %v157 = vsel %vm151, %v152, %v156
    %v158 = vrot.slane %v63, 7
    %v159 = vsel %vm151, %v153, %v158
    %v160 = vrot.slane %v64, 7
    %v161 = vsel %vm151, %v154, %v160
    %v162 = vrot.slane %v65, 7
    %v163 = vsel %vm151, %v155, %v162
    %v164 = vrot.slane %v66, 7
    %v165 = vsel %vm151, %v156, %v164
    %v166 = vrot.slane %v67, 7
    %v167 = vsel %vm151, %v158, %v166
    %v168 = vrot.slane %v68, 7
    %v169 = vsel %vm151, %v160, %v168
    %v170 = vrot.slane %v69, 7
    %v171 = vsel %vm151, %v162, %v170
    %v172 = vrot.slane %v70, 7
    %v173 = vsel %vm151, %v164, %v172
    %v174 = vrot.slane %v71, 7
    %v175 = vsel %vm151, %v166, %v174
    %v176 = vrot.slane %v72, 7
    %v177 = vsel %vm151, %v168, %v176
    %v178 = vrot.slane %v73, 7
    %v179 = vsel %vm151, %v170, %v178
    %v196 = vsel %vm151, 0.0, %v152
    %v197 = vsel %vm151, 0.0, %v153
    %v198 = vsel %vm151, 0.0, %v154
    %v199 = vsel %vm151, 0.0, %v155
    %v200 = vsel %vm127, 1, 0
    %v201 = vsel %vm128, 1, 0
    %v202 = vsel %vm129, 1, 0
    %v203 = vsel %vm130, 1, 0
    %vm204 = vcmp.eq.s32.totalorder %v200, 1
    %vm205 = vcmp.eq.s32.totalorder %v201, 1
    %vm206 = vcmp.eq.s32.totalorder %v202, 1
    %vm207 = vcmp.eq.s32.totalorder %v203, 1
    %v208 = vsel %vm204, %v196, 0.0
    %v209 = vsel %vm204, %v197, 0.0
    %v210 = vsel %vm204, %v198, 0.0
    %v211 = vsel %vm204, %v199, 0.0
    %v212 = vsel %vm205, %v157, 0.0
    %v213 = vsel %vm205, %v159, 0.0
    %v214 = vsel %vm205, %v161, 0.0
    %v215 = vsel %vm205, %v163, 0.0
    %v216 = vsel %vm206, %v165, 0.0
    %v217 = vsel %vm206, %v167, 0.0
    %v218 = vsel %vm206, %v169, 0.0
    %v219 = vsel %vm206, %v171, 0.0
    %v220 = vsel %vm207, %v173, 0.0
    %v221 = vsel %vm207, %v175, 0.0
    %v222 = vsel %vm207, %v177, 0.0
    %v223 = vsel %vm207, %v179, 0.0
    %vm224 = vcmask 1046528
    %v225 = vrot.slane %v58, 1
    %v226 = vrot.slane %v62, 1
    %v227 = vsel %vm224, %v225, %v226
    %v228 = vrot.slane %v59, 1
    %v229 = vrot.slane %v63, 1
    %v230 = vsel %vm224, %v228, %v229
    %v231 = vrot.slane %v60, 1
    %v232 = vrot.slane %v64, 1
    %v233 = vsel %vm224, %v231, %v232
    %v234 = vrot.slane %v61, 1
    %v235 = vrot.slane %v65, 1
    %v236 = vsel %vm224, %v234, %v235
    %v237 = vrot.slane %v66, 1
    %v238 = vsel %vm224, %v226, %v237
    %v239 = vrot.slane %v67, 1
    %v240 = vsel %vm224, %v229, %v239
    %v241 = vrot.slane %v68, 1
    %v242 = vsel %vm224, %v232, %v241
    %v243 = vrot.slane %v69, 1
    %v244 = vsel %vm224, %v235, %v243
    %v245 = vrot.slane %v70, 1
    %v246 = vsel %vm224, %v237, %v245
    %v247 = vrot.slane %v71, 1
    %v248 = vsel %vm224, %v239, %v247
    %v249 = vrot.slane %v72, 1
    %v250 = vsel %vm224, %v241, %v249
    %v251 = vrot.slane %v73, 1
    %v252 = vsel %vm224, %v243, %v251
    %v269 = vsel %vm224, %v245, 0.0
    %v270 = vsel %vm224, %v247, 0.0
    %v271 = vsel %vm224, %v249, 0.0
    %v272 = vsel %vm224, %v251, 0.0
    %v273 = vsel %vm131, 1, 0
    %v274 = vsel %vm132, 1, 0
    %v275 = vsel %vm133, 1, 0
    %v276 = vsel %vm134, 1, 0
    %vm277 = vcmp.eq.s32.totalorder %v273, 1
    %vm278 = vcmp.eq.s32.totalorder %v274, 1
    %vm279 = vcmp.eq.s32.totalorder %v275, 1
    %vm280 = vcmp.eq.s32.totalorder %v276, 1
    %v281 = vsel %vm277, %v227, 0.0
    %v282 = vsel %vm277, %v230, 0.0
    %v283 = vsel %vm277, %v233, 0.0
    %v284 = vsel %vm277, %v236, 0.0
    %v285 = vsel %vm278, %v238, 0.0
    %v286 = vsel %vm278, %v240, 0.0
    %v287 = vsel %vm278, %v242, 0.0
    %v288 = vsel %vm278, %v244, 0.0
    %v289 = vsel %vm279, %v246, 0.0
    %v290 = vsel %vm279, %v248, 0.0
    %v291 = vsel %vm279, %v250, 0.0
    %v292 = vsel %vm279, %v252, 0.0
    %v293 = vsel %vm280, %v269, 0.0
    %v294 = vsel %vm280, %v270, 0.0
    %v295 = vsel %vm280, %v271, 0.0
    %v296 = vsel %vm280, %v272, 0.0
    %v297 = vpack.c.bf16 %v212, %v208
    %v298 = vpack.c.bf16 %v213, %v209
    %v299 = vpack.c.bf16 %v214, %v210
    %v300 = vpack.c.bf16 %v215, %v211
    %v301 = vpack.c.bf16 %v220, %v216
    %v302 = vpack.c.bf16 %v221, %v217
    %v303 = vpack.c.bf16 %v222, %v218
    %v304 = vpack.c.bf16 %v223, %v219
    %v305 = vld [vmem:[#allocation4] sm:$0xff]
    %v306 = vld [vmem:[#allocation4 + $0x8] sm:$0xff]
    %v307 = vld [vmem:[#allocation4 + $0x10] sm:$0xff]
    %v308 = vld [vmem:[#allocation4 + $0x18] sm:$0xff]
    %v309 = vld [vmem:[#allocation4 + $0x20] sm:$0xff]
    %v310 = vld [vmem:[#allocation4 + $0x28] sm:$0xff]
    %v311 = vld [vmem:[#allocation4 + $0x30] sm:$0xff]
    %v312 = vld [vmem:[#allocation4 + $0x38] sm:$0xff]
    %v313 = vld [vmem:[#allocation4 + $0x40] sm:$0xff]
    %v314 = vld [vmem:[#allocation4 + $0x48] sm:$0xff]
    %v315 = vld [vmem:[#allocation4 + $0x50] sm:$0xff]
    %v316 = vld [vmem:[#allocation4 + $0x58] sm:$0xff]
    %v317 = vld [vmem:[#allocation4 + $0x60] sm:$0xff]
    %v318 = vld [vmem:[#allocation4 + $0x68] sm:$0xff]
    %v319 = vld [vmem:[#allocation4 + $0x70] sm:$0xff]
    %v320 = vld [vmem:[#allocation4 + $0x78] sm:$0xff]
    %v321 = vld [vmem:[#allocation4 + $0x80] sm:$0xff]
    %v322 = vld [vmem:[#allocation4 + $0x88] sm:$0xff]
    %v323 = vld [vmem:[#allocation4 + $0x90] sm:$0xff]
    %v324 = vld [vmem:[#allocation4 + $0x98] sm:$0xff]
    %v325 = vld [vmem:[#allocation4 + $0xa0] sm:$0xff]
    %v326 = vld [vmem:[#allocation4 + $0xa8] sm:$0xff]
    %v327 = vld [vmem:[#allocation4 + $0xb0] sm:$0xff]
    %v328 = vld [vmem:[#allocation4 + $0xb8] sm:$0xff]
    %v329 = vld [vmem:[#allocation4 + $0xc0] sm:$0xff]
    %v330 = vld [vmem:[#allocation4 + $0xc8] sm:$0xff]
    %v331 = vld [vmem:[#allocation4 + $0xd0] sm:$0xff]
    %v332 = vld [vmem:[#allocation4 + $0xd8] sm:$0xff]
    %v333 = vld [vmem:[#allocation4 + $0xe0] sm:$0xff]
    %v334 = vld [vmem:[#allocation4 + $0xe8] sm:$0xff]
    %v335 = vld [vmem:[#allocation4 + $0xf0] sm:$0xff]
    %v336 = vld [vmem:[#allocation4 + $0xf8] sm:$0xff]
    %v337 = vld [vmem:[#allocation4 + $0x100] sm:$0xff]
    %v338 = vld [vmem:[#allocation4 + $0x108] sm:$0xff]
    %v339 = vld [vmem:[#allocation4 + $0x110] sm:$0xff]
    %v340 = vld [vmem:[#allocation4 + $0x118] sm:$0xff]
    %v341 = vld [vmem:[#allocation4 + $0x120] sm:$0xff]
    %v342 = vld [vmem:[#allocation4 + $0x128] sm:$0xff]
    %v343 = vld [vmem:[#allocation4 + $0x130] sm:$0xff]
    %v344 = vld [vmem:[#allocation4 + $0x138] sm:$0xff]
    %v345 = vld [vmem:[#allocation4 + $0x140] sm:$0xff]
    %v346 = vld [vmem:[#allocation4 + $0x148] sm:$0xff]
    %v347 = vld [vmem:[#allocation4 + $0x150] sm:$0xff]
    %v348 = vld [vmem:[#allocation4 + $0x158] sm:$0xff]
    %v349 = vld [vmem:[#allocation4 + $0x160] sm:$0xff]
    %v350 = vld [vmem:[#allocation4 + $0x168] sm:$0xff]
    %v351 = vld [vmem:[#allocation4 + $0x170] sm:$0xff]
    %v352 = vld [vmem:[#allocation4 + $0x178] sm:$0xff]
    %v353 = vld [vmem:[#allocation4 + $0x180] sm:$0xff]
    %v354 = vld [vmem:[#allocation4 + $0x188] sm:$0xff]
    %v355 = vld [vmem:[#allocation4 + $0x190] sm:$0xff]
    %v356 = vld [vmem:[#allocation4 + $0x198] sm:$0xff]
    %v357 = vld [vmem:[#allocation4 + $0x1a0] sm:$0xff]
    %v358 = vld [vmem:[#allocation4 + $0x1a8] sm:$0xff]
    %v359 = vld [vmem:[#allocation4 + $0x1b0] sm:$0xff]
    %v360 = vld [vmem:[#allocation4 + $0x1b8] sm:$0xff]
    %v361 = vld [vmem:[#allocation4 + $0x1c0] sm:$0xff]
    %v362 = vld [vmem:[#allocation4 + $0x1c8] sm:$0xff]
    %v363 = vld [vmem:[#allocation4 + $0x1d0] sm:$0xff]
    %v364 = vld [vmem:[#allocation4 + $0x1d8] sm:$0xff]
    %v365 = vld [vmem:[#allocation4 + $0x1e0] sm:$0xff]
    %v366 = vld [vmem:[#allocation4 + $0x1e8] sm:$0xff]
    %v367 = vld [vmem:[#allocation4 + $0x1f0] sm:$0xff]
    %v368 = vld [vmem:[#allocation4 + $0x1f8] sm:$0xff]
    %v369 = vpack.c.bf16 %v62, %v58
    %v370 = vpack.c.bf16 %v63, %v59
    %v371 = vpack.c.bf16 %v64, %v60
    %v372 = vpack.c.bf16 %v65, %v61
    %v373 = vpack.c.bf16 %v70, %v66
    %v374 = vpack.c.bf16 %v71, %v67
    %v375 = vpack.c.bf16 %v72, %v68
    %v376 = vpack.c.bf16 %v73, %v69
    %s377 = scalar_lea.vmem [#allocation4], 512
    %v378 = vld [vmem:[%s377] sm:$0xff]
    %v379 = vld [vmem:[%s377 + $0x8] sm:$0xff]
    %v380 = vld [vmem:[%s377 + $0x10] sm:$0xff]
    %v381 = vld [vmem:[%s377 + $0x18] sm:$0xff]
    %v382 = vld [vmem:[%s377 + $0x20] sm:$0xff]
    %v383 = vld [vmem:[%s377 + $0x28] sm:$0xff]
    %v384 = vld [vmem:[%s377 + $0x30] sm:$0xff]
    %v385 = vld [vmem:[%s377 + $0x38] sm:$0xff]
    %v386 = vld [vmem:[%s377 + $0x40] sm:$0xff]
    %v387 = vld [vmem:[%s377 + $0x48] sm:$0xff]
    %v388 = vld [vmem:[%s377 + $0x50] sm:$0xff]
    %v389 = vld [vmem:[%s377 + $0x58] sm:$0xff]
    %v390 = vld [vmem:[%s377 + $0x60] sm:$0xff]
    %v391 = vld [vmem:[%s377 + $0x68] sm:$0xff]
    %v392 = vld [vmem:[%s377 + $0x70] sm:$0xff]
    %v393 = vld [vmem:[%s377 + $0x78] sm:$0xff]
    %v394 = vld [vmem:[%s377 + $0x80] sm:$0xff]
    %v395 = vld [vmem:[%s377 + $0x88] sm:$0xff]
    %v396 = vld [vmem:[%s377 + $0x90] sm:$0xff]
    %v397 = vld [vmem:[%s377 + $0x98] sm:$0xff]
    %v398 = vld [vmem:[%s377 + $0xa0] sm:$0xff]
    %v399 = vld [vmem:[%s377 + $0xa8] sm:$0xff]
    %v400 = vld [vmem:[%s377 + $0xb0] sm:$0xff]
    %v401 = vld [vmem:[%s377 + $0xb8] sm:$0xff]
    %v402 = vld [vmem:[%s377 + $0xc0] sm:$0xff]
    %v403 = vld [vmem:[%s377 + $0xc8] sm:$0xff]
    %v404 = vld [vmem:[%s377 + $0xd0] sm:$0xff]
    %v405 = vld [vmem:[%s377 + $0xd8] sm:$0xff]
    %v406 = vld [vmem:[%s377 + $0xe0] sm:$0xff]
    %v407 = vld [vmem:[%s377 + $0xe8] sm:$0xff]
    %v408 = vld [vmem:[%s377 + $0xf0] sm:$0xff]
    %v409 = vld [vmem:[%s377 + $0xf8] sm:$0xff]
    %v410 = vld [vmem:[%s377 + $0x100] sm:$0xff]
    %v411 = vld [vmem:[%s377 + $0x108] sm:$0xff]
    %v412 = vld [vmem:[%s377 + $0x110] sm:$0xff]
    %v413 = vld [vmem:[%s377 + $0x118] sm:$0xff]
    %v414 = vld [vmem:[%s377 + $0x120] sm:$0xff]
    %v415 = vld [vmem:[%s377 + $0x128] sm:$0xff]
    %v416 = vld [vmem:[%s377 + $0x130] sm:$0xff]
    %v417 = vld [vmem:[%s377 + $0x138] sm:$0xff]
    %v418 = vld [vmem:[%s377 + $0x140] sm:$0xff]
    %v419 = vld [vmem:[%s377 + $0x148] sm:$0xff]
    %v420 = vld [vmem:[%s377 + $0x150] sm:$0xff]
    %v421 = vld [vmem:[%s377 + $0x158] sm:$0xff]
    %v422 = vld [vmem:[%s377 + $0x160] sm:$0xff]
    %v423 = vld [vmem:[%s377 + $0x168] sm:$0xff]
    %v424 = vld [vmem:[%s377 + $0x170] sm:$0xff]
    %v425 = vld [vmem:[%s377 + $0x178] sm:$0xff]
    %v426 = vld [vmem:[%s377 + $0x180] sm:$0xff]
    %v427 = vld [vmem:[%s377 + $0x188] sm:$0xff]
    %v428 = vld [vmem:[%s377 + $0x190] sm:$0xff]
    %v429 = vld [vmem:[%s377 + $0x198] sm:$0xff]
    %v430 = vld [vmem:[%s377 + $0x1a0] sm:$0xff]
    %v431 = vld [vmem:[%s377 + $0x1a8] sm:$0xff]
    %v432 = vld [vmem:[%s377 + $0x1b0] sm:$0xff]
    %v433 = vld [vmem:[%s377 + $0x1b8] sm:$0xff]
    %v434 = vld [vmem:[%s377 + $0x1c0] sm:$0xff]
    %v435 = vld [vmem:[%s377 + $0x1c8] sm:$0xff]
    %v436 = vld [vmem:[%s377 + $0x1d0] sm:$0xff]
    %v437 = vld [vmem:[%s377 + $0x1d8] sm:$0xff]
    %v438 = vld [vmem:[%s377 + $0x1e0] sm:$0xff]
    %v439 = vld [vmem:[%s377 + $0x1e8] sm:$0xff]
    %v440 = vld [vmem:[%s377 + $0x1f0] sm:$0xff]
    %v441 = vld [vmem:[%s377 + $0x1f8] sm:$0xff]
    %v506 = vunpack.c.l.b16 %v378
    %v507 = vunpack.c.h.b16 %v378
    %v508 = vunpack.c.l.b16 %v379
    %v509 = vunpack.c.h.b16 %v379
    %v510 = vunpack.c.l.b16 %v380
    %v511 = vunpack.c.h.b16 %v380
    %v512 = vunpack.c.l.b16 %v381
    %v513 = vunpack.c.h.b16 %v381
    %v514 = vunpack.c.l.b16 %v382
    %v515 = vunpack.c.h.b16 %v382
    %v516 = vunpack.c.l.b16 %v383
    %v517 = vunpack.c.h.b16 %v383
    %v518 = vunpack.c.l.b16 %v384
    %v519 = vunpack.c.h.b16 %v384
    %v520 = vunpack.c.l.b16 %v385
    %v521 = vunpack.c.h.b16 %v385
    %v522 = vunpack.c.l.b16 %v386
    %v523 = vunpack.c.h.b16 %v386
    %v524 = vunpack.c.l.b16 %v387
    %v525 = vunpack.c.h.b16 %v387
    %v526 = vunpack.c.l.b16 %v388
    %v527 = vunpack.c.h.b16 %v388
    %v528 = vunpack.c.l.b16 %v389
    %v529 = vunpack.c.h.b16 %v389
    %v530 = vunpack.c.l.b16 %v390
    %v531 = vunpack.c.h.b16 %v390
    %v532 = vunpack.c.l.b16 %v391
    %v533 = vunpack.c.h.b16 %v391
    %v534 = vunpack.c.l.b16 %v392
    %v535 = vunpack.c.h.b16 %v392
    %v536 = vunpack.c.l.b16 %v393
    %v537 = vunpack.c.h.b16 %v393
    %v538 = vunpack.c.l.b16 %v394
    %v539 = vunpack.c.h.b16 %v394
    %v540 = vunpack.c.l.b16 %v395
    %v541 = vunpack.c.h.b16 %v395
    %v542 = vunpack.c.l.b16 %v396
    %v543 = vunpack.c.h.b16 %v396
    %v544 = vunpack.c.l.b16 %v397
    %v545 = vunpack.c.h.b16 %v397
    %v546 = vunpack.c.l.b16 %v398
    %v547 = vunpack.c.h.b16 %v398
    %v548 = vunpack.c.l.b16 %v399
    %v549 = vunpack.c.h.b16 %v399
    %v550 = vunpack.c.l.b16 %v400
    %v551 = vunpack.c.h.b16 %v400
    %v552 = vunpack.c.l.b16 %v401
    %v553 = vunpack.c.h.b16 %v401
    %v554 = vunpack.c.l.b16 %v402
    %v555 = vunpack.c.h.b16 %v402
    %v556 = vunpack.c.l.b16 %v403
    %v557 = vunpack.c.h.b16 %v403
    %v558 = vunpack.c.l.b16 %v404
    %v559 = vunpack.c.h.b16 %v404
    %v560 = vunpack.c.l.b16 %v405
    %v561 = vunpack.c.h.b16 %v405
    %v562 = vunpack.c.l.b16 %v406
    %v563 = vunpack.c.h.b16 %v406
    %v564 = vunpack.c.l.b16 %v407
    %v565 = vunpack.c.h.b16 %v407
    %v566 = vunpack.c.l.b16 %v408
    %v567 = vunpack.c.h.b16 %v408
    %v568 = vunpack.c.l.b16 %v409
    %v569 = vunpack.c.h.b16 %v409
    %v570 = vunpack.c.l.b16 %v410
    %v571 = vunpack.c.h.b16 %v410
    %v572 = vunpack.c.l.b16 %v411
    %v573 = vunpack.c.h.b16 %v411
    %v574 = vunpack.c.l.b16 %v412
    %v575 = vunpack.c.h.b16 %v412
    %v576 = vunpack.c.l.b16 %v413
    %v577 = vunpack.c.h.b16 %v413
    %v578 = vunpack.c.l.b16 %v414
    %v579 = vunpack.c.h.b16 %v414
    %v580 = vunpack.c.l.b16 %v415
    %v581 = vunpack.c.h.b16 %v415
    %v582 = vunpack.c.l.b16 %v416
    %v583 = vunpack.c.h.b16 %v416
    %v584 = vunpack.c.l.b16 %v417
    %v585 = vunpack.c.h.b16 %v417
    %v586 = vunpack.c.l.b16 %v418
    %v587 = vunpack.c.h.b16 %v418
    %v588 = vunpack.c.l.b16 %v419
    %v589 = vunpack.c.h.b16 %v419
    %v590 = vunpack.c.l.b16 %v420
    %v591 = vunpack.c.h.b16 %v420
    %v592 = vunpack.c.l.b16 %v421
    %v593 = vunpack.c.h.b16 %v421
    %v594 = vunpack.c.l.b16 %v422
    %v595 = vunpack.c.h.b16 %v422
    %v596 = vunpack.c.l.b16 %v423
    %v597 = vunpack.c.h.b16 %v423
    %v598 = vunpack.c.l.b16 %v424
    %v599 = vunpack.c.h.b16 %v424
    %v600 = vunpack.c.l.b16 %v425
    %v601 = vunpack.c.h.b16 %v425
    %v602 = vunpack.c.l.b16 %v426
    %v603 = vunpack.c.h.b16 %v426
    %v604 = vunpack.c.l.b16 %v427
    %v605 = vunpack.c.h.b16 %v427
    %v606 = vunpack.c.l.b16 %v428
    %v607 = vunpack.c.h.b16 %v428
    %v608 = vunpack.c.l.b16 %v429
    %v609 = vunpack.c.h.b16 %v429
    %v610 = vunpack.c.l.b16 %v430
    %v611 = vunpack.c.h.b16 %v430
    %v612 = vunpack.c.l.b16 %v431
    %v613 = vunpack.c.h.b16 %v431
    %v614 = vunpack.c.l.b16 %v432
    %v615 = vunpack.c.h.b16 %v432
    %v616 = vunpack.c.l.b16 %v433
    %v617 = vunpack.c.h.b16 %v433
    %v618 = vunpack.c.l.b16 %v434
    %v619 = vunpack.c.h.b16 %v434
    %v620 = vunpack.c.l.b16 %v435
    %v621 = vunpack.c.h.b16 %v435
    %v622 = vunpack.c.l.b16 %v436
    %v623 = vunpack.c.h.b16 %v436
    %v624 = vunpack.c.l.b16 %v437
    %v625 = vunpack.c.h.b16 %v437
    %v626 = vunpack.c.l.b16 %v438
    %v627 = vunpack.c.h.b16 %v438
    %v628 = vunpack.c.l.b16 %v439
    %v629 = vunpack.c.h.b16 %v439
    %v630 = vunpack.c.l.b16 %v440
    %v631 = vunpack.c.h.b16 %v440
    %v632 = vunpack.c.l.b16 %v441
    %v633 = vunpack.c.h.b16 %v441
    %v634 = vpack.c.b16 %v508, %v506
    %v635 = vpack.c.b16 %v509, %v507
    %v636 = vpack.c.b16 %v512, %v510
    %v637 = vpack.c.b16 %v513, %v511
    %v638 = vpack.c.b16 %v516, %v514
    %v639 = vpack.c.b16 %v517, %v515
    %v640 = vpack.c.b16 %v520, %v518
    %v641 = vpack.c.b16 %v521, %v519
    %v642 = vpack.c.b16 %v524, %v522
    %v643 = vpack.c.b16 %v525, %v523
    %v644 = vpack.c.b16 %v528, %v526
    %v645 = vpack.c.b16 %v529, %v527
    %v646 = vpack.c.b16 %v532, %v530
    %v647 = vpack.c.b16 %v533, %v531
    %v648 = vpack.c.b16 %v536, %v534
    %v649 = vpack.c.b16 %v537, %v535
    %v650 = vpack.c.b16 %v540, %v538
    %v651 = vpack.c.b16 %v541, %v539
    %v652 = vpack.c.b16 %v544, %v542
    %v653 = vpack.c.b16 %v545, %v543
    %v654 = vpack.c.b16 %v548, %v546
    %v655 = vpack.c.b16 %v549, %v547
    %v656 = vpack.c.b16 %v552, %v550
    %v657 = vpack.c.b16 %v553, %v551
    %v658 = vpack.c.b16 %v556, %v554
    %v659 = vpack.c.b16 %v557, %v555
    %v660 = vpack.c.b16 %v560, %v558
    %v661 = vpack.c.b16 %v561, %v559
    %v662 = vpack.c.b16 %v564, %v562
    %v663 = vpack.c.b16 %v565, %v563
    %v664 = vpack.c.b16 %v568, %v566
    %v665 = vpack.c.b16 %v569, %v567
    %v666 = vpack.c.b16 %v572, %v570
    %v667 = vpack.c.b16 %v573, %v571
    %v668 = vpack.c.b16 %v576, %v574
    %v669 = vpack.c.b16 %v577, %v575
    %v670 = vpack.c.b16 %v580, %v578
    %v671 = vpack.c.b16 %v581, %v579
    %v672 = vpack.c.b16 %v584, %v582
    %v673 = vpack.c.b16 %v585, %v583
    %v674 = vpack.c.b16 %v588, %v586
    %v675 = vpack.c.b16 %v589, %v587
    %v676 = vpack.c.b16 %v592, %v590
    %v677 = vpack.c.b16 %v593, %v591
    %v678 = vpack.c.b16 %v596, %v594
    %v679 = vpack.c.b16 %v597, %v595
    %v680 = vpack.c.b16 %v600, %v598
    %v681 = vpack.c.b16 %v601, %v599
    %v682 = vpack.c.b16 %v604, %v602
    %v683 = vpack.c.b16 %v605, %v603
    %v684 = vpack.c.b16 %v608, %v606
    %v685 = vpack.c.b16 %v609, %v607
    %v686 = vpack.c.b16 %v612, %v610
    %v687 = vpack.c.b16 %v613, %v611
    %v688 = vpack.c.b16 %v616, %v614
    %v689 = vpack.c.b16 %v617, %v615
    %v690 = vpack.c.b16 %v620, %v618
    %v691 = vpack.c.b16 %v621, %v619
    %v692 = vpack.c.b16 %v624, %v622
    %v693 = vpack.c.b16 %v625, %v623
    %v694 = vpack.c.b16 %v628, %v626
    %v695 = vpack.c.b16 %v629, %v627
    %v696 = vpack.c.b16 %v632, %v630
    %v697 = vpack.c.b16 %v633, %v631
    %762 = vmatprep.subr.bf16.mxu0 %v649
    %763 = vmatpush1.bf16.msra.mxu0 %v648
    %764 = vmatprep.subr.bf16.mxu0 %v647
    %765 = vmatpush1.bf16.msra.mxu0 %v646
    %766 = vmatprep.subr.bf16.mxu0 %v645
    %767 = vmatpush1.bf16.msra.mxu0 %v644
    %768 = vmatprep.subr.bf16.mxu0 %v643
    %769 = vmatpush1.bf16.msra.mxu0 %v642
    %770 = vmatprep.subr.bf16.mxu0 %v641
    %771 = vmatpush1.bf16.msra.mxu0 %v640
    %772 = vmatprep.subr.bf16.mxu0 %v639
    %773 = vmatpush1.bf16.msra.mxu0 %v638
    %774 = vmatprep.subr.bf16.mxu0 %v637
    %775 = vmatpush1.bf16.msra.mxu0 %v636
    %776 = vmatprep.subr.bf16.mxu0 %v635
    %777 = vmatpush1.bf16.msra.mxu0 %v634
    %778 = vmatprep.subr.bf16.mxu0 %v665
    %779 = vmatpush2.bf16.msra.mxu0 %v664
    %780 = vmatprep.subr.bf16.mxu0 %v663
    %781 = vmatpush2.bf16.msra.mxu0 %v662
    %782 = vmatprep.subr.bf16.mxu0 %v661
    %783 = vmatpush2.bf16.msra.mxu0 %v660
    %784 = vmatprep.subr.bf16.mxu0 %v659
    %785 = vmatpush2.bf16.msra.mxu0 %v658
    %786 = vmatprep.subr.bf16.mxu0 %v657
    %787 = vmatpush2.bf16.msra.mxu0 %v656
    %788 = vmatprep.subr.bf16.mxu0 %v655
    %789 = vmatpush2.bf16.msra.mxu0 %v654
    %790 = vmatprep.subr.bf16.mxu0 %v653
    %791 = vmatpush2.bf16.msra.mxu0 %v652
    %792 = vmatprep.subr.bf16.mxu0 %v651
    %793 = vmatpush2.bf16.msra.mxu0 %v650
    %794 = vmatprep.mubr.bf16.mxu0 %v370
    %795 = vmatmul.mubr.bf16.gmra.mxu0 %v369
    %v796 = vpop.f32.mrf.mxu0
    %v797 = vadd.f32 0.0, %v796
    %v798 = vpop.f32.mrf.mxu0
    %v799 = vadd.f32 0.0, %v798
    %v800 = vpop.f32.mrf.mxu0
    %v801 = vadd.f32 0.0, %v800
    %v802 = vpop.f32.mrf.mxu0
    %v803 = vadd.f32 0.0, %v802
    %804 = vmatprep.mubr.bf16.mxu0 %v374
    %805 = vmatmul.mubr.bf16.gmra.mxu0 %v373
    %v806 = vpop.f32.mrf.mxu0
    %v807 = vadd.f32 0.0, %v806
    %v808 = vpop.f32.mrf.mxu0
    %v809 = vadd.f32 0.0, %v808
    %v810 = vpop.f32.mrf.mxu0
    %v811 = vadd.f32 0.0, %v810
    %v812 = vpop.f32.mrf.mxu0
    %v813 = vadd.f32 0.0, %v812
    %814 = vdwg.mxu0
    %815 = vmatprep.subr.bf16.mxu0 %v681
    %816 = vmatpush1.bf16.msra.mxu0 %v680
    %817 = vmatprep.subr.bf16.mxu0 %v679
    %818 = vmatpush1.bf16.msra.mxu0 %v678
    %819 = vmatprep.subr.bf16.mxu0 %v677
    %820 = vmatpush1.bf16.msra.mxu0 %v676
    %821 = vmatprep.subr.bf16.mxu0 %v675
    %822 = vmatpush1.bf16.msra.mxu0 %v674
    %823 = vmatprep.subr.bf16.mxu0 %v673
    %824 = vmatpush1.bf16.msra.mxu0 %v672
    %825 = vmatprep.subr.bf16.mxu0 %v671
    %826 = vmatpush1.bf16.msra.mxu0 %v670
    %827 = vmatprep.subr.bf16.mxu0 %v669
    %828 = vmatpush1.bf16.msra.mxu0 %v668
    %829 = vmatprep.subr.bf16.mxu0 %v667
    %830 = vmatpush1.bf16.msra.mxu0 %v666
    %831 = vmatprep.subr.bf16.mxu0 %v697
    %832 = vmatpush2.bf16.msra.mxu0 %v696
    %833 = vmatprep.subr.bf16.mxu0 %v695
    %834 = vmatpush2.bf16.msra.mxu0 %v694
    %835 = vmatprep.subr.bf16.mxu0 %v693
    %836 = vmatpush2.bf16.msra.mxu0 %v692
    %837 = vmatprep.subr.bf16.mxu0 %v691
    %838 = vmatpush2.bf16.msra.mxu0 %v690
    %839 = vmatprep.subr.bf16.mxu0 %v689
    %840 = vmatpush2.bf16.msra.mxu0 %v688
    %841 = vmatprep.subr.bf16.mxu0 %v687
    %842 = vmatpush2.bf16.msra.mxu0 %v686
    %843 = vmatprep.subr.bf16.mxu0 %v685
    %844 = vmatpush2.bf16.msra.mxu0 %v684
    %845 = vmatprep.subr.bf16.mxu0 %v683
    %846 = vmatpush2.bf16.msra.mxu0 %v682
    %847 = vmatprep.mubr.bf16.mxu0 %v372
    %848 = vmatmul.mubr.bf16.gmra.mxu0 %v371
    %v849 = vpop.f32.mrf.mxu0
    %v850 = vadd.f32 %v797, %v849
    %v851 = vpop.f32.mrf.mxu0
    %v852 = vadd.f32 %v799, %v851
    %v853 = vpop.f32.mrf.mxu0
    %v854 = vadd.f32 %v801, %v853
    %v855 = vpop.f32.mrf.mxu0
    %v856 = vadd.f32 %v803, %v855
    %857 = vmatprep.mubr.bf16.mxu0 %v376
    %858 = vmatmul.mubr.bf16.gmra.mxu0 %v375
    %v859 = vpop.f32.mrf.mxu0
    %v860 = vadd.f32 %v807, %v859
    %v861 = vpop.f32.mrf.mxu0
    %v862 = vadd.f32 %v809, %v861
    %v863 = vpop.f32.mrf.mxu0
    %v864 = vadd.f32 %v811, %v863
    %v865 = vpop.f32.mrf.mxu0
    %v866 = vadd.f32 %v813, %v865
    %867 = vdwg.mxu0
    %v932 = vunpack.c.l.b16 %v305
    %v933 = vunpack.c.h.b16 %v305
    %v934 = vunpack.c.l.b16 %v306
    %v935 = vunpack.c.h.b16 %v306
    %v936 = vunpack.c.l.b16 %v307
    %v937 = vunpack.c.h.b16 %v307
    %v938 = vunpack.c.l.b16 %v308
    %v939 = vunpack.c.h.b16 %v308
    %v940 = vunpack.c.l.b16 %v309
    %v941 = vunpack.c.h.b16 %v309
    %v942 = vunpack.c.l.b16 %v310
    %v943 = vunpack.c.h.b16 %v310
    %v944 = vunpack.c.l.b16 %v311
    %v945 = vunpack.c.h.b16 %v311
    %v946 = vunpack.c.l.b16 %v312
    %v947 = vunpack.c.h.b16 %v312
    %v948 = vunpack.c.l.b16 %v313
    %v949 = vunpack.c.h.b16 %v313
    %v950 = vunpack.c.l.b16 %v314
    %v951 = vunpack.c.h.b16 %v314
    %v952 = vunpack.c.l.b16 %v315
    %v953 = vunpack.c.h.b16 %v315
    %v954 = vunpack.c.l.b16 %v316
    %v955 = vunpack.c.h.b16 %v316
    %v956 = vunpack.c.l.b16 %v317
    %v957 = vunpack.c.h.b16 %v317
    %v958 = vunpack.c.l.b16 %v318
    %v959 = vunpack.c.h.b16 %v318
    %v960 = vunpack.c.l.b16 %v319
    %v961 = vunpack.c.h.b16 %v319
    %v962 = vunpack.c.l.b16 %v320
    %v963 = vunpack.c.h.b16 %v320
    %v964 = vunpack.c.l.b16 %v321
    %v965 = vunpack.c.h.b16 %v321
    %v966 = vunpack.c.l.b16 %v322
    %v967 = vunpack.c.h.b16 %v322
    %v968 = vunpack.c.l.b16 %v323
    %v969 = vunpack.c.h.b16 %v323
    %v970 = vunpack.c.l.b16 %v324
    %v971 = vunpack.c.h.b16 %v324
    %v972 = vunpack.c.l.b16 %v325
    %v973 = vunpack.c.h.b16 %v325
    %v974 = vunpack.c.l.b16 %v326
    %v975 = vunpack.c.h.b16 %v326
    %v976 = vunpack.c.l.b16 %v327
    %v977 = vunpack.c.h.b16 %v327
    %v978 = vunpack.c.l.b16 %v328
    %v979 = vunpack.c.h.b16 %v328
    %v980 = vunpack.c.l.b16 %v329
    %v981 = vunpack.c.h.b16 %v329
    %v982 = vunpack.c.l.b16 %v330
    %v983 = vunpack.c.h.b16 %v330
    %v984 = vunpack.c.l.b16 %v331
    %v985 = vunpack.c.h.b16 %v331
    %v986 = vunpack.c.l.b16 %v332
    %v987 = vunpack.c.h.b16 %v332
    %v988 = vunpack.c.l.b16 %v333
    %v989 = vunpack.c.h.b16 %v333
    %v990 = vunpack.c.l.b16 %v334
    %v991 = vunpack.c.h.b16 %v334
    %v992 = vunpack.c.l.b16 %v335
    %v993 = vunpack.c.h.b16 %v335
    %v994 = vunpack.c.l.b16 %v336
    %v995 = vunpack.c.h.b16 %v336
    %v996 = vunpack.c.l.b16 %v337
    %v997 = vunpack.c.h.b16 %v337
    %v998 = vunpack.c.l.b16 %v338
    %v999 = vunpack.c.h.b16 %v338
    %v1000 = vunpack.c.l.b16 %v339
    %v1001 = vunpack.c.h.b16 %v339
    %v1002 = vunpack.c.l.b16 %v340
    %v1003 = vunpack.c.h.b16 %v340
    %v1004 = vunpack.c.l.b16 %v341
    %v1005 = vunpack.c.h.b16 %v341
    %v1006 = vunpack.c.l.b16 %v342
    %v1007 = vunpack.c.h.b16 %v342
    %v1008 = vunpack.c.l.b16 %v343
    %v1009 = vunpack.c.h.b16 %v343
    %v1010 = vunpack.c.l.b16 %v344
    %v1011 = vunpack.c.h.b16 %v344
    %v1012 = vunpack.c.l.b16 %v345
    %v1013 = vunpack.c.h.b16 %v345
    %v1014 = vunpack.c.l.b16 %v346
    %v1015 = vunpack.c.h.b16 %v346
    %v1016 = vunpack.c.l.b16 %v347
    %v1017 = vunpack.c.h.b16 %v347
    %v1018 = vunpack.c.l.b16 %v348
    %v1019 = vunpack.c.h.b16 %v348
    %v1020 = vunpack.c.l.b16 %v349
    %v1021 = vunpack.c.h.b16 %v349
    %v1022 = vunpack.c.l.b16 %v350
    %v1023 = vunpack.c.h.b16 %v350
    %v1024 = vunpack.c.l.b16 %v351
    %v1025 = vunpack.c.h.b16 %v351
    %v1026 = vunpack.c.l.b16 %v352
    %v1027 = vunpack.c.h.b16 %v352
    %v1028 = vunpack.c.l.b16 %v353
    %v1029 = vunpack.c.h.b16 %v353
    %v1030 = vunpack.c.l.b16 %v354
    %v1031 = vunpack.c.h.b16 %v354
    %v1032 = vunpack.c.l.b16 %v355
    %v1033 = vunpack.c.h.b16 %v355
    %v1034 = vunpack.c.l.b16 %v356
    %v1035 = vunpack.c.h.b16 %v356
    %v1036 = vunpack.c.l.b16 %v357
    %v1037 = vunpack.c.h.b16 %v357
    %v1038 = vunpack.c.l.b16 %v358
    %v1039 = vunpack.c.h.b16 %v358
    %v1040 = vunpack.c.l.b16 %v359
    %v1041 = vunpack.c.h.b16 %v359
    %v1042 = vunpack.c.l.b16 %v360
    %v1043 = vunpack.c.h.b16 %v360
    %v1044 = vunpack.c.l.b16 %v361
    %v1045 = vunpack.c.h.b16 %v361
    %v1046 = vunpack.c.l.b16 %v362
    %v1047 = vunpack.c.h.b16 %v362
    %v1048 = vunpack.c.l.b16 %v363
    %v1049 = vunpack.c.h.b16 %v363
    %v1050 = vunpack.c.l.b16 %v364
    %v1051 = vunpack.c.h.b16 %v364
    %v1052 = vunpack.c.l.b16 %v365
    %v1053 = vunpack.c.h.b16 %v365
    %v1054 = vunpack.c.l.b16 %v366
    %v1055 = vunpack.c.h.b16 %v366
    %v1056 = vunpack.c.l.b16 %v367
    %v1057 = vunpack.c.h.b16 %v367
    %v1058 = vunpack.c.l.b16 %v368
    %v1059 = vunpack.c.h.b16 %v368
    %v1060 = vpack.c.b16 %v934, %v932
    %v1061 = vpack.c.b16 %v935, %v933
    %v1062 = vpack.c.b16 %v938, %v936
    %v1063 = vpack.c.b16 %v939, %v937
    %v1064 = vpack.c.b16 %v942, %v940
    %v1065 = vpack.c.b16 %v943, %v941
    %v1066 = vpack.c.b16 %v946, %v944
    %v1067 = vpack.c.b16 %v947, %v945
    %v1068 = vpack.c.b16 %v950, %v948
    %v1069 = vpack.c.b16 %v951, %v949
    %v1070 = vpack.c.b16 %v954, %v952
    %v1071 = vpack.c.b16 %v955, %v953
    %v1072 = vpack.c.b16 %v958, %v956
    %v1073 = vpack.c.b16 %v959, %v957
    %v1074 = vpack.c.b16 %v962, %v960
    %v1075 = vpack.c.b16 %v963, %v961
    %v1076 = vpack.c.b16 %v966, %v964
    %v1077 = vpack.c.b16 %v967, %v965
    %v1078 = vpack.c.b16 %v970, %v968
    %v1079 = vpack.c.b16 %v971, %v969
    %v1080 = vpack.c.b16 %v974, %v972
    %v1081 = vpack.c.b16 %v975, %v973
    %v1082 = vpack.c.b16 %v978, %v976
    %v1083 = vpack.c.b16 %v979, %v977
    %v1084 = vpack.c.b16 %v982, %v980
    %v1085 = vpack.c.b16 %v983, %v981
    %v1086 = vpack.c.b16 %v986, %v984
    %v1087 = vpack.c.b16 %v987, %v985
    %v1088 = vpack.c.b16 %v990, %v988
    %v1089 = vpack.c.b16 %v991, %v989
    %v1090 = vpack.c.b16 %v994, %v992
    %v1091 = vpack.c.b16 %v995, %v993
    %v1092 = vpack.c.b16 %v998, %v996
    %v1093 = vpack.c.b16 %v999, %v997
    %v1094 = vpack.c.b16 %v1002, %v1000
    %v1095 = vpack.c.b16 %v1003, %v1001
    %v1096 = vpack.c.b16 %v1006, %v1004
    %v1097 = vpack.c.b16 %v1007, %v1005
    %v1098 = vpack.c.b16 %v1010, %v1008
    %v1099 = vpack.c.b16 %v1011, %v1009
    %v1100 = vpack.c.b16 %v1014, %v1012
    %v1101 = vpack.c.b16 %v1015, %v1013
    %v1102 = vpack.c.b16 %v1018, %v1016
    %v1103 = vpack.c.b16 %v1019, %v1017
    %v1104 = vpack.c.b16 %v1022, %v1020
    %v1105 = vpack.c.b16 %v1023, %v1021
    %v1106 = vpack.c.b16 %v1026, %v1024
    %v1107 = vpack.c.b16 %v1027, %v1025
    %v1108 = vpack.c.b16 %v1030, %v1028
    %v1109 = vpack.c.b16 %v1031, %v1029
    %v1110 = vpack.c.b16 %v1034, %v1032
    %v1111 = vpack.c.b16 %v1035, %v1033
    %v1112 = vpack.c.b16 %v1038, %v1036
    %v1113 = vpack.c.b16 %v1039, %v1037
    %v1114 = vpack.c.b16 %v1042, %v1040
    %v1115 = vpack.c.b16 %v1043, %v1041
    %v1116 = vpack.c.b16 %v1046, %v1044
    %v1117 = vpack.c.b16 %v1047, %v1045
    %v1118 = vpack.c.b16 %v1050, %v1048
    %v1119 = vpack.c.b16 %v1051, %v1049
    %v1120 = vpack.c.b16 %v1054, %v1052
    %v1121 = vpack.c.b16 %v1055, %v1053
    %v1122 = vpack.c.b16 %v1058, %v1056
    %v1123 = vpack.c.b16 %v1059, %v1057
    %1188 = vmatprep.subr.bf16.mxu0 %v1075
    %1189 = vmatpush1.bf16.msra.mxu0 %v1074
    %1190 = vmatprep.subr.bf16.mxu0 %v1073
    %1191 = vmatpush1.bf16.msra.mxu0 %v1072
    %1192 = vmatprep.subr.bf16.mxu0 %v1071
    %1193 = vmatpush1.bf16.msra.mxu0 %v1070
    %1194 = vmatprep.subr.bf16.mxu0 %v1069
    %1195 = vmatpush1.bf16.msra.mxu0 %v1068
    %1196 = vmatprep.subr.bf16.mxu0 %v1067
    %1197 = vmatpush1.bf16.msra.mxu0 %v1066
    %1198 = vmatprep.subr.bf16.mxu0 %v1065
    %1199 = vmatpush1.bf16.msra.mxu0 %v1064
    %1200 = vmatprep.subr.bf16.mxu0 %v1063
    %1201 = vmatpush1.bf16.msra.mxu0 %v1062
    %1202 = vmatprep.subr.bf16.mxu0 %v1061
    %1203 = vmatpush1.bf16.msra.mxu0 %v1060
    %1204 = vmatprep.subr.bf16.mxu0 %v1091
    %1205 = vmatpush2.bf16.msra.mxu0 %v1090
    %1206 = vmatprep.subr.bf16.mxu0 %v1089
    %1207 = vmatpush2.bf16.msra.mxu0 %v1088
    %1208 = vmatprep.subr.bf16.mxu0 %v1087
    %1209 = vmatpush2.bf16.msra.mxu0 %v1086
    %1210 = vmatprep.subr.bf16.mxu0 %v1085
    %1211 = vmatpush2.bf16.msra.mxu0 %v1084
    %1212 = vmatprep.subr.bf16.mxu0 %v1083
    %1213 = vmatpush2.bf16.msra.mxu0 %v1082
    %1214 = vmatprep.subr.bf16.mxu0 %v1081
    %1215 = vmatpush2.bf16.msra.mxu0 %v1080
    %1216 = vmatprep.subr.bf16.mxu0 %v1079
    %1217 = vmatpush2.bf16.msra.mxu0 %v1078
    %1218 = vmatprep.subr.bf16.mxu0 %v1077
    %1219 = vmatpush2.bf16.msra.mxu0 %v1076
    %1220 = vmatprep.mubr.bf16.mxu0 %v298
    %1221 = vmatmul.mubr.bf16.gmra.mxu0 %v297
    %v1222 = vpop.f32.mrf.mxu0
    %v1223 = vadd.f32 %v850, %v1222
    %v1224 = vpop.f32.mrf.mxu0
    %v1225 = vadd.f32 %v852, %v1224
    %v1226 = vpop.f32.mrf.mxu0
    %v1227 = vadd.f32 %v854, %v1226
    %v1228 = vpop.f32.mrf.mxu0
    %v1229 = vadd.f32 %v856, %v1228
    %1230 = vmatprep.mubr.bf16.mxu0 %v302
    %1231 = vmatmul.mubr.bf16.gmra.mxu0 %v301
    %v1232 = vpop.f32.mrf.mxu0
    %v1233 = vadd.f32 %v860, %v1232
    %v1234 = vpop.f32.mrf.mxu0
    %v1235 = vadd.f32 %v862, %v1234
    %v1236 = vpop.f32.mrf.mxu0
    %v1237 = vadd.f32 %v864, %v1236
    %v1238 = vpop.f32.mrf.mxu0
    %v1239 = vadd.f32 %v866, %v1238
    %1240 = vdwg.mxu0
    %1241 = vmatprep.subr.bf16.mxu0 %v1107
    %1242 = vmatpush1.bf16.msra.mxu0 %v1106
    %1243 = vmatprep.subr.bf16.mxu0 %v1105
    %1244 = vmatpush1.bf16.msra.mxu0 %v1104
    %1245 = vmatprep.subr.bf16.mxu0 %v1103
    %1246 = vmatpush1.bf16.msra.mxu0 %v1102
    %1247 = vmatprep.subr.bf16.mxu0 %v1101
    %1248 = vmatpush1.bf16.msra.mxu0 %v1100
    %1249 = vmatprep.subr.bf16.mxu0 %v1099
    %1250 = vmatpush1.bf16.msra.mxu0 %v1098
    %1251 = vmatprep.subr.bf16.mxu0 %v1097
    %1252 = vmatpush1.bf16.msra.mxu0 %v1096
    %1253 = vmatprep.subr.bf16.mxu0 %v1095
    %1254 = vmatpush1.bf16.msra.mxu0 %v1094
    %1255 = vmatprep.subr.bf16.mxu0 %v1093
    %1256 = vmatpush1.bf16.msra.mxu0 %v1092
    %1257 = vmatprep.subr.bf16.mxu0 %v1123
    %1258 = vmatpush2.bf16.msra.mxu0 %v1122
    %1259 = vmatprep.subr.bf16.mxu0 %v1121
    %1260 = vmatpush2.bf16.msra.mxu0 %v1120
    %1261 = vmatprep.subr.bf16.mxu0 %v1119
    %1262 = vmatpush2.bf16.msra.mxu0 %v1118
    %1263 = vmatprep.subr.bf16.mxu0 %v1117
    %1264 = vmatpush2.bf16.msra.mxu0 %v1116
    %1265 = vmatprep.subr.bf16.mxu0 %v1115
    %1266 = vmatpush2.bf16.msra.mxu0 %v1114
    %1267 = vmatprep.subr.bf16.mxu0 %v1113
    %1268 = vmatpush2.bf16.msra.mxu0 %v1112
    %1269 = vmatprep.subr.bf16.mxu0 %v1111
    %1270 = vmatpush2.bf16.msra.mxu0 %v1110
    %1271 = vmatprep.subr.bf16.mxu0 %v1109
    %1272 = vmatpush2.bf16.msra.mxu0 %v1108
    %1273 = vmatprep.mubr.bf16.mxu0 %v300
    %1274 = vmatmul.mubr.bf16.gmra.mxu0 %v299
    %v1275 = vpop.f32.mrf.mxu0
    %v1276 = vadd.f32 %v1223, %v1275
    %v1277 = vpop.f32.mrf.mxu0
    %v1278 = vadd.f32 %v1225, %v1277
    %v1279 = vpop.f32.mrf.mxu0
    %v1280 = vadd.f32 %v1227, %v1279
    %v1281 = vpop.f32.mrf.mxu0
    %v1282 = vadd.f32 %v1229, %v1281
    %1283 = vmatprep.mubr.bf16.mxu0 %v304
    %1284 = vmatmul.mubr.bf16.gmra.mxu0 %v303
    %v1285 = vpop.f32.mrf.mxu0
    %v1286 = vadd.f32 %v1233, %v1285
    %v1287 = vpop.f32.mrf.mxu0
    %v1288 = vadd.f32 %v1235, %v1287
    %v1289 = vpop.f32.mrf.mxu0
    %v1290 = vadd.f32 %v1237, %v1289
    %v1291 = vpop.f32.mrf.mxu0
    %v1292 = vadd.f32 %v1239, %v1291
    %1293 = vdwg.mxu0
    %v1294 = vpack.c.bf16 %v285, %v281
    %v1295 = vpack.c.bf16 %v286, %v282
    %v1296 = vpack.c.bf16 %v287, %v283
    %v1297 = vpack.c.bf16 %v288, %v284
    %v1298 = vpack.c.bf16 %v293, %v289
    %v1299 = vpack.c.bf16 %v294, %v290
    %v1300 = vpack.c.bf16 %v295, %v291
    %v1301 = vpack.c.bf16 %v296, %v292
    %s1302 = scalar_lea.vmem [#allocation4], 1024
    %v1303 = vld [vmem:[%s1302] sm:$0xff]
    %v1304 = vld [vmem:[%s1302 + $0x8] sm:$0xff]
    %v1305 = vld [vmem:[%s1302 + $0x10] sm:$0xff]
    %v1306 = vld [vmem:[%s1302 + $0x18] sm:$0xff]
    %v1307 = vld [vmem:[%s1302 + $0x20] sm:$0xff]
    %v1308 = vld [vmem:[%s1302 + $0x28] sm:$0xff]
    %v1309 = vld [vmem:[%s1302 + $0x30] sm:$0xff]
    %v1310 = vld [vmem:[%s1302 + $0x38] sm:$0xff]
    %v1311 = vld [vmem:[%s1302 + $0x40] sm:$0xff]
    %v1312 = vld [vmem:[%s1302 + $0x48] sm:$0xff]
    %v1313 = vld [vmem:[%s1302 + $0x50] sm:$0xff]
    %v1314 = vld [vmem:[%s1302 + $0x58] sm:$0xff]
    %v1315 = vld [vmem:[%s1302 + $0x60] sm:$0xff]
    %v1316 = vld [vmem:[%s1302 + $0x68] sm:$0xff]
    %v1317 = vld [vmem:[%s1302 + $0x70] sm:$0xff]
    %v1318 = vld [vmem:[%s1302 + $0x78] sm:$0xff]
    %v1319 = vld [vmem:[%s1302 + $0x80] sm:$0xff]
    %v1320 = vld [vmem:[%s1302 + $0x88] sm:$0xff]
    %v1321 = vld [vmem:[%s1302 + $0x90] sm:$0xff]
    %v1322 = vld [vmem:[%s1302 + $0x98] sm:$0xff]
    %v1323 = vld [vmem:[%s1302 + $0xa0] sm:$0xff]
    %v1324 = vld [vmem:[%s1302 + $0xa8] sm:$0xff]
    %v1325 = vld [vmem:[%s1302 + $0xb0] sm:$0xff]
    %v1326 = vld [vmem:[%s1302 + $0xb8] sm:$0xff]
    %v1327 = vld [vmem:[%s1302 + $0xc0] sm:$0xff]
    %v1328 = vld [vmem:[%s1302 + $0xc8] sm:$0xff]
    %v1329 = vld [vmem:[%s1302 + $0xd0] sm:$0xff]
    %v1330 = vld [vmem:[%s1302 + $0xd8] sm:$0xff]
    %v1331 = vld [vmem:[%s1302 + $0xe0] sm:$0xff]
    %v1332 = vld [vmem:[%s1302 + $0xe8] sm:$0xff]
    %v1333 = vld [vmem:[%s1302 + $0xf0] sm:$0xff]
    %v1334 = vld [vmem:[%s1302 + $0xf8] sm:$0xff]
    %v1335 = vld [vmem:[%s1302 + $0x100] sm:$0xff]
    %v1336 = vld [vmem:[%s1302 + $0x108] sm:$0xff]
    %v1337 = vld [vmem:[%s1302 + $0x110] sm:$0xff]
    %v1338 = vld [vmem:[%s1302 + $0x118] sm:$0xff]
    %v1339 = vld [vmem:[%s1302 + $0x120] sm:$0xff]
    %v1340 = vld [vmem:[%s1302 + $0x128] sm:$0xff]
    %v1341 = vld [vmem:[%s1302 + $0x130] sm:$0xff]
    %v1342 = vld [vmem:[%s1302 + $0x138] sm:$0xff]
    %v1343 = vld [vmem:[%s1302 + $0x140] sm:$0xff]
    %v1344 = vld [vmem:[%s1302 + $0x148] sm:$0xff]
    %v1345 = vld [vmem:[%s1302 + $0x150] sm:$0xff]
    %v1346 = vld [vmem:[%s1302 + $0x158] sm:$0xff]
    %v1347 = vld [vmem:[%s1302 + $0x160] sm:$0xff]
    %v1348 = vld [vmem:[%s1302 + $0x168] sm:$0xff]
    %v1349 = vld [vmem:[%s1302 + $0x170] sm:$0xff]
    %v1350 = vld [vmem:[%s1302 + $0x178] sm:$0xff]
    %v1351 = vld [vmem:[%s1302 + $0x180] sm:$0xff]
    %v1352 = vld [vmem:[%s1302 + $0x188] sm:$0xff]
    %v1353 = vld [vmem:[%s1302 + $0x190] sm:$0xff]
    %v1354 = vld [vmem:[%s1302 + $0x198] sm:$0xff]
    %v1355 = vld [vmem:[%s1302 + $0x1a0] sm:$0xff]
    %v1356 = vld [vmem:[%s1302 + $0x1a8] sm:$0xff]
    %v1357 = vld [vmem:[%s1302 + $0x1b0] sm:$0xff]
    %v1358 = vld [vmem:[%s1302 + $0x1b8] sm:$0xff]
    %v1359 = vld [vmem:[%s1302 + $0x1c0] sm:$0xff]
    %v1360 = vld [vmem:[%s1302 + $0x1c8] sm:$0xff]
    %v1361 = vld [vmem:[%s1302 + $0x1d0] sm:$0xff]
    %v1362 = vld [vmem:[%s1302 + $0x1d8] sm:$0xff]
    %v1363 = vld [vmem:[%s1302 + $0x1e0] sm:$0xff]
    %v1364 = vld [vmem:[%s1302 + $0x1e8] sm:$0xff]
    %v1365 = vld [vmem:[%s1302 + $0x1f0] sm:$0xff]
    %v1366 = vld [vmem:[%s1302 + $0x1f8] sm:$0xff]
    %v1431 = vunpack.c.l.b16 %v1303
    %v1432 = vunpack.c.h.b16 %v1303
    %v1433 = vunpack.c.l.b16 %v1304
    %v1434 = vunpack.c.h.b16 %v1304
    %v1435 = vunpack.c.l.b16 %v1305
    %v1436 = vunpack.c.h.b16 %v1305
    %v1437 = vunpack.c.l.b16 %v1306
    %v1438 = vunpack.c.h.b16 %v1306
    %v1439 = vunpack.c.l.b16 %v1307
    %v1440 = vunpack.c.h.b16 %v1307
    %v1441 = vunpack.c.l.b16 %v1308
    %v1442 = vunpack.c.h.b16 %v1308
    %v1443 = vunpack.c.l.b16 %v1309
    %v1444 = vunpack.c.h.b16 %v1309
    %v1445 = vunpack.c.l.b16 %v1310
    %v1446 = vunpack.c.h.b16 %v1310
    %v1447 = vunpack.c.l.b16 %v1311
    %v1448 = vunpack.c.h.b16 %v1311
    %v1449 = vunpack.c.l.b16 %v1312
    %v1450 = vunpack.c.h.b16 %v1312
    %v1451 = vunpack.c.l.b16 %v1313
    %v1452 = vunpack.c.h.b16 %v1313
    %v1453 = vunpack.c.l.b16 %v1314
    %v1454 = vunpack.c.h.b16 %v1314
    %v1455 = vunpack.c.l.b16 %v1315
    %v1456 = vunpack.c.h.b16 %v1315
    %v1457 = vunpack.c.l.b16 %v1316
    %v1458 = vunpack.c.h.b16 %v1316
    %v1459 = vunpack.c.l.b16 %v1317
    %v1460 = vunpack.c.h.b16 %v1317
    %v1461 = vunpack.c.l.b16 %v1318
    %v1462 = vunpack.c.h.b16 %v1318
    %v1463 = vunpack.c.l.b16 %v1319
    %v1464 = vunpack.c.h.b16 %v1319
    %v1465 = vunpack.c.l.b16 %v1320
    %v1466 = vunpack.c.h.b16 %v1320
    %v1467 = vunpack.c.l.b16 %v1321
    %v1468 = vunpack.c.h.b16 %v1321
    %v1469 = vunpack.c.l.b16 %v1322
    %v1470 = vunpack.c.h.b16 %v1322
    %v1471 = vunpack.c.l.b16 %v1323
    %v1472 = vunpack.c.h.b16 %v1323
    %v1473 = vunpack.c.l.b16 %v1324
    %v1474 = vunpack.c.h.b16 %v1324
    %v1475 = vunpack.c.l.b16 %v1325
    %v1476 = vunpack.c.h.b16 %v1325
    %v1477 = vunpack.c.l.b16 %v1326
    %v1478 = vunpack.c.h.b16 %v1326
    %v1479 = vunpack.c.l.b16 %v1327
    %v1480 = vunpack.c.h.b16 %v1327
    %v1481 = vunpack.c.l.b16 %v1328
    %v1482 = vunpack.c.h.b16 %v1328
    %v1483 = vunpack.c.l.b16 %v1329
    %v1484 = vunpack.c.h.b16 %v1329
    %v1485 = vunpack.c.l.b16 %v1330
    %v1486 = vunpack.c.h.b16 %v1330
    %v1487 = vunpack.c.l.b16 %v1331
    %v1488 = vunpack.c.h.b16 %v1331
    %v1489 = vunpack.c.l.b16 %v1332
    %v1490 = vunpack.c.h.b16 %v1332
    %v1491 = vunpack.c.l.b16 %v1333
    %v1492 = vunpack.c.h.b16 %v1333
    %v1493 = vunpack.c.l.b16 %v1334
    %v1494 = vunpack.c.h.b16 %v1334
    %v1495 = vunpack.c.l.b16 %v1335
    %v1496 = vunpack.c.h.b16 %v1335
    %v1497 = vunpack.c.l.b16 %v1336
    %v1498 = vunpack.c.h.b16 %v1336
    %v1499 = vunpack.c.l.b16 %v1337
    %v1500 = vunpack.c.h.b16 %v1337
    %v1501 = vunpack.c.l.b16 %v1338
    %v1502 = vunpack.c.h.b16 %v1338
    %v1503 = vunpack.c.l.b16 %v1339
    %v1504 = vunpack.c.h.b16 %v1339
    %v1505 = vunpack.c.l.b16 %v1340
    %v1506 = vunpack.c.h.b16 %v1340
    %v1507 = vunpack.c.l.b16 %v1341
    %v1508 = vunpack.c.h.b16 %v1341
    %v1509 = vunpack.c.l.b16 %v1342
    %v1510 = vunpack.c.h.b16 %v1342
    %v1511 = vunpack.c.l.b16 %v1343
    %v1512 = vunpack.c.h.b16 %v1343
    %v1513 = vunpack.c.l.b16 %v1344
    %v1514 = vunpack.c.h.b16 %v1344
    %v1515 = vunpack.c.l.b16 %v1345
    %v1516 = vunpack.c.h.b16 %v1345
    %v1517 = vunpack.c.l.b16 %v1346
    %v1518 = vunpack.c.h.b16 %v1346
    %v1519 = vunpack.c.l.b16 %v1347
    %v1520 = vunpack.c.h.b16 %v1347
    %v1521 = vunpack.c.l.b16 %v1348
    %v1522 = vunpack.c.h.b16 %v1348
    %v1523 = vunpack.c.l.b16 %v1349
    %v1524 = vunpack.c.h.b16 %v1349
    %v1525 = vunpack.c.l.b16 %v1350
    %v1526 = vunpack.c.h.b16 %v1350
    %v1527 = vunpack.c.l.b16 %v1351
    %v1528 = vunpack.c.h.b16 %v1351
    %v1529 = vunpack.c.l.b16 %v1352
    %v1530 = vunpack.c.h.b16 %v1352
    %v1531 = vunpack.c.l.b16 %v1353
    %v1532 = vunpack.c.h.b16 %v1353
    %v1533 = vunpack.c.l.b16 %v1354
    %v1534 = vunpack.c.h.b16 %v1354
    %v1535 = vunpack.c.l.b16 %v1355
    %v1536 = vunpack.c.h.b16 %v1355
    %v1537 = vunpack.c.l.b16 %v1356
    %v1538 = vunpack.c.h.b16 %v1356
    %v1539 = vunpack.c.l.b16 %v1357
    %v1540 = vunpack.c.h.b16 %v1357
    %v1541 = vunpack.c.l.b16 %v1358
    %v1542 = vunpack.c.h.b16 %v1358
    %v1543 = vunpack.c.l.b16 %v1359
    %v1544 = vunpack.c.h.b16 %v1359
    %v1545 = vunpack.c.l.b16 %v1360
    %v1546 = vunpack.c.h.b16 %v1360
    %v1547 = vunpack.c.l.b16 %v1361
    %v1548 = vunpack.c.h.b16 %v1361
    %v1549 = vunpack.c.l.b16 %v1362
    %v1550 = vunpack.c.h.b16 %v1362
    %v1551 = vunpack.c.l.b16 %v1363
    %v1552 = vunpack.c.h.b16 %v1363
    %v1553 = vunpack.c.l.b16 %v1364
    %v1554 = vunpack.c.h.b16 %v1364
    %v1555 = vunpack.c.l.b16 %v1365
    %v1556 = vunpack.c.h.b16 %v1365
    %v1557 = vunpack.c.l.b16 %v1366
    %v1558 = vunpack.c.h.b16 %v1366
    %v1559 = vpack.c.b16 %v1433, %v1431
    %v1560 = vpack.c.b16 %v1434, %v1432
    %v1561 = vpack.c.b16 %v1437, %v1435
    %v1562 = vpack.c.b16 %v1438, %v1436
    %v1563 = vpack.c.b16 %v1441, %v1439
    %v1564 = vpack.c.b16 %v1442, %v1440
    %v1565 = vpack.c.b16 %v1445, %v1443
    %v1566 = vpack.c.b16 %v1446, %v1444
    %v1567 = vpack.c.b16 %v1449, %v1447
    %v1568 = vpack.c.b16 %v1450, %v1448
    %v1569 = vpack.c.b16 %v1453, %v1451
    %v1570 = vpack.c.b16 %v1454, %v1452
    %v1571 = vpack.c.b16 %v1457, %v1455
    %v1572 = vpack.c.b16 %v1458, %v1456
    %v1573 = vpack.c.b16 %v1461, %v1459
    %v1574 = vpack.c.b16 %v1462, %v1460
    %v1575 = vpack.c.b16 %v1465, %v1463
    %v1576 = vpack.c.b16 %v1466, %v1464
    %v1577 = vpack.c.b16 %v1469, %v1467
    %v1578 = vpack.c.b16 %v1470, %v1468
    %v1579 = vpack.c.b16 %v1473, %v1471
    %v1580 = vpack.c.b16 %v1474, %v1472
    %v1581 = vpack.c.b16 %v1477, %v1475
    %v1582 = vpack.c.b16 %v1478, %v1476
    %v1583 = vpack.c.b16 %v1481, %v1479
    %v1584 = vpack.c.b16 %v1482, %v1480
    %v1585 = vpack.c.b16 %v1485, %v1483
    %v1586 = vpack.c.b16 %v1486, %v1484
    %v1587 = vpack.c.b16 %v1489, %v1487
    %v1588 = vpack.c.b16 %v1490, %v1488
    %v1589 = vpack.c.b16 %v1493, %v1491
    %v1590 = vpack.c.b16 %v1494, %v1492
    %v1591 = vpack.c.b16 %v1497, %v1495
    %v1592 = vpack.c.b16 %v1498, %v1496
    %v1593 = vpack.c.b16 %v1501, %v1499
    %v1594 = vpack.c.b16 %v1502, %v1500
    %v1595 = vpack.c.b16 %v1505, %v1503
    %v1596 = vpack.c.b16 %v1506, %v1504
    %v1597 = vpack.c.b16 %v1509, %v1507
    %v1598 = vpack.c.b16 %v1510, %v1508
    %v1599 = vpack.c.b16 %v1513, %v1511
    %v1600 = vpack.c.b16 %v1514, %v1512
    %v1601 = vpack.c.b16 %v1517, %v1515
    %v1602 = vpack.c.b16 %v1518, %v1516
    %v1603 = vpack.c.b16 %v1521, %v1519
    %v1604 = vpack.c.b16 %v1522, %v1520
    %v1605 = vpack.c.b16 %v1525, %v1523
    %v1606 = vpack.c.b16 %v1526, %v1524
    %v1607 = vpack.c.b16 %v1529, %v1527
    %v1608 = vpack.c.b16 %v1530, %v1528
    %v1609 = vpack.c.b16 %v1533, %v1531
    %v1610 = vpack.c.b16 %v1534, %v1532
    %v1611 = vpack.c.b16 %v1537, %v1535
    %v1612 = vpack.c.b16 %v1538, %v1536
    %v1613 = vpack.c.b16 %v1541, %v1539
    %v1614 = vpack.c.b16 %v1542, %v1540
    %v1615 = vpack.c.b16 %v1545, %v1543
    %v1616 = vpack.c.b16 %v1546, %v1544
    %v1617 = vpack.c.b16 %v1549, %v1547
    %v1618 = vpack.c.b16 %v1550, %v1548
    %v1619 = vpack.c.b16 %v1553, %v1551
    %v1620 = vpack.c.b16 %v1554, %v1552
    %v1621 = vpack.c.b16 %v1557, %v1555
    %v1622 = vpack.c.b16 %v1558, %v1556
    %1687 = vmatprep.subr.bf16.mxu0 %v1574
    %1688 = vmatpush1.bf16.msra.mxu0 %v1573
    %1689 = vmatprep.subr.bf16.mxu0 %v1572
    %1690 = vmatpush1.bf16.msra.mxu0 %v1571
    %1691 = vmatprep.subr.bf16.mxu0 %v1570
    %1692 = vmatpush1.bf16.msra.mxu0 %v1569
    %1693 = vmatprep.subr.bf16.mxu0 %v1568
    %1694 = vmatpush1.bf16.msra.mxu0 %v1567
    %1695 = vmatprep.subr.bf16.mxu0 %v1566
    %1696 = vmatpush1.bf16.msra.mxu0 %v1565
    %1697 = vmatprep.subr.bf16.mxu0 %v1564
    %1698 = vmatpush1.bf16.msra.mxu0 %v1563
    %1699 = vmatprep.subr.bf16.mxu0 %v1562
    %1700 = vmatpush1.bf16.msra.mxu0 %v1561
    %1701 = vmatprep.subr.bf16.mxu0 %v1560
    %1702 = vmatpush1.bf16.msra.mxu0 %v1559
    %1703 = vmatprep.subr.bf16.mxu0 %v1590
    %1704 = vmatpush2.bf16.msra.mxu0 %v1589
    %1705 = vmatprep.subr.bf16.mxu0 %v1588
    %1706 = vmatpush2.bf16.msra.mxu0 %v1587
    %1707 = vmatprep.subr.bf16.mxu0 %v1586
    %1708 = vmatpush2.bf16.msra.mxu0 %v1585
    %1709 = vmatprep.subr.bf16.mxu0 %v1584
    %1710 = vmatpush2.bf16.msra.mxu0 %v1583
    %1711 = vmatprep.subr.bf16.mxu0 %v1582
    %1712 = vmatpush2.bf16.msra.mxu0 %v1581
    %1713 = vmatprep.subr.bf16.mxu0 %v1580
    %1714 = vmatpush2.bf16.msra.mxu0 %v1579
    %1715 = vmatprep.subr.bf16.mxu0 %v1578
    %1716 = vmatpush2.bf16.msra.mxu0 %v1577
    %1717 = vmatprep.subr.bf16.mxu0 %v1576
    %1718 = vmatpush2.bf16.msra.mxu0 %v1575
    %1719 = vmatprep.mubr.bf16.mxu0 %v1295
    %1720 = vmatmul.mubr.bf16.gmra.mxu0 %v1294
    %v1721 = vpop.f32.mrf.mxu0
    %v1722 = vadd.f32 0.0, %v1721
    %v1723 = vpop.f32.mrf.mxu0
    %v1724 = vadd.f32 0.0, %v1723
    %v1725 = vpop.f32.mrf.mxu0
    %v1726 = vadd.f32 0.0, %v1725
    %v1727 = vpop.f32.mrf.mxu0
    %v1728 = vadd.f32 0.0, %v1727
    %1729 = vmatprep.mubr.bf16.mxu0 %v1299
    %1730 = vmatmul.mubr.bf16.gmra.mxu0 %v1298
    %v1731 = vpop.f32.mrf.mxu0
    %v1732 = vadd.f32 0.0, %v1731
    %v1733 = vpop.f32.mrf.mxu0
    %v1734 = vadd.f32 0.0, %v1733
    %v1735 = vpop.f32.mrf.mxu0
    %v1736 = vadd.f32 0.0, %v1735
    %v1737 = vpop.f32.mrf.mxu0
    %v1738 = vadd.f32 0.0, %v1737
    %1739 = vdwg.mxu0
    %1740 = vmatprep.subr.bf16.mxu0 %v1606
    %1741 = vmatpush1.bf16.msra.mxu0 %v1605
    %1742 = vmatprep.subr.bf16.mxu0 %v1604
    %1743 = vmatpush1.bf16.msra.mxu0 %v1603
    %1744 = vmatprep.subr.bf16.mxu0 %v1602
    %1745 = vmatpush1.bf16.msra.mxu0 %v1601
    %1746 = vmatprep.subr.bf16.mxu0 %v1600
    %1747 = vmatpush1.bf16.msra.mxu0 %v1599
    %1748 = vmatprep.subr.bf16.mxu0 %v1598
    %1749 = vmatpush1.bf16.msra.mxu0 %v1597
    %1750 = vmatprep.subr.bf16.mxu0 %v1596
    %1751 = vmatpush1.bf16.msra.mxu0 %v1595
    %1752 = vmatprep.subr.bf16.mxu0 %v1594
    %1753 = vmatpush1.bf16.msra.mxu0 %v1593
    %1754 = vmatprep.subr.bf16.mxu0 %v1592
    %1755 = vmatpush1.bf16.msra.mxu0 %v1591
    %1756 = vmatprep.subr.bf16.mxu0 %v1622
    %1757 = vmatpush2.bf16.msra.mxu0 %v1621
    %1758 = vmatprep.subr.bf16.mxu0 %v1620
    %1759 = vmatpush2.bf16.msra.mxu0 %v1619
    %1760 = vmatprep.subr.bf16.mxu0 %v1618
    %1761 = vmatpush2.bf16.msra.mxu0 %v1617
    %1762 = vmatprep.subr.bf16.mxu0 %v1616
    %1763 = vmatpush2.bf16.msra.mxu0 %v1615
    %1764 = vmatprep.subr.bf16.mxu0 %v1614
    %1765 = vmatpush2.bf16.msra.mxu0 %v1613
    %1766 = vmatprep.subr.bf16.mxu0 %v1612
    %1767 = vmatpush2.bf16.msra.mxu0 %v1611
    %1768 = vmatprep.subr.bf16.mxu0 %v1610
    %1769 = vmatpush2.bf16.msra.mxu0 %v1609
    %1770 = vmatprep.subr.bf16.mxu0 %v1608
    %1771 = vmatpush2.bf16.msra.mxu0 %v1607
    %1772 = vmatprep.mubr.bf16.mxu0 %v1297
    %1773 = vmatmul.mubr.bf16.gmra.mxu0 %v1296
    %v1774 = vpop.f32.mrf.mxu0
    %v1775 = vadd.f32 %v1722, %v1774
    %v1776 = vpop.f32.mrf.mxu0
    %v1777 = vadd.f32 %v1724, %v1776
    %v1778 = vpop.f32.mrf.mxu0
    %v1779 = vadd.f32 %v1726, %v1778
    %v1780 = vpop.f32.mrf.mxu0
    %v1781 = vadd.f32 %v1728, %v1780
    %1782 = vmatprep.mubr.bf16.mxu0 %v1301
    %1783 = vmatmul.mubr.bf16.gmra.mxu0 %v1300
    %v1784 = vpop.f32.mrf.mxu0
    %v1785 = vadd.f32 %v1732, %v1784
    %v1786 = vpop.f32.mrf.mxu0
    %v1787 = vadd.f32 %v1734, %v1786
    %v1788 = vpop.f32.mrf.mxu0
    %v1789 = vadd.f32 %v1736, %v1788
    %v1790 = vpop.f32.mrf.mxu0
    %v1791 = vadd.f32 %v1738, %v1790
    %1792 = vdwg.mxu0
    %v1793 = vadd.f32 %v1276, %v1775
    %v1794 = vadd.f32 %v1278, %v1777
    %v1795 = vadd.f32 %v1280, %v1779
    %v1796 = vadd.f32 %v1282, %v1781
    %v1797 = vadd.f32 %v1286, %v1785
    %v1798 = vadd.f32 %v1288, %v1787
    %v1799 = vadd.f32 %v1290, %v1789
    %v1800 = vadd.f32 %v1292, %v1791
    %v1801 = vld [vmem:[%s4] sm:$0x3]
    %v1803 = vlaneseq
    %v1804 = vshrl.u32 %v1803, 7
    %v1805 = vsub.s32 0, %v1804
    %v1806 = vrot.slane %v1801, %v1805
    %v1807 = vlaneseq
    %v1808 = vshrl.u32 %v1807, 7
    %v1809 = vsub.s32 1, %v1808
    %v1810 = vrot.slane %v1801, %v1809
    %v1813 = vadd.f32 %v1793, %v1806
    %v1814 = vadd.f32 %v1794, %v1810
    %v1815 = vadd.f32 %v1795, %v1806
    %v1816 = vadd.f32 %v1796, %v1810
    %v1817 = vadd.f32 %v1797, %v1806
    %v1818 = vadd.f32 %v1798, %v1810
    %v1819 = vadd.f32 %v1799, %v1806
    %v1820 = vadd.f32 %v1800, %v1810
    %vm1821 = vcmp.ge.f32.partialorder %v1813, 0.0
    %vm1822 = vcmp.ge.f32.partialorder %v1814, 0.0
    %vm1823 = vcmp.ge.f32.partialorder %v1815, 0.0
    %vm1824 = vcmp.ge.f32.partialorder %v1816, 0.0
    %vm1825 = vcmp.ge.f32.partialorder %v1817, 0.0
    %vm1826 = vcmp.ge.f32.partialorder %v1818, 0.0
    %vm1827 = vcmp.ge.f32.partialorder %v1819, 0.0
    %vm1828 = vcmp.ge.f32.partialorder %v1820, 0.0
    %v1829 = vld [vmem:[%s5] sm:$0x3]
    %v1831 = vlaneseq
    %v1832 = vshrl.u32 %v1831, 7
    %v1833 = vsub.s32 0, %v1832
    %v1834 = vrot.slane %v1829, %v1833
    %v1835 = vlaneseq
    %v1836 = vshrl.u32 %v1835, 7
    %v1837 = vsub.s32 1, %v1836
    %v1838 = vrot.slane %v1829, %v1837
    %v1841 = vmul.f32 %v1813, %v1834
    %v1842 = vmul.f32 %v1814, %v1838
    %v1843 = vmul.f32 %v1815, %v1834
    %v1844 = vmul.f32 %v1816, %v1838
    %v1845 = vmul.f32 %v1817, %v1834
    %v1846 = vmul.f32 %v1818, %v1838
    %v1847 = vmul.f32 %v1819, %v1834
    %v1848 = vmul.f32 %v1820, %v1838
    %v1849 = vsel %vm1821, %v1813, %v1841
    %v1850 = vsel %vm1822, %v1814, %v1842
    %v1851 = vsel %vm1823, %v1815, %v1843
    %v1852 = vsel %vm1824, %v1816, %v1844
    %v1853 = vsel %vm1825, %v1817, %v1845
    %v1854 = vsel %vm1826, %v1818, %v1846
    %v1855 = vsel %vm1827, %v1819, %v1847
    %v1856 = vsel %vm1828, %v1820, %v1848
    %v1865 = vrot.slane %v1849, 7
    %v1866 = vrot.slane %v1850, 7
    %v1867 = vrot.slane %v1851, 7
    %v1868 = vsel %vm151, %v1865, %v1867
    %v1869 = vrot.slane %v1852, 7
    %v1870 = vsel %vm151, %v1866, %v1869
    %v1871 = vrot.slane %v1853, 7
    %v1872 = vsel %vm151, %v1867, %v1871
    %v1873 = vrot.slane %v1854, 7
    %v1874 = vsel %vm151, %v1869, %v1873
    %v1875 = vrot.slane %v1855, 7
    %v1876 = vsel %vm151, %v1871, %v1875
    %v1877 = vrot.slane %v1856, 7
    %v1878 = vsel %vm151, %v1873, %v1877
    %v1887 = vsel %vm151, 0.0, %v1865
    %v1888 = vsel %vm151, 0.0, %v1866
    %v1889 = vsel %vm204, %v1887, 0.0
    %v1890 = vsel %vm204, %v1888, 0.0
    %v1891 = vsel %vm205, %v1868, 0.0
    %v1892 = vsel %vm205, %v1870, 0.0
    %v1893 = vsel %vm206, %v1872, 0.0
    %v1894 = vsel %vm206, %v1874, 0.0
    %v1895 = vsel %vm207, %v1876, 0.0
    %v1896 = vsel %vm207, %v1878, 0.0
    %v1897 = vrot.slane %v1849, 1
    %v1898 = vrot.slane %v1851, 1
    %v1899 = vsel %vm224, %v1897, %v1898
    %v1900 = vrot.slane %v1850, 1
    %v1901 = vrot.slane %v1852, 1
    %v1902 = vsel %vm224, %v1900, %v1901
    %v1903 = vrot.slane %v1853, 1
    %v1904 = vsel %vm224, %v1898, %v1903
    %v1905 = vrot.slane %v1854, 1
    %v1906 = vsel %vm224, %v1901, %v1905
    %v1907 = vrot.slane %v1855, 1
    %v1908 = vsel %vm224, %v1903, %v1907
    %v1909 = vrot.slane %v1856, 1
    %v1910 = vsel %vm224, %v1905, %v1909
    %v1919 = vsel %vm224, %v1907, 0.0
    %v1920 = vsel %vm224, %v1909, 0.0
    %v1921 = vsel %vm277, %v1899, 0.0
    %v1922 = vsel %vm277, %v1902, 0.0
    %v1923 = vsel %vm278, %v1904, 0.0
    %v1924 = vsel %vm278, %v1906, 0.0
    %v1925 = vsel %vm279, %v1908, 0.0
    %v1926 = vsel %vm279, %v1910, 0.0
    %v1927 = vsel %vm280, %v1919, 0.0
    %v1928 = vsel %vm280, %v1920, 0.0
    %v1929 = vpack.c.bf16 %v1891, %v1889
    %v1930 = vpack.c.bf16 %v1892, %v1890
    %v1931 = vpack.c.bf16 %v1895, %v1893
    %v1932 = vpack.c.bf16 %v1896, %v1894
    %v1933 = vld [vmem:[#allocation6] sm:$0xff]
    %v1934 = vld [vmem:[#allocation6 + $0x8] sm:$0xff]
    %v1935 = vld [vmem:[#allocation6 + $0x10] sm:$0xff]
    %v1936 = vld [vmem:[#allocation6 + $0x18] sm:$0xff]
    %v1937 = vld [vmem:[#allocation6 + $0x20] sm:$0xff]
    %v1938 = vld [vmem:[#allocation6 + $0x28] sm:$0xff]
    %v1939 = vld [vmem:[#allocation6 + $0x30] sm:$0xff]
    %v1940 = vld [vmem:[#allocation6 + $0x38] sm:$0xff]
    %v1941 = vld [vmem:[#allocation6 + $0x40] sm:$0xff]
    %v1942 = vld [vmem:[#allocation6 + $0x48] sm:$0xff]
    %v1943 = vld [vmem:[#allocation6 + $0x50] sm:$0xff]
    %v1944 = vld [vmem:[#allocation6 + $0x58] sm:$0xff]
    %v1945 = vld [vmem:[#allocation6 + $0x60] sm:$0xff]
    %v1946 = vld [vmem:[#allocation6 + $0x68] sm:$0xff]
    %v1947 = vld [vmem:[#allocation6 + $0x70] sm:$0xff]
    %v1948 = vld [vmem:[#allocation6 + $0x78] sm:$0xff]
    %v1949 = vld [vmem:[#allocation6 + $0x80] sm:$0xff]
    %v1950 = vld [vmem:[#allocation6 + $0x88] sm:$0xff]
    %v1951 = vld [vmem:[#allocation6 + $0x90] sm:$0xff]
    %v1952 = vld [vmem:[#allocation6 + $0x98] sm:$0xff]
    %v1953 = vld [vmem:[#allocation6 + $0xa0] sm:$0xff]
    %v1954 = vld [vmem:[#allocation6 + $0xa8] sm:$0xff]
    %v1955 = vld [vmem:[#allocation6 + $0xb0] sm:$0xff]
    %v1956 = vld [vmem:[#allocation6 + $0xb8] sm:$0xff]
    %v1957 = vld [vmem:[#allocation6 + $0xc0] sm:$0xff]
    %v1958 = vld [vmem:[#allocation6 + $0xc8] sm:$0xff]
    %v1959 = vld [vmem:[#allocation6 + $0xd0] sm:$0xff]
    %v1960 = vld [vmem:[#allocation6 + $0xd8] sm:$0xff]
    %v1961 = vld [vmem:[#allocation6 + $0xe0] sm:$0xff]
    %v1962 = vld [vmem:[#allocation6 + $0xe8] sm:$0xff]
    %v1963 = vld [vmem:[#allocation6 + $0xf0] sm:$0xff]
    %v1964 = vld [vmem:[#allocation6 + $0xf8] sm:$0xff]
    %v1965 = vld [vmem:[#allocation6 + $0x100] sm:$0xff]
    %v1966 = vld [vmem:[#allocation6 + $0x108] sm:$0xff]
    %v1967 = vld [vmem:[#allocation6 + $0x110] sm:$0xff]
    %v1968 = vld [vmem:[#allocation6 + $0x118] sm:$0xff]
    %v1969 = vld [vmem:[#allocation6 + $0x120] sm:$0xff]
    %v1970 = vld [vmem:[#allocation6 + $0x128] sm:$0xff]
    %v1971 = vld [vmem:[#allocation6 + $0x130] sm:$0xff]
    %v1972 = vld [vmem:[#allocation6 + $0x138] sm:$0xff]
    %v1973 = vld [vmem:[#allocation6 + $0x140] sm:$0xff]
    %v1974 = vld [vmem:[#allocation6 + $0x148] sm:$0xff]
    %v1975 = vld [vmem:[#allocation6 + $0x150] sm:$0xff]
    %v1976 = vld [vmem:[#allocation6 + $0x158] sm:$0xff]
    %v1977 = vld [vmem:[#allocation6 + $0x160] sm:$0xff]
    %v1978 = vld [vmem:[#allocation6 + $0x168] sm:$0xff]
    %v1979 = vld [vmem:[#allocation6 + $0x170] sm:$0xff]
    %v1980 = vld [vmem:[#allocation6 + $0x178] sm:$0xff]
    %v1981 = vld [vmem:[#allocation6 + $0x180] sm:$0xff]
    %v1982 = vld [vmem:[#allocation6 + $0x188] sm:$0xff]
    %v1983 = vld [vmem:[#allocation6 + $0x190] sm:$0xff]
    %v1984 = vld [vmem:[#allocation6 + $0x198] sm:$0xff]
    %v1985 = vld [vmem:[#allocation6 + $0x1a0] sm:$0xff]
    %v1986 = vld [vmem:[#allocation6 + $0x1a8] sm:$0xff]
    %v1987 = vld [vmem:[#allocation6 + $0x1b0] sm:$0xff]
    %v1988 = vld [vmem:[#allocation6 + $0x1b8] sm:$0xff]
    %v1989 = vld [vmem:[#allocation6 + $0x1c0] sm:$0xff]
    %v1990 = vld [vmem:[#allocation6 + $0x1c8] sm:$0xff]
    %v1991 = vld [vmem:[#allocation6 + $0x1d0] sm:$0xff]
    %v1992 = vld [vmem:[#allocation6 + $0x1d8] sm:$0xff]
    %v1993 = vld [vmem:[#allocation6 + $0x1e0] sm:$0xff]
    %v1994 = vld [vmem:[#allocation6 + $0x1e8] sm:$0xff]
    %v1995 = vld [vmem:[#allocation6 + $0x1f0] sm:$0xff]
    %v1996 = vld [vmem:[#allocation6 + $0x1f8] sm:$0xff]
    %v1997 = vpack.c.bf16 %v1851, %v1849
    %v1998 = vpack.c.bf16 %v1852, %v1850
    %v1999 = vpack.c.bf16 %v1855, %v1853
    %v2000 = vpack.c.bf16 %v1856, %v1854
    %s2001 = scalar_lea.vmem [#allocation6], 512
    %v2002 = vld [vmem:[%s2001] sm:$0xff]
    %v2003 = vld [vmem:[%s2001 + $0x8] sm:$0xff]
    %v2004 = vld [vmem:[%s2001 + $0x10] sm:$0xff]
    %v2005 = vld [vmem:[%s2001 + $0x18] sm:$0xff]
    %v2006 = vld [vmem:[%s2001 + $0x20] sm:$0xff]
    %v2007 = vld [vmem:[%s2001 + $0x28] sm:$0xff]
    %v2008 = vld [vmem:[%s2001 + $0x30] sm:$0xff]
    %v2009 = vld [vmem:[%s2001 + $0x38] sm:$0xff]
    %v2010 = vld [vmem:[%s2001 + $0x40] sm:$0xff]
    %v2011 = vld [vmem:[%s2001 + $0x48] sm:$0xff]
    %v2012 = vld [vmem:[%s2001 + $0x50] sm:$0xff]
    %v2013 = vld [vmem:[%s2001 + $0x58] sm:$0xff]
    %v2014 = vld [vmem:[%s2001 + $0x60] sm:$0xff]
    %v2015 = vld [vmem:[%s2001 + $0x68] sm:$0xff]
    %v2016 = vld [vmem:[%s2001 + $0x70] sm:$0xff]
    %v2017 = vld [vmem:[%s2001 + $0x78] sm:$0xff]
    %v2018 = vld [vmem:[%s2001 + $0x80] sm:$0xff]
    %v2019 = vld [vmem:[%s2001 + $0x88] sm:$0xff]
    %v2020 = vld [vmem:[%s2001 + $0x90] sm:$0xff]
    %v2021 = vld [vmem:[%s2001 + $0x98] sm:$0xff]
    %v2022 = vld [vmem:[%s2001 + $0xa0] sm:$0xff]
    %v2023 = vld [vmem:[%s2001 + $0xa8] sm:$0xff]
    %v2024 = vld [vmem:[%s2001 + $0xb0] sm:$0xff]
    %v2025 = vld [vmem:[%s2001 + $0xb8] sm:$0xff]
    %v2026 = vld [vmem:[%s2001 + $0xc0] sm:$0xff]
    %v2027 = vld [vmem:[%s2001 + $0xc8] sm:$0xff]
    %v2028 = vld [vmem:[%s2001 + $0xd0] sm:$0xff]
    %v2029 = vld [vmem:[%s2001 + $0xd8] sm:$0xff]
    %v2030 = vld [vmem:[%s2001 + $0xe0] sm:$0xff]
    %v2031 = vld [vmem:[%s2001 + $0xe8] sm:$0xff]
    %v2032 = vld [vmem:[%s2001 + $0xf0] sm:$0xff]
    %v2033 = vld [vmem:[%s2001 + $0xf8] sm:$0xff]
    %v2034 = vld [vmem:[%s2001 + $0x100] sm:$0xff]
    %v2035 = vld [vmem:[%s2001 + $0x108] sm:$0xff]
    %v2036 = vld [vmem:[%s2001 + $0x110] sm:$0xff]
    %v2037 = vld [vmem:[%s2001 + $0x118] sm:$0xff]
    %v2038 = vld [vmem:[%s2001 + $0x120] sm:$0xff]
    %v2039 = vld [vmem:[%s2001 + $0x128] sm:$0xff]
    %v2040 = vld [vmem:[%s2001 + $0x130] sm:$0xff]
    %v2041 = vld [vmem:[%s2001 + $0x138] sm:$0xff]
    %v2042 = vld [vmem:[%s2001 + $0x140] sm:$0xff]
    %v2043 = vld [vmem:[%s2001 + $0x148] sm:$0xff]
    %v2044 = vld [vmem:[%s2001 + $0x150] sm:$0xff]
    %v2045 = vld [vmem:[%s2001 + $0x158] sm:$0xff]
    %v2046 = vld [vmem:[%s2001 + $0x160] sm:$0xff]
    %v2047 = vld [vmem:[%s2001 + $0x168] sm:$0xff]
    %v2048 = vld [vmem:[%s2001 + $0x170] sm:$0xff]
    %v2049 = vld [vmem:[%s2001 + $0x178] sm:$0xff]
    %v2050 = vld [vmem:[%s2001 + $0x180] sm:$0xff]
    %v2051 = vld [vmem:[%s2001 + $0x188] sm:$0xff]
    %v2052 = vld [vmem:[%s2001 + $0x190] sm:$0xff]
    %v2053 = vld [vmem:[%s2001 + $0x198] sm:$0xff]
    %v2054 = vld [vmem:[%s2001 + $0x1a0] sm:$0xff]
    %v2055 = vld [vmem:[%s2001 + $0x1a8] sm:$0xff]
    %v2056 = vld [vmem:[%s2001 + $0x1b0] sm:$0xff]
    %v2057 = vld [vmem:[%s2001 + $0x1b8] sm:$0xff]
    %v2058 = vld [vmem:[%s2001 + $0x1c0] sm:$0xff]
    %v2059 = vld [vmem:[%s2001 + $0x1c8] sm:$0xff]
    %v2060 = vld [vmem:[%s2001 + $0x1d0] sm:$0xff]
    %v2061 = vld [vmem:[%s2001 + $0x1d8] sm:$0xff]
    %v2062 = vld [vmem:[%s2001 + $0x1e0] sm:$0xff]
    %v2063 = vld [vmem:[%s2001 + $0x1e8] sm:$0xff]
    %v2064 = vld [vmem:[%s2001 + $0x1f0] sm:$0xff]
    %v2065 = vld [vmem:[%s2001 + $0x1f8] sm:$0xff]
    %v2130 = vunpack.c.l.b16 %v2002
    %v2131 = vunpack.c.h.b16 %v2002
    %v2132 = vunpack.c.l.b16 %v2003
    %v2133 = vunpack.c.h.b16 %v2003
    %v2134 = vunpack.c.l.b16 %v2004
    %v2135 = vunpack.c.h.b16 %v2004
    %v2136 = vunpack.c.l.b16 %v2005
    %v2137 = vunpack.c.h.b16 %v2005
    %v2138 = vunpack.c.l.b16 %v2006
    %v2139 = vunpack.c.h.b16 %v2006
    %v2140 = vunpack.c.l.b16 %v2007
    %v2141 = vunpack.c.h.b16 %v2007
    %v2142 = vunpack.c.l.b16 %v2008
    %v2143 = vunpack.c.h.b16 %v2008
    %v2144 = vunpack.c.l.b16 %v2009
    %v2145 = vunpack.c.h.b16 %v2009
    %v2146 = vunpack.c.l.b16 %v2010
    %v2147 = vunpack.c.h.b16 %v2010
    %v2148 = vunpack.c.l.b16 %v2011
    %v2149 = vunpack.c.h.b16 %v2011
    %v2150 = vunpack.c.l.b16 %v2012
    %v2151 = vunpack.c.h.b16 %v2012
    %v2152 = vunpack.c.l.b16 %v2013
    %v2153 = vunpack.c.h.b16 %v2013
    %v2154 = vunpack.c.l.b16 %v2014
    %v2155 = vunpack.c.h.b16 %v2014
    %v2156 = vunpack.c.l.b16 %v2015
    %v2157 = vunpack.c.h.b16 %v2015
    %v2158 = vunpack.c.l.b16 %v2016
    %v2159 = vunpack.c.h.b16 %v2016
    %v2160 = vunpack.c.l.b16 %v2017
    %v2161 = vunpack.c.h.b16 %v2017
    %v2162 = vunpack.c.l.b16 %v2018
    %v2163 = vunpack.c.h.b16 %v2018
    %v2164 = vunpack.c.l.b16 %v2019
    %v2165 = vunpack.c.h.b16 %v2019
    %v2166 = vunpack.c.l.b16 %v2020
    %v2167 = vunpack.c.h.b16 %v2020
    %v2168 = vunpack.c.l.b16 %v2021
    %v2169 = vunpack.c.h.b16 %v2021
    %v2170 = vunpack.c.l.b16 %v2022
    %v2171 = vunpack.c.h.b16 %v2022
    %v2172 = vunpack.c.l.b16 %v2023
    %v2173 = vunpack.c.h.b16 %v2023
    %v2174 = vunpack.c.l.b16 %v2024
    %v2175 = vunpack.c.h.b16 %v2024
    %v2176 = vunpack.c.l.b16 %v2025
    %v2177 = vunpack.c.h.b16 %v2025
    %v2178 = vunpack.c.l.b16 %v2026
    %v2179 = vunpack.c.h.b16 %v2026
    %v2180 = vunpack.c.l.b16 %v2027
    %v2181 = vunpack.c.h.b16 %v2027
    %v2182 = vunpack.c.l.b16 %v2028
    %v2183 = vunpack.c.h.b16 %v2028
    %v2184 = vunpack.c.l.b16 %v2029
    %v2185 = vunpack.c.h.b16 %v2029
    %v2186 = vunpack.c.l.b16 %v2030
    %v2187 = vunpack.c.h.b16 %v2030
    %v2188 = vunpack.c.l.b16 %v2031
    %v2189 = vunpack.c.h.b16 %v2031
    %v2190 = vunpack.c.l.b16 %v2032
    %v2191 = vunpack.c.h.b16 %v2032
    %v2192 = vunpack.c.l.b16 %v2033
    %v2193 = vunpack.c.h.b16 %v2033
    %v2194 = vunpack.c.l.b16 %v2034
    %v2195 = vunpack.c.h.b16 %v2034
    %v2196 = vunpack.c.l.b16 %v2035
    %v2197 = vunpack.c.h.b16 %v2035
    %v2198 = vunpack.c.l.b16 %v2036
    %v2199 = vunpack.c.h.b16 %v2036
    %v2200 = vunpack.c.l.b16 %v2037
    %v2201 = vunpack.c.h.b16 %v2037
    %v2202 = vunpack.c.l.b16 %v2038
    %v2203 = vunpack.c.h.b16 %v2038
    %v2204 = vunpack.c.l.b16 %v2039
    %v2205 = vunpack.c.h.b16 %v2039
    %v2206 = vunpack.c.l.b16 %v2040
    %v2207 = vunpack.c.h.b16 %v2040
    %v2208 = vunpack.c.l.b16 %v2041
    %v2209 = vunpack.c.h.b16 %v2041
    %v2210 = vunpack.c.l.b16 %v2042
    %v2211 = vunpack.c.h.b16 %v2042
    %v2212 = vunpack.c.l.b16 %v2043
    %v2213 = vunpack.c.h.b16 %v2043
    %v2214 = vunpack.c.l.b16 %v2044
    %v2215 = vunpack.c.h.b16 %v2044
    %v2216 = vunpack.c.l.b16 %v2045
    %v2217 = vunpack.c.h.b16 %v2045
    %v2218 = vunpack.c.l.b16 %v2046
    %v2219 = vunpack.c.h.b16 %v2046
    %v2220 = vunpack.c.l.b16 %v2047
    %v2221 = vunpack.c.h.b16 %v2047
    %v2222 = vunpack.c.l.b16 %v2048
    %v2223 = vunpack.c.h.b16 %v2048
    %v2224 = vunpack.c.l.b16 %v2049
    %v2225 = vunpack.c.h.b16 %v2049
    %v2226 = vunpack.c.l.b16 %v2050
    %v2227 = vunpack.c.h.b16 %v2050
    %v2228 = vunpack.c.l.b16 %v2051
    %v2229 = vunpack.c.h.b16 %v2051
    %v2230 = vunpack.c.l.b16 %v2052
    %v2231 = vunpack.c.h.b16 %v2052
    %v2232 = vunpack.c.l.b16 %v2053
    %v2233 = vunpack.c.h.b16 %v2053
    %v2234 = vunpack.c.l.b16 %v2054
    %v2235 = vunpack.c.h.b16 %v2054
    %v2236 = vunpack.c.l.b16 %v2055
    %v2237 = vunpack.c.h.b16 %v2055
    %v2238 = vunpack.c.l.b16 %v2056
    %v2239 = vunpack.c.h.b16 %v2056
    %v2240 = vunpack.c.l.b16 %v2057
    %v2241 = vunpack.c.h.b16 %v2057
    %v2242 = vunpack.c.l.b16 %v2058
    %v2243 = vunpack.c.h.b16 %v2058
    %v2244 = vunpack.c.l.b16 %v2059
    %v2245 = vunpack.c.h.b16 %v2059
    %v2246 = vunpack.c.l.b16 %v2060
    %v2247 = vunpack.c.h.b16 %v2060
    %v2248 = vunpack.c.l.b16 %v2061
    %v2249 = vunpack.c.h.b16 %v2061
    %v2250 = vunpack.c.l.b16 %v2062
    %v2251 = vunpack.c.h.b16 %v2062
    %v2252 = vunpack.c.l.b16 %v2063
    %v2253 = vunpack.c.h.b16 %v2063
    %v2254 = vunpack.c.l.b16 %v2064
    %v2255 = vunpack.c.h.b16 %v2064
    %v2256 = vunpack.c.l.b16 %v2065
    %v2257 = vunpack.c.h.b16 %v2065
    %v2258 = vpack.c.b16 %v2134, %v2130
    %v2259 = vpack.c.b16 %v2135, %v2131
    %v2260 = vpack.c.b16 %v2136, %v2132
    %v2261 = vpack.c.b16 %v2137, %v2133
    %v2262 = vpack.c.b16 %v2142, %v2138
    %v2263 = vpack.c.b16 %v2143, %v2139
    %v2264 = vpack.c.b16 %v2144, %v2140
    %v2265 = vpack.c.b16 %v2145, %v2141
    %v2266 = vpack.c.b16 %v2150, %v2146
    %v2267 = vpack.c.b16 %v2151, %v2147
    %v2268 = vpack.c.b16 %v2152, %v2148
    %v2269 = vpack.c.b16 %v2153, %v2149
    %v2270 = vpack.c.b16 %v2158, %v2154
    %v2271 = vpack.c.b16 %v2159, %v2155
    %v2272 = vpack.c.b16 %v2160, %v2156
    %v2273 = vpack.c.b16 %v2161, %v2157
    %v2274 = vpack.c.b16 %v2166, %v2162
    %v2275 = vpack.c.b16 %v2167, %v2163
    %v2276 = vpack.c.b16 %v2168, %v2164
    %v2277 = vpack.c.b16 %v2169, %v2165
    %v2278 = vpack.c.b16 %v2174, %v2170
    %v2279 = vpack.c.b16 %v2175, %v2171
    %v2280 = vpack.c.b16 %v2176, %v2172
    %v2281 = vpack.c.b16 %v2177, %v2173
    %v2282 = vpack.c.b16 %v2182, %v2178
    %v2283 = vpack.c.b16 %v2183, %v2179
    %v2284 = vpack.c.b16 %v2184, %v2180
    %v2285 = vpack.c.b16 %v2185, %v2181
    %v2286 = vpack.c.b16 %v2190, %v2186
    %v2287 = vpack.c.b16 %v2191, %v2187
    %v2288 = vpack.c.b16 %v2192, %v2188
    %v2289 = vpack.c.b16 %v2193, %v2189
    %v2290 = vpack.c.b16 %v2198, %v2194
    %v2291 = vpack.c.b16 %v2199, %v2195
    %v2292 = vpack.c.b16 %v2200, %v2196
    %v2293 = vpack.c.b16 %v2201, %v2197
    %v2294 = vpack.c.b16 %v2206, %v2202
    %v2295 = vpack.c.b16 %v2207, %v2203
    %v2296 = vpack.c.b16 %v2208, %v2204
    %v2297 = vpack.c.b16 %v2209, %v2205
    %v2298 = vpack.c.b16 %v2214, %v2210
    %v2299 = vpack.c.b16 %v2215, %v2211
    %v2300 = vpack.c.b16 %v2216, %v2212
    %v2301 = vpack.c.b16 %v2217, %v2213
    %v2302 = vpack.c.b16 %v2222, %v2218
    %v2303 = vpack.c.b16 %v2223, %v2219
    %v2304 = vpack.c.b16 %v2224, %v2220
    %v2305 = vpack.c.b16 %v2225, %v2221
    %v2306 = vpack.c.b16 %v2230, %v2226
    %v2307 = vpack.c.b16 %v2231, %v2227
    %v2308 = vpack.c.b16 %v2232, %v2228
    %v2309 = vpack.c.b16 %v2233, %v2229
    %v2310 = vpack.c.b16 %v2238, %v2234
    %v2311 = vpack.c.b16 %v2239, %v2235
    %v2312 = vpack.c.b16 %v2240, %v2236
    %v2313 = vpack.c.b16 %v2241, %v2237
    %v2314 = vpack.c.b16 %v2246, %v2242
    %v2315 = vpack.c.b16 %v2247, %v2243
    %v2316 = vpack.c.b16 %v2248, %v2244
    %v2317 = vpack.c.b16 %v2249, %v2245
    %v2318 = vpack.c.b16 %v2254, %v2250
    %v2319 = vpack.c.b16 %v2255, %v2251
    %v2320 = vpack.c.b16 %v2256, %v2252
    %v2321 = vpack.c.b16 %v2257, %v2253
    %2386 = vmatprep.subr.bf16.mxu0 %v2287
    %2387 = vmatpush1.bf16.msra.mxu0 %v2286
    %2388 = vmatprep.subr.bf16.mxu0 %v2283
    %2389 = vmatpush1.bf16.msra.mxu0 %v2282
    %2390 = vmatprep.subr.bf16.mxu0 %v2279
    %2391 = vmatpush1.bf16.msra.mxu0 %v2278
    %2392 = vmatprep.subr.bf16.mxu0 %v2275
    %2393 = vmatpush1.bf16.msra.mxu0 %v2274
    %2394 = vmatprep.subr.bf16.mxu0 %v2271
    %2395 = vmatpush1.bf16.msra.mxu0 %v2270
    %2396 = vmatprep.subr.bf16.mxu0 %v2267
    %2397 = vmatpush1.bf16.msra.mxu0 %v2266
    %2398 = vmatprep.subr.bf16.mxu0 %v2263
    %2399 = vmatpush1.bf16.msra.mxu0 %v2262
    %2400 = vmatprep.subr.bf16.mxu0 %v2259
    %2401 = vmatpush1.bf16.msra.mxu0 %v2258
    %2402 = vmatprep.subr.bf16.mxu0 %v2319
    %2403 = vmatpush2.bf16.msra.mxu0 %v2318
    %2404 = vmatprep.subr.bf16.mxu0 %v2315
    %2405 = vmatpush2.bf16.msra.mxu0 %v2314
    %2406 = vmatprep.subr.bf16.mxu0 %v2311
    %2407 = vmatpush2.bf16.msra.mxu0 %v2310
    %2408 = vmatprep.subr.bf16.mxu0 %v2307
    %2409 = vmatpush2.bf16.msra.mxu0 %v2306
    %2410 = vmatprep.subr.bf16.mxu0 %v2303
    %2411 = vmatpush2.bf16.msra.mxu0 %v2302
    %2412 = vmatprep.subr.bf16.mxu0 %v2299
    %2413 = vmatpush2.bf16.msra.mxu0 %v2298
    %2414 = vmatprep.subr.bf16.mxu0 %v2295
    %2415 = vmatpush2.bf16.msra.mxu0 %v2294
    %2416 = vmatprep.subr.bf16.mxu0 %v2291
    %2417 = vmatpush2.bf16.msra.mxu0 %v2290
    %2418 = vmatprep.mubr.bf16.mxu0 %v1998
    %2419 = vmatmul.mubr.bf16.gmra.mxu0 %v1997
    %v2420 = vpop.f32.mrf.mxu0
    %v2421 = vadd.f32 0.0, %v2420
    %v2422 = vpop.f32.mrf.mxu0
    %v2423 = vadd.f32 0.0, %v2422
    %v2424 = vpop.f32.mrf.mxu0
    %v2425 = vadd.f32 0.0, %v2424
    %v2426 = vpop.f32.mrf.mxu0
    %v2427 = vadd.f32 0.0, %v2426
    %2428 = vmatprep.mubr.bf16.mxu0 %v2000
    %2429 = vmatmul.mubr.bf16.gmra.mxu0 %v1999
    %v2430 = vpop.f32.mrf.mxu0
    %v2431 = vadd.f32 0.0, %v2430
    %v2432 = vpop.f32.mrf.mxu0
    %v2433 = vadd.f32 0.0, %v2432
    %v2434 = vpop.f32.mrf.mxu0
    %v2435 = vadd.f32 0.0, %v2434
    %v2436 = vpop.f32.mrf.mxu0
    %v2437 = vadd.f32 0.0, %v2436
    %2438 = vdwg.mxu0
    %2439 = vmatprep.subr.bf16.mxu0 %v2289
    %2440 = vmatpush1.bf16.msra.mxu0 %v2288
    %2441 = vmatprep.subr.bf16.mxu0 %v2285
    %2442 = vmatpush1.bf16.msra.mxu0 %v2284
    %2443 = vmatprep.subr.bf16.mxu0 %v2281
    %2444 = vmatpush1.bf16.msra.mxu0 %v2280
    %2445 = vmatprep.subr.bf16.mxu0 %v2277
    %2446 = vmatpush1.bf16.msra.mxu0 %v2276
    %2447 = vmatprep.subr.bf16.mxu0 %v2273
    %2448 = vmatpush1.bf16.msra.mxu0 %v2272
    %2449 = vmatprep.subr.bf16.mxu0 %v2269
    %2450 = vmatpush1.bf16.msra.mxu0 %v2268
    %2451 = vmatprep.subr.bf16.mxu0 %v2265
    %2452 = vmatpush1.bf16.msra.mxu0 %v2264
    %2453 = vmatprep.subr.bf16.mxu0 %v2261
    %2454 = vmatpush1.bf16.msra.mxu0 %v2260
    %2455 = vmatprep.subr.bf16.mxu0 %v2321
    %2456 = vmatpush2.bf16.msra.mxu0 %v2320
    %2457 = vmatprep.subr.bf16.mxu0 %v2317
    %2458 = vmatpush2.bf16.msra.mxu0 %v2316
    %2459 = vmatprep.subr.bf16.mxu0 %v2313
    %2460 = vmatpush2.bf16.msra.mxu0 %v2312
    %2461 = vmatprep.subr.bf16.mxu0 %v2309
    %2462 = vmatpush2.bf16.msra.mxu0 %v2308
    %2463 = vmatprep.subr.bf16.mxu0 %v2305
    %2464 = vmatpush2.bf16.msra.mxu0 %v2304
    %2465 = vmatprep.subr.bf16.mxu0 %v2301
    %2466 = vmatpush2.bf16.msra.mxu0 %v2300
    %2467 = vmatprep.subr.bf16.mxu0 %v2297
    %2468 = vmatpush2.bf16.msra.mxu0 %v2296
    %2469 = vmatprep.subr.bf16.mxu0 %v2293
    %2470 = vmatpush2.bf16.msra.mxu0 %v2292
    %2471 = vmatprep.mubr.bf16.mxu0 %v1998
    %2472 = vmatmul.mubr.bf16.gmra.mxu0 %v1997
    %v2473 = vpop.f32.mrf.mxu0
    %v2474 = vadd.f32 0.0, %v2473
    %v2475 = vpop.f32.mrf.mxu0
    %v2476 = vadd.f32 0.0, %v2475
    %v2477 = vpop.f32.mrf.mxu0
    %v2478 = vadd.f32 0.0, %v2477
    %v2479 = vpop.f32.mrf.mxu0
    %v2480 = vadd.f32 0.0, %v2479
    %2481 = vmatprep.mubr.bf16.mxu0 %v2000
    %2482 = vmatmul.mubr.bf16.gmra.mxu0 %v1999
    %v2483 = vpop.f32.mrf.mxu0
    %v2484 = vadd.f32 0.0, %v2483
    %v2485 = vpop.f32.mrf.mxu0
    %v2486 = vadd.f32 0.0, %v2485
    %v2487 = vpop.f32.mrf.mxu0
    %v2488 = vadd.f32 0.0, %v2487
    %v2489 = vpop.f32.mrf.mxu0
    %v2490 = vadd.f32 0.0, %v2489
    %2491 = vdwg.mxu0
    %v2556 = vunpack.c.l.b16 %v1933
    %v2557 = vunpack.c.h.b16 %v1933
    %v2558 = vunpack.c.l.b16 %v1934
    %v2559 = vunpack.c.h.b16 %v1934
    %v2560 = vunpack.c.l.b16 %v1935
    %v2561 = vunpack.c.h.b16 %v1935
    %v2562 = vunpack.c.l.b16 %v1936
    %v2563 = vunpack.c.h.b16 %v1936
    %v2564 = vunpack.c.l.b16 %v1937
    %v2565 = vunpack.c.h.b16 %v1937
    %v2566 = vunpack.c.l.b16 %v1938
    %v2567 = vunpack.c.h.b16 %v1938
    %v2568 = vunpack.c.l.b16 %v1939
    %v2569 = vunpack.c.h.b16 %v1939
    %v2570 = vunpack.c.l.b16 %v1940
    %v2571 = vunpack.c.h.b16 %v1940
    %v2572 = vunpack.c.l.b16 %v1941
    %v2573 = vunpack.c.h.b16 %v1941
    %v2574 = vunpack.c.l.b16 %v1942
    %v2575 = vunpack.c.h.b16 %v1942
    %v2576 = vunpack.c.l.b16 %v1943
    %v2577 = vunpack.c.h.b16 %v1943
    %v2578 = vunpack.c.l.b16 %v1944
    %v2579 = vunpack.c.h.b16 %v1944
    %v2580 = vunpack.c.l.b16 %v1945
    %v2581 = vunpack.c.h.b16 %v1945
    %v2582 = vunpack.c.l.b16 %v1946
    %v2583 = vunpack.c.h.b16 %v1946
    %v2584 = vunpack.c.l.b16 %v1947
    %v2585 = vunpack.c.h.b16 %v1947
    %v2586 = vunpack.c.l.b16 %v1948
    %v2587 = vunpack.c.h.b16 %v1948
    %v2588 = vunpack.c.l.b16 %v1949
    %v2589 = vunpack.c.h.b16 %v1949
    %v2590 = vunpack.c.l.b16 %v1950
    %v2591 = vunpack.c.h.b16 %v1950
    %v2592 = vunpack.c.l.b16 %v1951
    %v2593 = vunpack.c.h.b16 %v1951
    %v2594 = vunpack.c.l.b16 %v1952
    %v2595 = vunpack.c.h.b16 %v1952
    %v2596 = vunpack.c.l.b16 %v1953
    %v2597 = vunpack.c.h.b16 %v1953
    %v2598 = vunpack.c.l.b16 %v1954
    %v2599 = vunpack.c.h.b16 %v1954
    %v2600 = vunpack.c.l.b16 %v1955
    %v2601 = vunpack.c.h.b16 %v1955
    %v2602 = vunpack.c.l.b16 %v1956
    %v2603 = vunpack.c.h.b16 %v1956
    %v2604 = vunpack.c.l.b16 %v1957
    %v2605 = vunpack.c.h.b16 %v1957
    %v2606 = vunpack.c.l.b16 %v1958
    %v2607 = vunpack.c.h.b16 %v1958
    %v2608 = vunpack.c.l.b16 %v1959
    %v2609 = vunpack.c.h.b16 %v1959
    %v2610 = vunpack.c.l.b16 %v1960
    %v2611 = vunpack.c.h.b16 %v1960
    %v2612 = vunpack.c.l.b16 %v1961
    %v2613 = vunpack.c.h.b16 %v1961
    %v2614 = vunpack.c.l.b16 %v1962
    %v2615 = vunpack.c.h.b16 %v1962
    %v2616 = vunpack.c.l.b16 %v1963
    %v2617 = vunpack.c.h.b16 %v1963
    %v2618 = vunpack.c.l.b16 %v1964
    %v2619 = vunpack.c.h.b16 %v1964
    %v2620 = vunpack.c.l.b16 %v1965
    %v2621 = vunpack.c.h.b16 %v1965
    %v2622 = vunpack.c.l.b16 %v1966
    %v2623 = vunpack.c.h.b16 %v1966
    %v2624 = vunpack.c.l.b16 %v1967
    %v2625 = vunpack.c.h.b16 %v1967
    %v2626 = vunpack.c.l.b16 %v1968
    %v2627 = vunpack.c.h.b16 %v1968
    %v2628 = vunpack.c.l.b16 %v1969
    %v2629 = vunpack.c.h.b16 %v1969
    %v2630 = vunpack.c.l.b16 %v1970
    %v2631 = vunpack.c.h.b16 %v1970
    %v2632 = vunpack.c.l.b16 %v1971
    %v2633 = vunpack.c.h.b16 %v1971
    %v2634 = vunpack.c.l.b16 %v1972
    %v2635 = vunpack.c.h.b16 %v1972
    %v2636 = vunpack.c.l.b16 %v1973
    %v2637 = vunpack.c.h.b16 %v1973
    %v2638 = vunpack.c.l.b16 %v1974
    %v2639 = vunpack.c.h.b16 %v1974
    %v2640 = vunpack.c.l.b16 %v1975
    %v2641 = vunpack.c.h.b16 %v1975
    %v2642 = vunpack.c.l.b16 %v1976
    %v2643 = vunpack.c.h.b16 %v1976
    %v2644 = vunpack.c.l.b16 %v1977
    %v2645 = vunpack.c.h.b16 %v1977
    %v2646 = vunpack.c.l.b16 %v1978
    %v2647 = vunpack.c.h.b16 %v1978
    %v2648 = vunpack.c.l.b16 %v1979
    %v2649 = vunpack.c.h.b16 %v1979
    %v2650 = vunpack.c.l.b16 %v1980
    %v2651 = vunpack.c.h.b16 %v1980
    %v2652 = vunpack.c.l.b16 %v1981
    %v2653 = vunpack.c.h.b16 %v1981
    %v2654 = vunpack.c.l.b16 %v1982
    %v2655 = vunpack.c.h.b16 %v1982
    %v2656 = vunpack.c.l.b16 %v1983
    %v2657 = vunpack.c.h.b16 %v1983
    %v2658 = vunpack.c.l.b16 %v1984
    %v2659 = vunpack.c.h.b16 %v1984
    %v2660 = vunpack.c.l.b16 %v1985
    %v2661 = vunpack.c.h.b16 %v1985
    %v2662 = vunpack.c.l.b16 %v1986
    %v2663 = vunpack.c.h.b16 %v1986
    %v2664 = vunpack.c.l.b16 %v1987
    %v2665 = vunpack.c.h.b16 %v1987
    %v2666 = vunpack.c.l.b16 %v1988
    %v2667 = vunpack.c.h.b16 %v1988
    %v2668 = vunpack.c.l.b16 %v1989
    %v2669 = vunpack.c.h.b16 %v1989
    %v2670 = vunpack.c.l.b16 %v1990
    %v2671 = vunpack.c.h.b16 %v1990
    %v2672 = vunpack.c.l.b16 %v1991
    %v2673 = vunpack.c.h.b16 %v1991
    %v2674 = vunpack.c.l.b16 %v1992
    %v2675 = vunpack.c.h.b16 %v1992
    %v2676 = vunpack.c.l.b16 %v1993
    %v2677 = vunpack.c.h.b16 %v1993
    %v2678 = vunpack.c.l.b16 %v1994
    %v2679 = vunpack.c.h.b16 %v1994
    %v2680 = vunpack.c.l.b16 %v1995
    %v2681 = vunpack.c.h.b16 %v1995
    %v2682 = vunpack.c.l.b16 %v1996
    %v2683 = vunpack.c.h.b16 %v1996
    %v2684 = vpack.c.b16 %v2560, %v2556
    %v2685 = vpack.c.b16 %v2561, %v2557
    %v2686 = vpack.c.b16 %v2562, %v2558
    %v2687 = vpack.c.b16 %v2563, %v2559
    %v2688 = vpack.c.b16 %v2568, %v2564
    %v2689 = vpack.c.b16 %v2569, %v2565
    %v2690 = vpack.c.b16 %v2570, %v2566
    %v2691 = vpack.c.b16 %v2571, %v2567
    %v2692 = vpack.c.b16 %v2576, %v2572
    %v2693 = vpack.c.b16 %v2577, %v2573
    %v2694 = vpack.c.b16 %v2578, %v2574
    %v2695 = vpack.c.b16 %v2579, %v2575
    %v2696 = vpack.c.b16 %v2584, %v2580
    %v2697 = vpack.c.b16 %v2585, %v2581
    %v2698 = vpack.c.b16 %v2586, %v2582
    %v2699 = vpack.c.b16 %v2587, %v2583
    %v2700 = vpack.c.b16 %v2592, %v2588
    %v2701 = vpack.c.b16 %v2593, %v2589
    %v2702 = vpack.c.b16 %v2594, %v2590
    %v2703 = vpack.c.b16 %v2595, %v2591
    %v2704 = vpack.c.b16 %v2600, %v2596
    %v2705 = vpack.c.b16 %v2601, %v2597
    %v2706 = vpack.c.b16 %v2602, %v2598
    %v2707 = vpack.c.b16 %v2603, %v2599
    %v2708 = vpack.c.b16 %v2608, %v2604
    %v2709 = vpack.c.b16 %v2609, %v2605
    %v2710 = vpack.c.b16 %v2610, %v2606
    %v2711 = vpack.c.b16 %v2611, %v2607
    %v2712 = vpack.c.b16 %v2616, %v2612
    %v2713 = vpack.c.b16 %v2617, %v2613
    %v2714 = vpack.c.b16 %v2618, %v2614
    %v2715 = vpack.c.b16 %v2619, %v2615
    %v2716 = vpack.c.b16 %v2624, %v2620
    %v2717 = vpack.c.b16 %v2625, %v2621
    %v2718 = vpack.c.b16 %v2626, %v2622
    %v2719 = vpack.c.b16 %v2627, %v2623
    %v2720 = vpack.c.b16 %v2632, %v2628
    %v2721 = vpack.c.b16 %v2633, %v2629
    %v2722 = vpack.c.b16 %v2634, %v2630
    %v2723 = vpack.c.b16 %v2635, %v2631
    %v2724 = vpack.c.b16 %v2640, %v2636
    %v2725 = vpack.c.b16 %v2641, %v2637
    %v2726 = vpack.c.b16 %v2642, %v2638
    %v2727 = vpack.c.b16 %v2643, %v2639
    %v2728 = vpack.c.b16 %v2648, %v2644
    %v2729 = vpack.c.b16 %v2649, %v2645
    %v2730 = vpack.c.b16 %v2650, %v2646
    %v2731 = vpack.c.b16 %v2651, %v2647
    %v2732 = vpack.c.b16 %v2656, %v2652
    %v2733 = vpack.c.b16 %v2657, %v2653
    %v2734 = vpack.c.b16 %v2658, %v2654
    %v2735 = vpack.c.b16 %v2659, %v2655
    %v2736 = vpack.c.b16 %v2664, %v2660
    %v2737 = vpack.c.b16 %v2665, %v2661
    %v2738 = vpack.c.b16 %v2666, %v2662
    %v2739 = vpack.c.b16 %v2667, %v2663
    %v2740 = vpack.c.b16 %v2672, %v2668
    %v2741 = vpack.c.b16 %v2673, %v2669
    %v2742 = vpack.c.b16 %v2674, %v2670
    %v2743 = vpack.c.b16 %v2675, %v2671
    %v2744 = vpack.c.b16 %v2680, %v2676
    %v2745 = vpack.c.b16 %v2681, %v2677
    %v2746 = vpack.c.b16 %v2682, %v2678
    %v2747 = vpack.c.b16 %v2683, %v2679
    %2812 = vmatprep.subr.bf16.mxu0 %v2713
    %2813 = vmatpush1.bf16.msra.mxu0 %v2712
    %2814 = vmatprep.subr.bf16.mxu0 %v2709
    %2815 = vmatpush1.bf16.msra.mxu0 %v2708
    %2816 = vmatprep.subr.bf16.mxu0 %v2705
    %2817 = vmatpush1.bf16.msra.mxu0 %v2704
    %2818 = vmatprep.subr.bf16.mxu0 %v2701
    %2819 = vmatpush1.bf16.msra.mxu0 %v2700
    %2820 = vmatprep.subr.bf16.mxu0 %v2697
    %2821 = vmatpush1.bf16.msra.mxu0 %v2696
    %2822 = vmatprep.subr.bf16.mxu0 %v2693
    %2823 = vmatpush1.bf16.msra.mxu0 %v2692
    %2824 = vmatprep.subr.bf16.mxu0 %v2689
    %2825 = vmatpush1.bf16.msra.mxu0 %v2688
    %2826 = vmatprep.subr.bf16.mxu0 %v2685
    %2827 = vmatpush1.bf16.msra.mxu0 %v2684
    %2828 = vmatprep.subr.bf16.mxu0 %v2745
    %2829 = vmatpush2.bf16.msra.mxu0 %v2744
    %2830 = vmatprep.subr.bf16.mxu0 %v2741
    %2831 = vmatpush2.bf16.msra.mxu0 %v2740
    %2832 = vmatprep.subr.bf16.mxu0 %v2737
    %2833 = vmatpush2.bf16.msra.mxu0 %v2736
    %2834 = vmatprep.subr.bf16.mxu0 %v2733
    %2835 = vmatpush2.bf16.msra.mxu0 %v2732
    %2836 = vmatprep.subr.bf16.mxu0 %v2729
    %2837 = vmatpush2.bf16.msra.mxu0 %v2728
    %2838 = vmatprep.subr.bf16.mxu0 %v2725
    %2839 = vmatpush2.bf16.msra.mxu0 %v2724
    %2840 = vmatprep.subr.bf16.mxu0 %v2721
    %2841 = vmatpush2.bf16.msra.mxu0 %v2720
    %2842 = vmatprep.subr.bf16.mxu0 %v2717
    %2843 = vmatpush2.bf16.msra.mxu0 %v2716
    %2844 = vmatprep.mubr.bf16.mxu0 %v1930
    %2845 = vmatmul.mubr.bf16.gmra.mxu0 %v1929
    %v2846 = vpop.f32.mrf.mxu0
    %v2847 = vadd.f32 %v2421, %v2846
    %v2848 = vpop.f32.mrf.mxu0
    %v2849 = vadd.f32 %v2423, %v2848
    %v2850 = vpop.f32.mrf.mxu0
    %v2851 = vadd.f32 %v2425, %v2850
    %v2852 = vpop.f32.mrf.mxu0
    %v2853 = vadd.f32 %v2427, %v2852
    %2854 = vmatprep.mubr.bf16.mxu0 %v1932
    %2855 = vmatmul.mubr.bf16.gmra.mxu0 %v1931
    %v2856 = vpop.f32.mrf.mxu0
    %v2857 = vadd.f32 %v2431, %v2856
    %v2858 = vpop.f32.mrf.mxu0
    %v2859 = vadd.f32 %v2433, %v2858
    %v2860 = vpop.f32.mrf.mxu0
    %v2861 = vadd.f32 %v2435, %v2860
    %v2862 = vpop.f32.mrf.mxu0
    %v2863 = vadd.f32 %v2437, %v2862
    %2864 = vdwg.mxu0
    %2865 = vmatprep.subr.bf16.mxu0 %v2715
    %2866 = vmatpush1.bf16.msra.mxu0 %v2714
    %2867 = vmatprep.subr.bf16.mxu0 %v2711
    %2868 = vmatpush1.bf16.msra.mxu0 %v2710
    %2869 = vmatprep.subr.bf16.mxu0 %v2707
    %2870 = vmatpush1.bf16.msra.mxu0 %v2706
    %2871 = vmatprep.subr.bf16.mxu0 %v2703
    %2872 = vmatpush1.bf16.msra.mxu0 %v2702
    %2873 = vmatprep.subr.bf16.mxu0 %v2699
    %2874 = vmatpush1.bf16.msra.mxu0 %v2698
    %2875 = vmatprep.subr.bf16.mxu0 %v2695
    %2876 = vmatpush1.bf16.msra.mxu0 %v2694
    %2877 = vmatprep.subr.bf16.mxu0 %v2691
    %2878 = vmatpush1.bf16.msra.mxu0 %v2690
    %2879 = vmatprep.subr.bf16.mxu0 %v2687
    %2880 = vmatpush1.bf16.msra.mxu0 %v2686
    %2881 = vmatprep.subr.bf16.mxu0 %v2747
    %2882 = vmatpush2.bf16.msra.mxu0 %v2746
    %2883 = vmatprep.subr.bf16.mxu0 %v2743
    %2884 = vmatpush2.bf16.msra.mxu0 %v2742
    %2885 = vmatprep.subr.bf16.mxu0 %v2739
    %2886 = vmatpush2.bf16.msra.mxu0 %v2738
    %2887 = vmatprep.subr.bf16.mxu0 %v2735
    %2888 = vmatpush2.bf16.msra.mxu0 %v2734
    %2889 = vmatprep.subr.bf16.mxu0 %v2731
    %2890 = vmatpush2.bf16.msra.mxu0 %v2730
    %2891 = vmatprep.subr.bf16.mxu0 %v2727
    %2892 = vmatpush2.bf16.msra.mxu0 %v2726
    %2893 = vmatprep.subr.bf16.mxu0 %v2723
    %2894 = vmatpush2.bf16.msra.mxu0 %v2722
    %2895 = vmatprep.subr.bf16.mxu0 %v2719
    %2896 = vmatpush2.bf16.msra.mxu0 %v2718
    %2897 = vmatprep.mubr.bf16.mxu0 %v1930
    %2898 = vmatmul.mubr.bf16.gmra.mxu0 %v1929
    %v2899 = vpop.f32.mrf.mxu0
    %v2900 = vadd.f32 %v2474, %v2899
    %v2901 = vpop.f32.mrf.mxu0
    %v2902 = vadd.f32 %v2476, %v2901
    %v2903 = vpop.f32.mrf.mxu0
    %v2904 = vadd.f32 %v2478, %v2903
    %v2905 = vpop.f32.mrf.mxu0
    %v2906 = vadd.f32 %v2480, %v2905
    %2907 = vmatprep.mubr.bf16.mxu0 %v1932
    %2908 = vmatmul.mubr.bf16.gmra.mxu0 %v1931
    %v2909 = vpop.f32.mrf.mxu0
    %v2910 = vadd.f32 %v2484, %v2909
    %v2911 = vpop.f32.mrf.mxu0
    %v2912 = vadd.f32 %v2486, %v2911
    %v2913 = vpop.f32.mrf.mxu0
    %v2914 = vadd.f32 %v2488, %v2913
    %v2915 = vpop.f32.mrf.mxu0
    %v2916 = vadd.f32 %v2490, %v2915
    %2917 = vdwg.mxu0
    %v2918 = vpack.c.bf16 %v1923, %v1921
    %v2919 = vpack.c.bf16 %v1924, %v1922
    %v2920 = vpack.c.bf16 %v1927, %v1925
    %v2921 = vpack.c.bf16 %v1928, %v1926
    %s2922 = scalar_lea.vmem [#allocation6], 1024
    %v2923 = vld [vmem:[%s2922] sm:$0xff]
    %v2924 = vld [vmem:[%s2922 + $0x8] sm:$0xff]
    %v2925 = vld [vmem:[%s2922 + $0x10] sm:$0xff]
    %v2926 = vld [vmem:[%s2922 + $0x18] sm:$0xff]
    %v2927 = vld [vmem:[%s2922 + $0x20] sm:$0xff]
    %v2928 = vld [vmem:[%s2922 + $0x28] sm:$0xff]
    %v2929 = vld [vmem:[%s2922 + $0x30] sm:$0xff]
    %v2930 = vld [vmem:[%s2922 + $0x38] sm:$0xff]
    %v2931 = vld [vmem:[%s2922 + $0x40] sm:$0xff]
    %v2932 = vld [vmem:[%s2922 + $0x48] sm:$0xff]
    %v2933 = vld [vmem:[%s2922 + $0x50] sm:$0xff]
    %v2934 = vld [vmem:[%s2922 + $0x58] sm:$0xff]
    %v2935 = vld [vmem:[%s2922 + $0x60] sm:$0xff]
    %v2936 = vld [vmem:[%s2922 + $0x68] sm:$0xff]
    %v2937 = vld [vmem:[%s2922 + $0x70] sm:$0xff]
    %v2938 = vld [vmem:[%s2922 + $0x78] sm:$0xff]
    %v2939 = vld [vmem:[%s2922 + $0x80] sm:$0xff]
    %v2940 = vld [vmem:[%s2922 + $0x88] sm:$0xff]
    %v2941 = vld [vmem:[%s2922 + $0x90] sm:$0xff]
    %v2942 = vld [vmem:[%s2922 + $0x98] sm:$0xff]
    %v2943 = vld [vmem:[%s2922 + $0xa0] sm:$0xff]
    %v2944 = vld [vmem:[%s2922 + $0xa8] sm:$0xff]
    %v2945 = vld [vmem:[%s2922 + $0xb0] sm:$0xff]
    %v2946 = vld [vmem:[%s2922 + $0xb8] sm:$0xff]
    %v2947 = vld [vmem:[%s2922 + $0xc0] sm:$0xff]
    %v2948 = vld [vmem:[%s2922 + $0xc8] sm:$0xff]
    %v2949 = vld [vmem:[%s2922 + $0xd0] sm:$0xff]
    %v2950 = vld [vmem:[%s2922 + $0xd8] sm:$0xff]
    %v2951 = vld [vmem:[%s2922 + $0xe0] sm:$0xff]
    %v2952 = vld [vmem:[%s2922 + $0xe8] sm:$0xff]
    %v2953 = vld [vmem:[%s2922 + $0xf0] sm:$0xff]
    %v2954 = vld [vmem:[%s2922 + $0xf8] sm:$0xff]
    %v2955 = vld [vmem:[%s2922 + $0x100] sm:$0xff]
    %v2956 = vld [vmem:[%s2922 + $0x108] sm:$0xff]
    %v2957 = vld [vmem:[%s2922 + $0x110] sm:$0xff]
    %v2958 = vld [vmem:[%s2922 + $0x118] sm:$0xff]
    %v2959 = vld [vmem:[%s2922 + $0x120] sm:$0xff]
    %v2960 = vld [vmem:[%s2922 + $0x128] sm:$0xff]
    %v2961 = vld [vmem:[%s2922 + $0x130] sm:$0xff]
    %v2962 = vld [vmem:[%s2922 + $0x138] sm:$0xff]
    %v2963 = vld [vmem:[%s2922 + $0x140] sm:$0xff]
    %v2964 = vld [vmem:[%s2922 + $0x148] sm:$0xff]
    %v2965 = vld [vmem:[%s2922 + $0x150] sm:$0xff]
    %v2966 = vld [vmem:[%s2922 + $0x158] sm:$0xff]
    %v2967 = vld [vmem:[%s2922 + $0x160] sm:$0xff]
    %v2968 = vld [vmem:[%s2922 + $0x168] sm:$0xff]
    %v2969 = vld [vmem:[%s2922 + $0x170] sm:$0xff]
    %v2970 = vld [vmem:[%s2922 + $0x178] sm:$0xff]
    %v2971 = vld [vmem:[%s2922 + $0x180] sm:$0xff]
    %v2972 = vld [vmem:[%s2922 + $0x188] sm:$0xff]
    %v2973 = vld [vmem:[%s2922 + $0x190] sm:$0xff]
    %v2974 = vld [vmem:[%s2922 + $0x198] sm:$0xff]
    %v2975 = vld [vmem:[%s2922 + $0x1a0] sm:$0xff]
    %v2976 = vld [vmem:[%s2922 + $0x1a8] sm:$0xff]
    %v2977 = vld [vmem:[%s2922 + $0x1b0] sm:$0xff]
    %v2978 = vld [vmem:[%s2922 + $0x1b8] sm:$0xff]
    %v2979 = vld [vmem:[%s2922 + $0x1c0] sm:$0xff]
    %v2980 = vld [vmem:[%s2922 + $0x1c8] sm:$0xff]
    %v2981 = vld [vmem:[%s2922 + $0x1d0] sm:$0xff]
    %v2982 = vld [vmem:[%s2922 + $0x1d8] sm:$0xff]
    %v2983 = vld [vmem:[%s2922 + $0x1e0] sm:$0xff]
    %v2984 = vld [vmem:[%s2922 + $0x1e8] sm:$0xff]
    %v2985 = vld [vmem:[%s2922 + $0x1f0] sm:$0xff]
    %v2986 = vld [vmem:[%s2922 + $0x1f8] sm:$0xff]
    %v3051 = vunpack.c.l.b16 %v2923
    %v3052 = vunpack.c.h.b16 %v2923
    %v3053 = vunpack.c.l.b16 %v2924
    %v3054 = vunpack.c.h.b16 %v2924
    %v3055 = vunpack.c.l.b16 %v2925
    %v3056 = vunpack.c.h.b16 %v2925
    %v3057 = vunpack.c.l.b16 %v2926
    %v3058 = vunpack.c.h.b16 %v2926
    %v3059 = vunpack.c.l.b16 %v2927
    %v3060 = vunpack.c.h.b16 %v2927
    %v3061 = vunpack.c.l.b16 %v2928
    %v3062 = vunpack.c.h.b16 %v2928
    %v3063 = vunpack.c.l.b16 %v2929
    %v3064 = vunpack.c.h.b16 %v2929
    %v3065 = vunpack.c.l.b16 %v2930
    %v3066 = vunpack.c.h.b16 %v2930
    %v3067 = vunpack.c.l.b16 %v2931
    %v3068 = vunpack.c.h.b16 %v2931
    %v3069 = vunpack.c.l.b16 %v2932
    %v3070 = vunpack.c.h.b16 %v2932
    %v3071 = vunpack.c.l.b16 %v2933
    %v3072 = vunpack.c.h.b16 %v2933
    %v3073 = vunpack.c.l.b16 %v2934
    %v3074 = vunpack.c.h.b16 %v2934
    %v3075 = vunpack.c.l.b16 %v2935
    %v3076 = vunpack.c.h.b16 %v2935
    %v3077 = vunpack.c.l.b16 %v2936
    %v3078 = vunpack.c.h.b16 %v2936
    %v3079 = vunpack.c.l.b16 %v2937
    %v3080 = vunpack.c.h.b16 %v2937
    %v3081 = vunpack.c.l.b16 %v2938
    %v3082 = vunpack.c.h.b16 %v2938
    %v3083 = vunpack.c.l.b16 %v2939
    %v3084 = vunpack.c.h.b16 %v2939
    %v3085 = vunpack.c.l.b16 %v2940
    %v3086 = vunpack.c.h.b16 %v2940
    %v3087 = vunpack.c.l.b16 %v2941
    %v3088 = vunpack.c.h.b16 %v2941
    %v3089 = vunpack.c.l.b16 %v2942
    %v3090 = vunpack.c.h.b16 %v2942
    %v3091 = vunpack.c.l.b16 %v2943
    %v3092 = vunpack.c.h.b16 %v2943
    %v3093 = vunpack.c.l.b16 %v2944
    %v3094 = vunpack.c.h.b16 %v2944
    %v3095 = vunpack.c.l.b16 %v2945
    %v3096 = vunpack.c.h.b16 %v2945
    %v3097 = vunpack.c.l.b16 %v2946
    %v3098 = vunpack.c.h.b16 %v2946
    %v3099 = vunpack.c.l.b16 %v2947
    %v3100 = vunpack.c.h.b16 %v2947
    %v3101 = vunpack.c.l.b16 %v2948
    %v3102 = vunpack.c.h.b16 %v2948
    %v3103 = vunpack.c.l.b16 %v2949
    %v3104 = vunpack.c.h.b16 %v2949
    %v3105 = vunpack.c.l.b16 %v2950
    %v3106 = vunpack.c.h.b16 %v2950
    %v3107 = vunpack.c.l.b16 %v2951
    %v3108 = vunpack.c.h.b16 %v2951
    %v3109 = vunpack.c.l.b16 %v2952
    %v3110 = vunpack.c.h.b16 %v2952
    %v3111 = vunpack.c.l.b16 %v2953
    %v3112 = vunpack.c.h.b16 %v2953
    %v3113 = vunpack.c.l.b16 %v2954
    %v3114 = vunpack.c.h.b16 %v2954
    %v3115 = vunpack.c.l.b16 %v2955
    %v3116 = vunpack.c.h.b16 %v2955
    %v3117 = vunpack.c.l.b16 %v2956
    %v3118 = vunpack.c.h.b16 %v2956
    %v3119 = vunpack.c.l.b16 %v2957
    %v3120 = vunpack.c.h.b16 %v2957
    %v3121 = vunpack.c.l.b16 %v2958
    %v3122 = vunpack.c.h.b16 %v2958
    %v3123 = vunpack.c.l.b16 %v2959
    %v3124 = vunpack.c.h.b16 %v2959
    %v3125 = vunpack.c.l.b16 %v2960
    %v3126 = vunpack.c.h.b16 %v2960
    %v3127 = vunpack.c.l.b16 %v2961
    %v3128 = vunpack.c.h.b16 %v2961
    %v3129 = vunpack.c.l.b16 %v2962
    %v3130 = vunpack.c.h.b16 %v2962
    %v3131 = vunpack.c.l.b16 %v2963
    %v3132 = vunpack.c.h.b16 %v2963
    %v3133 = vunpack.c.l.b16 %v2964
    %v3134 = vunpack.c.h.b16 %v2964
    %v3135 = vunpack.c.l.b16 %v2965
    %v3136 = vunpack.c.h.b16 %v2965
    %v3137 = vunpack.c.l.b16 %v2966
    %v3138 = vunpack.c.h.b16 %v2966
    %v3139 = vunpack.c.l.b16 %v2967
    %v3140 = vunpack.c.h.b16 %v2967
    %v3141 = vunpack.c.l.b16 %v2968
    %v3142 = vunpack.c.h.b16 %v2968
    %v3143 = vunpack.c.l.b16 %v2969
    %v3144 = vunpack.c.h.b16 %v2969
    %v3145 = vunpack.c.l.b16 %v2970
    %v3146 = vunpack.c.h.b16 %v2970
    %v3147 = vunpack.c.l.b16 %v2971
    %v3148 = vunpack.c.h.b16 %v2971
    %v3149 = vunpack.c.l.b16 %v2972
    %v3150 = vunpack.c.h.b16 %v2972
    %v3151 = vunpack.c.l.b16 %v2973
    %v3152 = vunpack.c.h.b16 %v2973
    %v3153 = vunpack.c.l.b16 %v2974
    %v3154 = vunpack.c.h.b16 %v2974
    %v3155 = vunpack.c.l.b16 %v2975
    %v3156 = vunpack.c.h.b16 %v2975
    %v3157 = vunpack.c.l.b16 %v2976
    %v3158 = vunpack.c.h.b16 %v2976
    %v3159 = vunpack.c.l.b16 %v2977
    %v3160 = vunpack.c.h.b16 %v2977
    %v3161 = vunpack.c.l.b16 %v2978
    %v3162 = vunpack.c.h.b16 %v2978
    %v3163 = vunpack.c.l.b16 %v2979
    %v3164 = vunpack.c.h.b16 %v2979
    %v3165 = vunpack.c.l.b16 %v2980
    %v3166 = vunpack.c.h.b16 %v2980
    %v3167 = vunpack.c.l.b16 %v2981
    %v3168 = vunpack.c.h.b16 %v2981
    %v3169 = vunpack.c.l.b16 %v2982
    %v3170 = vunpack.c.h.b16 %v2982
    %v3171 = vunpack.c.l.b16 %v2983
    %v3172 = vunpack.c.h.b16 %v2983
    %v3173 = vunpack.c.l.b16 %v2984
    %v3174 = vunpack.c.h.b16 %v2984
    %v3175 = vunpack.c.l.b16 %v2985
    %v3176 = vunpack.c.h.b16 %v2985
    %v3177 = vunpack.c.l.b16 %v2986
    %v3178 = vunpack.c.h.b16 %v2986
    %v3179 = vpack.c.b16 %v3055, %v3051
    %v3180 = vpack.c.b16 %v3056, %v3052
    %v3181 = vpack.c.b16 %v3057, %v3053
    %v3182 = vpack.c.b16 %v3058, %v3054
    %v3183 = vpack.c.b16 %v3063, %v3059
    %v3184 = vpack.c.b16 %v3064, %v3060
    %v3185 = vpack.c.b16 %v3065, %v3061
    %v3186 = vpack.c.b16 %v3066, %v3062
    %v3187 = vpack.c.b16 %v3071, %v3067
    %v3188 = vpack.c.b16 %v3072, %v3068
    %v3189 = vpack.c.b16 %v3073, %v3069
    %v3190 = vpack.c.b16 %v3074, %v3070
    %v3191 = vpack.c.b16 %v3079, %v3075
    %v3192 = vpack.c.b16 %v3080, %v3076
    %v3193 = vpack.c.b16 %v3081, %v3077
    %v3194 = vpack.c.b16 %v3082, %v3078
    %v3195 = vpack.c.b16 %v3087, %v3083
    %v3196 = vpack.c.b16 %v3088, %v3084
    %v3197 = vpack.c.b16 %v3089, %v3085
    %v3198 = vpack.c.b16 %v3090, %v3086
    %v3199 = vpack.c.b16 %v3095, %v3091
    %v3200 = vpack.c.b16 %v3096, %v3092
    %v3201 = vpack.c.b16 %v3097, %v3093
    %v3202 = vpack.c.b16 %v3098, %v3094
    %v3203 = vpack.c.b16 %v3103, %v3099
    %v3204 = vpack.c.b16 %v3104, %v3100
    %v3205 = vpack.c.b16 %v3105, %v3101
    %v3206 = vpack.c.b16 %v3106, %v3102
    %v3207 = vpack.c.b16 %v3111, %v3107
    %v3208 = vpack.c.b16 %v3112, %v3108
    %v3209 = vpack.c.b16 %v3113, %v3109
    %v3210 = vpack.c.b16 %v3114, %v3110
    %v3211 = vpack.c.b16 %v3119, %v3115
    %v3212 = vpack.c.b16 %v3120, %v3116
    %v3213 = vpack.c.b16 %v3121, %v3117
    %v3214 = vpack.c.b16 %v3122, %v3118
    %v3215 = vpack.c.b16 %v3127, %v3123
    %v3216 = vpack.c.b16 %v3128, %v3124
    %v3217 = vpack.c.b16 %v3129, %v3125
    %v3218 = vpack.c.b16 %v3130, %v3126
    %v3219 = vpack.c.b16 %v3135, %v3131
    %v3220 = vpack.c.b16 %v3136, %v3132
    %v3221 = vpack.c.b16 %v3137, %v3133
    %v3222 = vpack.c.b16 %v3138, %v3134
    %v3223 = vpack.c.b16 %v3143, %v3139
    %v3224 = vpack.c.b16 %v3144, %v3140
    %v3225 = vpack.c.b16 %v3145, %v3141
    %v3226 = vpack.c.b16 %v3146, %v3142
    %v3227 = vpack.c.b16 %v3151, %v3147
    %v3228 = vpack.c.b16 %v3152, %v3148
    %v3229 = vpack.c.b16 %v3153, %v3149
    %v3230 = vpack.c.b16 %v3154, %v3150
    %v3231 = vpack.c.b16 %v3159, %v3155
    %v3232 = vpack.c.b16 %v3160, %v3156
    %v3233 = vpack.c.b16 %v3161, %v3157
    %v3234 = vpack.c.b16 %v3162, %v3158
    %v3235 = vpack.c.b16 %v3167, %v3163
    %v3236 = vpack.c.b16 %v3168, %v3164
    %v3237 = vpack.c.b16 %v3169, %v3165
    %v3238 = vpack.c.b16 %v3170, %v3166
    %v3239 = vpack.c.b16 %v3175, %v3171
    %v3240 = vpack.c.b16 %v3176, %v3172
    %v3241 = vpack.c.b16 %v3177, %v3173
    %v3242 = vpack.c.b16 %v3178, %v3174
    %3307 = vmatprep.subr.bf16.mxu0 %v3208
    %3308 = vmatpush1.bf16.msra.mxu0 %v3207
    %3309 = vmatprep.subr.bf16.mxu0 %v3204
    %3310 = vmatpush1.bf16.msra.mxu0 %v3203
    %3311 = vmatprep.subr.bf16.mxu0 %v3200
    %3312 = vmatpush1.bf16.msra.mxu0 %v3199
    %3313 = vmatprep.subr.bf16.mxu0 %v3196
    %3314 = vmatpush1.bf16.msra.mxu0 %v3195
    %3315 = vmatprep.subr.bf16.mxu0 %v3192
    %3316 = vmatpush1.bf16.msra.mxu0 %v3191
    %3317 = vmatprep.subr.bf16.mxu0 %v3188
    %3318 = vmatpush1.bf16.msra.mxu0 %v3187
    %3319 = vmatprep.subr.bf16.mxu0 %v3184
    %3320 = vmatpush1.bf16.msra.mxu0 %v3183
    %3321 = vmatprep.subr.bf16.mxu0 %v3180
    %3322 = vmatpush1.bf16.msra.mxu0 %v3179
    %3323 = vmatprep.subr.bf16.mxu0 %v3240
    %3324 = vmatpush2.bf16.msra.mxu0 %v3239
    %3325 = vmatprep.subr.bf16.mxu0 %v3236
    %3326 = vmatpush2.bf16.msra.mxu0 %v3235
    %3327 = vmatprep.subr.bf16.mxu0 %v3232
    %3328 = vmatpush2.bf16.msra.mxu0 %v3231
    %3329 = vmatprep.subr.bf16.mxu0 %v3228
    %3330 = vmatpush2.bf16.msra.mxu0 %v3227
    %3331 = vmatprep.subr.bf16.mxu0 %v3224
    %3332 = vmatpush2.bf16.msra.mxu0 %v3223
    %3333 = vmatprep.subr.bf16.mxu0 %v3220
    %3334 = vmatpush2.bf16.msra.mxu0 %v3219
    %3335 = vmatprep.subr.bf16.mxu0 %v3216
    %3336 = vmatpush2.bf16.msra.mxu0 %v3215
    %3337 = vmatprep.subr.bf16.mxu0 %v3212
    %3338 = vmatpush2.bf16.msra.mxu0 %v3211
    %3339 = vmatprep.mubr.bf16.mxu0 %v2919
    %3340 = vmatmul.mubr.bf16.gmra.mxu0 %v2918
    %v3341 = vpop.f32.mrf.mxu0
    %v3342 = vadd.f32 0.0, %v3341
    %v3343 = vpop.f32.mrf.mxu0
    %v3344 = vadd.f32 0.0, %v3343
    %v3345 = vpop.f32.mrf.mxu0
    %v3346 = vadd.f32 0.0, %v3345
    %v3347 = vpop.f32.mrf.mxu0
    %v3348 = vadd.f32 0.0, %v3347
    %3349 = vmatprep.mubr.bf16.mxu0 %v2921
    %3350 = vmatmul.mubr.bf16.gmra.mxu0 %v2920
    %v3351 = vpop.f32.mrf.mxu0
    %v3352 = vadd.f32 0.0, %v3351
    %v3353 = vpop.f32.mrf.mxu0
    %v3354 = vadd.f32 0.0, %v3353
    %v3355 = vpop.f32.mrf.mxu0
    %v3356 = vadd.f32 0.0, %v3355
    %v3357 = vpop.f32.mrf.mxu0
    %v3358 = vadd.f32 0.0, %v3357
    %3359 = vdwg.mxu0
    %3360 = vmatprep.subr.bf16.mxu0 %v3210
    %3361 = vmatpush1.bf16.msra.mxu0 %v3209
    %3362 = vmatprep.subr.bf16.mxu0 %v3206
    %3363 = vmatpush1.bf16.msra.mxu0 %v3205
    %3364 = vmatprep.subr.bf16.mxu0 %v3202
    %3365 = vmatpush1.bf16.msra.mxu0 %v3201
    %3366 = vmatprep.subr.bf16.mxu0 %v3198
    %3367 = vmatpush1.bf16.msra.mxu0 %v3197
    %3368 = vmatprep.subr.bf16.mxu0 %v3194
    %3369 = vmatpush1.bf16.msra.mxu0 %v3193
    %3370 = vmatprep.subr.bf16.mxu0 %v3190
    %3371 = vmatpush1.bf16.msra.mxu0 %v3189
    %3372 = vmatprep.subr.bf16.mxu0 %v3186
    %3373 = vmatpush1.bf16.msra.mxu0 %v3185
    %3374 = vmatprep.subr.bf16.mxu0 %v3182
    %3375 = vmatpush1.bf16.msra.mxu0 %v3181
    %3376 = vmatprep.subr.bf16.mxu0 %v3242
    %3377 = vmatpush2.bf16.msra.mxu0 %v3241
    %3378 = vmatprep.subr.bf16.mxu0 %v3238
    %3379 = vmatpush2.bf16.msra.mxu0 %v3237
    %3380 = vmatprep.subr.bf16.mxu0 %v3234
    %3381 = vmatpush2.bf16.msra.mxu0 %v3233
    %3382 = vmatprep.subr.bf16.mxu0 %v3230
    %3383 = vmatpush2.bf16.msra.mxu0 %v3229
    %3384 = vmatprep.subr.bf16.mxu0 %v3226
    %3385 = vmatpush2.bf16.msra.mxu0 %v3225
    %3386 = vmatprep.subr.bf16.mxu0 %v3222
    %3387 = vmatpush2.bf16.msra.mxu0 %v3221
    %3388 = vmatprep.subr.bf16.mxu0 %v3218
    %3389 = vmatpush2.bf16.msra.mxu0 %v3217
    %3390 = vmatprep.subr.bf16.mxu0 %v3214
    %3391 = vmatpush2.bf16.msra.mxu0 %v3213
    %3392 = vmatprep.mubr.bf16.mxu0 %v2919
    %3393 = vmatmul.mubr.bf16.gmra.mxu0 %v2918
    %v3394 = vpop.f32.mrf.mxu0
    %v3395 = vadd.f32 0.0, %v3394
    %v3396 = vpop.f32.mrf.mxu0
    %v3397 = vadd.f32 0.0, %v3396
    %v3398 = vpop.f32.mrf.mxu0
    %v3399 = vadd.f32 0.0, %v3398
    %v3400 = vpop.f32.mrf.mxu0
    %v3401 = vadd.f32 0.0, %v3400
    %3402 = vmatprep.mubr.bf16.mxu0 %v2921
    %3403 = vmatmul.mubr.bf16.gmra.mxu0 %v2920
    %v3404 = vpop.f32.mrf.mxu0
    %v3405 = vadd.f32 0.0, %v3404
    %v3406 = vpop.f32.mrf.mxu0
    %v3407 = vadd.f32 0.0, %v3406
    %v3408 = vpop.f32.mrf.mxu0
    %v3409 = vadd.f32 0.0, %v3408
    %v3410 = vpop.f32.mrf.mxu0
    %v3411 = vadd.f32 0.0, %v3410
    %3412 = vdwg.mxu0
    %v3413 = vadd.f32 %v2847, %v3342
    %v3414 = vadd.f32 %v2849, %v3344
    %v3415 = vadd.f32 %v2900, %v3395
    %v3416 = vadd.f32 %v2902, %v3397
    %v3417 = vadd.f32 %v2851, %v3346
    %v3418 = vadd.f32 %v2853, %v3348
    %v3419 = vadd.f32 %v2904, %v3399
    %v3420 = vadd.f32 %v2906, %v3401
    %v3421 = vadd.f32 %v2857, %v3352
    %v3422 = vadd.f32 %v2859, %v3354
    %v3423 = vadd.f32 %v2910, %v3405
    %v3424 = vadd.f32 %v2912, %v3407
    %v3425 = vadd.f32 %v2861, %v3356
    %v3426 = vadd.f32 %v2863, %v3358
    %v3427 = vadd.f32 %v2914, %v3409
    %v3428 = vadd.f32 %v2916, %v3411
    %v3429 = vld [vmem:[%s6] sm:$0xf]
    %v3431 = vlaneseq
    %v3432 = vshrl.u32 %v3431, 7
    %v3433 = vsub.s32 0, %v3432
    %v3434 = vrot.slane %v3429, %v3433
    %v3435 = vlaneseq
    %v3436 = vshrl.u32 %v3435, 7
    %v3437 = vsub.s32 1, %v3436
    %v3438 = vrot.slane %v3429, %v3437
    %v3439 = vlaneseq
    %v3440 = vshrl.u32 %v3439, 7
    %v3441 = vsub.s32 2, %v3440
    %v3442 = vrot.slane %v3429, %v3441
    %v3443 = vlaneseq
    %v3444 = vshrl.u32 %v3443, 7
    %v3445 = vsub.s32 3, %v3444
    %v3446 = vrot.slane %v3429, %v3445
    %v3451 = vadd.f32 %v3413, %v3434
    %v3452 = vadd.f32 %v3414, %v3438
    %v3453 = vadd.f32 %v3415, %v3442
    %v3454 = vadd.f32 %v3416, %v3446
    %v3455 = vadd.f32 %v3417, %v3434
    %v3456 = vadd.f32 %v3418, %v3438
    %v3457 = vadd.f32 %v3419, %v3442
    %v3458 = vadd.f32 %v3420, %v3446
    %v3459 = vadd.f32 %v3421, %v3434
    %v3460 = vadd.f32 %v3422, %v3438
    %v3461 = vadd.f32 %v3423, %v3442
    %v3462 = vadd.f32 %v3424, %v3446
    %v3463 = vadd.f32 %v3425, %v3434
    %v3464 = vadd.f32 %v3426, %v3438
    %v3465 = vadd.f32 %v3427, %v3442
    %v3466 = vadd.f32 %v3428, %v3446
    %s3467 = sld [smem:[#allocation3]]
    %v3468 = vstv %s3467
    %v3469 = vmul.f32 %v3468, %v58
    %v3470 = vmul.f32 %v3468, %v59
    %v3471 = vmul.f32 %v3468, %v60
    %v3472 = vmul.f32 %v3468, %v61
    %v3473 = vmul.f32 %v3468, %v62
    %v3474 = vmul.f32 %v3468, %v63
    %v3475 = vmul.f32 %v3468, %v64
    %v3476 = vmul.f32 %v3468, %v65
    %v3477 = vmul.f32 %v3468, %v66
    %v3478 = vmul.f32 %v3468, %v67
    %v3479 = vmul.f32 %v3468, %v68
    %v3480 = vmul.f32 %v3468, %v69
    %v3481 = vmul.f32 %v3468, %v70
    %v3482 = vmul.f32 %v3468, %v71
    %v3483 = vmul.f32 %v3468, %v72
    %v3484 = vmul.f32 %v3468, %v73
    %s3485 = sld [smem:[#allocation3 + $0x1]]
    %v3486 = vstv %s3485
    %v3487 = vmul.f32 %v3486, %v3451
    %v3488 = vmul.f32 %v3486, %v3452
    %v3489 = vmul.f32 %v3486, %v3453
    %v3490 = vmul.f32 %v3486, %v3454
    %v3491 = vmul.f32 %v3486, %v3455
    %v3492 = vmul.f32 %v3486, %v3456
    %v3493 = vmul.f32 %v3486, %v3457
    %v3494 = vmul.f32 %v3486, %v3458
    %v3495 = vmul.f32 %v3486, %v3459
    %v3496 = vmul.f32 %v3486, %v3460
    %v3497 = vmul.f32 %v3486, %v3461
    %v3498 = vmul.f32 %v3486, %v3462
    %v3499 = vmul.f32 %v3486, %v3463
    %v3500 = vmul.f32 %v3486, %v3464
    %v3501 = vmul.f32 %v3486, %v3465
    %v3502 = vmul.f32 %v3486, %v3466
    %v3503 = vadd.f32 %v3469, %v3487
    %v3504 = vadd.f32 %v3470, %v3488
    %v3505 = vadd.f32 %v3471, %v3489
    %v3506 = vadd.f32 %v3472, %v3490
    %v3507 = vadd.f32 %v3473, %v3491
    %v3508 = vadd.f32 %v3474, %v3492
    %v3509 = vadd.f32 %v3475, %v3493
    %v3510 = vadd.f32 %v3476, %v3494
    %v3511 = vadd.f32 %v3477, %v3495
    %v3512 = vadd.f32 %v3478, %v3496
    %v3513 = vadd.f32 %v3479, %v3497
    %v3514 = vadd.f32 %v3480, %v3498
    %v3515 = vadd.f32 %v3481, %v3499
    %v3516 = vadd.f32 %v3482, %v3500
    %v3517 = vadd.f32 %v3483, %v3501
    %v3518 = vadd.f32 %v3484, %v3502
    %3519 = vst [vmem:[%s7] sm:$0xff] %v3503
    %3520 = vst [vmem:[%s7 + $0x8] sm:$0xff] %v3504
    %3521 = vst [vmem:[%s7 + $0x10] sm:$0xff] %v3505
    %3522 = vst [vmem:[%s7 + $0x18] sm:$0xff] %v3506
    %3523 = vst [vmem:[%s7 + $0x20] sm:$0xff] %v3507
    %3524 = vst [vmem:[%s7 + $0x28] sm:$0xff] %v3508
    %3525 = vst [vmem:[%s7 + $0x30] sm:$0xff] %v3509
    %3526 = vst [vmem:[%s7 + $0x38] sm:$0xff] %v3510
    %3527 = vst [vmem:[%s7 + $0x40] sm:$0xff] %v3511
    %3528 = vst [vmem:[%s7 + $0x48] sm:$0xff] %v3512
    %3529 = vst [vmem:[%s7 + $0x50] sm:$0xff] %v3513
    %3530 = vst [vmem:[%s7 + $0x58] sm:$0xff] %v3514
    %3531 = vst [vmem:[%s7 + $0x60] sm:$0xff] %v3515
    %3532 = vst [vmem:[%s7 + $0x68] sm:$0xff] %v3516
    %3533 = vst [vmem:[%s7 + $0x70] sm:$0xff] %v3517
    %3534 = vst [vmem:[%s7 + $0x78] sm:$0xff] %v3518
    // Predicated region
    $region34: #{one_conv_forward.1} parent=1 // pred_check
      _
    $region35: #{one_conv_forward.1} parent=1 // pred_check_branch
      %3536 = sbr.rel (0) target = $region37
    $region36: #{one_conv_forward.1} parent=1 // pred_region
      _
    $region37: #{one_conv_forward.1} parent=1 // pred_fallthru
      _
    // Predicated region
    $region38: #{one_conv_forward.1} parent=1 // pred_check
      _
    $region39: #{one_conv_forward.1} parent=1 // pred_check_branch
      %3538 = sbr.rel (0) target = $region41
    $region40: #{one_conv_forward.1} parent=1 // pred_region
      _
    $region41: #{one_conv_forward.1} parent=1 // pred_fallthru
      _
    %3539 = vsyncpa [#allocation5], 1
    %3540 = vsyncpa [#allocation7], 1

</llo_original>
